<compile_context>
chip_gen: v7x
topology: tpu7x:2x2x1
jax: 0.10.0
libtpu: 0.0.40
codegen_flags: <defaults>
</compile_context>

<pallas_src>
import functools
import math

import jax
import jax.numpy as jnp
from jax.experimental import pallas as pl
from jax.experimental.pallas import tpu as pltpu


# ---------------------------------------------------------------------------
# Helpers traced inside the kernel body
# ---------------------------------------------------------------------------
def _layer_norm(x, gamma, beta, eps=1e-5):
    mu = jnp.mean(x, axis=-1, keepdims=True)
    var = jnp.mean((x - mu) ** 2, axis=-1, keepdims=True)
    return (x - mu) * jax.lax.rsqrt(var + eps) * gamma + beta


def _attention(q, k, v, add_mask, num_heads):
    """Head-batched attention on projected (S, E) operands. f32 in, f32 out."""
    S, E = q.shape
    D = E // num_heads
    scale = 1.0 / math.sqrt(D)

    qh = q.reshape(S, num_heads, D).astype(jnp.bfloat16)
    kh = k.reshape(S, num_heads, D).astype(jnp.bfloat16)
    vh = v.reshape(S, num_heads, D).astype(jnp.bfloat16)

    # (H, Sq, Sk) scores, heads as MXU batch dim — no per-head slicing/concat.
    scores = jnp.einsum("qhd,khd->hqk", qh, kh,
                        preferred_element_type=jnp.float32) * scale
    if add_mask is not None:
        scores = scores + add_mask[None, :, :]

    # softmax in f32; divide moved to the EUP via approximate reciprocal
    m = jnp.max(scores, axis=-1, keepdims=True)
    e = jnp.exp(scores - m)
    denom = jnp.sum(e, axis=-1, keepdims=True)
    probs = e * pl.reciprocal(denom, approx=True)

    ctx = jnp.einsum("hqk,khd->qhd", probs.astype(jnp.bfloat16), vh,
                     preferred_element_type=jnp.float32)
    return ctx.reshape(S, E)


# ---------------------------------------------------------------------------
# Pallas kernel: full decoder block for one batch element
# ---------------------------------------------------------------------------
def _decoder_block_kernel(q_ref, k_ref, v_ref, amask_ref,
                          wqkv1_ref, bqkv1_ref, wo1_ref, bo1_ref,
                          w2_ref, b2_ref, ln_ref,
                          wff1_ref, bff1_ref, wff2_ref, bff2_ref,
                          o_ref, *, num_heads):
    f32, bf16 = jnp.float32, jnp.bfloat16

    x_q = q_ref[0]              # (S, E) f32
    x_k = k_ref[0]
    x_v = v_ref[0]
    add_mask = amask_ref[...]   # (S, S) additive mask (0 / -1e9), precomputed
    S, E = x_q.shape

    LN = ln_ref[...]            # (6, E) : g1,b1,g2,b2,g3,b3

    # ---- masked self-attention: fused QKV projection + residual + LN -------
    xq_bf = x_q.astype(bf16)
    qkv = jnp.dot(xq_bf, wqkv1_ref[...].astype(bf16),
                  preferred_element_type=f32) + bqkv1_ref[...]        # (S, 3E)
    ctx1 = _attention(qkv[:, :E], qkv[:, E:2 * E], qkv[:, 2 * E:],
                      add_mask, num_heads)
    sa = jnp.dot(ctx1.astype(bf16), wo1_ref[...].astype(bf16),
                 preferred_element_type=f32) + bo1_ref[...]
    x1 = _layer_norm(sa + x_q, LN[0], LN[1])
    # dropout -> identity (eval)

    # ---- cross-attention (EncoderBlock) + residual + LN ---------------------
    W2 = w2_ref[...].astype(bf16)   # (4, E, E) : q, k, v, o
    b2 = b2_ref[...]                # (4, E)
    q2 = jnp.dot(x1.astype(bf16), W2[0], preferred_element_type=f32) + b2[0]
    k2 = jnp.dot(x_k.astype(bf16), W2[1], preferred_element_type=f32) + b2[1]
    v2 = jnp.dot(x_v.astype(bf16), W2[2], preferred_element_type=f32) + b2[2]
    ctx2 = _attention(q2, k2, v2, None, num_heads)
    ca = jnp.dot(ctx2.astype(bf16), W2[3], preferred_element_type=f32) + b2[3]
    x2 = _layer_norm(ca + x1, LN[2], LN[3])

    # ---- feed-forward + residual + LN ---------------------------------------
    h = jnp.dot(x2.astype(bf16), wff1_ref[...].astype(bf16),
                preferred_element_type=f32) + bff1_ref[...]
    h = jnp.maximum(h, 0.0)
    ff = jnp.dot(h.astype(bf16), wff2_ref[...].astype(bf16),
                 preferred_element_type=f32) + bff2_ref[...]
    out = _layer_norm(ff + x2, LN[4], LN[5])

    o_ref[0] = out.astype(o_ref.dtype)


def decoder_block_pallas(query, key, value, mask, params, num_heads):
    Bsz, S, E = query.shape
    F = params["Wff1"].shape[-1]

    # Convert boolean/0-1 mask to an additive mask ONCE (outside the head math).
    add_mask = jnp.where(mask > 0, 0.0, -1e9).astype(jnp.float32)

    kernel = functools.partial(_decoder_block_kernel, num_heads=num_heads)

    seq_spec = pl.BlockSpec((1, S, E), lambda b: (b, 0, 0))
    const = lambda shape: pl.BlockSpec(shape, lambda b: (0,) * len(shape))

    return pl.pallas_call(
        kernel,
        out_shape=jax.ShapeDtypeStruct((Bsz, S, E), query.dtype),
        grid_spec=pltpu.PrefetchScalarGridSpec(
            num_scalar_prefetch=0,
            grid=(Bsz,),
            in_specs=[
                seq_spec,                     # query
                seq_spec,                     # key
                seq_spec,                     # value
                const((S, S)),                # additive mask
                const((E, 3 * E)),            # fused Wq|Wk|Wv (self-attn)
                const((1, 3 * E)),            # fused bq|bk|bv
                const((E, E)),                # Wo (self-attn)
                const((1, E)),                # bo
                const((4, E, E)),             # cross-attn Wq,Wk,Wv,Wo
                const((4, E)),                # cross-attn biases
                const((6, E)),                # LayerNorm gammas/betas
                const((E, F)),                # Wff1
                const((1, F)),                # bff1
                const((F, E)),                # Wff2
                const((1, E)),                # bff2
            ],
            out_specs=seq_spec,
        ),
        compiler_params=pltpu.CompilerParams(
            dimension_semantics=("parallel",),      # shard batch across TCs
            vmem_limit_bytes=64 * 1024 * 1024,
        ),
    )(query, key, value, add_mask,
      params["Wqkv1"], params["bqkv1"], params["Wo1"], params["bo1"],
      params["W2"], params["b2"], params["LN"],
      params["Wff1"], params["bff1"], params["Wff2"], params["bff2"])


# ---------------------------------------------------------------------------
# Pure-JAX f32 reference (same math, no bf16) for a correctness check
# ---------------------------------------------------------------------------
def decoder_block_ref(query, key, value, mask, params, num_heads):
    E = query.shape[-1]
    H = num_heads
    D = E // H
    scale = 1.0 / math.sqrt(D)

    def ln(x, g, b, eps=1e-5):
        mu = jnp.mean(x, -1, keepdims=True)
        var = jnp.mean((x - mu) ** 2, -1, keepdims=True)
        return (x - mu) * jax.lax.rsqrt(var + eps) * g + b

    def attn(q, k, v, m):
        S = q.shape[0]
        qh = q.reshape(S, H, D)
        kh = k.reshape(S, H, D)
        vh = v.reshape(S, H, D)
        s = jnp.einsum("qhd,khd->hqk", qh, kh) * scale
        if m is not None:
            s = jnp.where(m[None] > 0, s, -1e9)
        p = jax.nn.softmax(s, axis=-1)
        return jnp.einsum("hqk,khd->qhd", p, vh).reshape(S, E)

    Wqkv1, bqkv1 = params["Wqkv1"], params["bqkv1"][0]
    Wo1, bo1 = params["Wo1"], params["bo1"][0]
    W2, b2 = params["W2"], params["b2"]
    LN = params["LN"]

    def one(xq, xk, xv):
        qkv = xq @ Wqkv1 + bqkv1
        sa = attn(qkv[:, :E], qkv[:, E:2 * E], qkv[:, 2 * E:], mask) @ Wo1 + bo1
        x1 = ln(sa + xq, LN[0], LN[1])
        q2 = x1 @ W2[0] + b2[0]
        k2 = xk @ W2[1] + b2[1]
        v2 = xv @ W2[2] + b2[2]
        ca = attn(q2, k2, v2, None) @ W2[3] + b2[3]
        x2 = ln(ca + x1, LN[2], LN[3])
        h = jnp.maximum(x2 @ params["Wff1"] + params["bff1"][0], 0.0)
        ff = h @ params["Wff2"] + params["bff2"][0]
        return ln(ff + x2, LN[4], LN[5])

    return jax.vmap(one)(query, key, value)


# ---------------------------------------------------------------------------
# Deterministic parameter construction
# ---------------------------------------------------------------------------
def make_params(key, embed_size, feedforward_dim):
    E, F = embed_size, feedforward_dim
    ks = jax.random.split(key, 5)
    Wqkv1 = 0.02 * jax.random.normal(ks[0], (E, 3 * E), jnp.float32)
    bqkv1 = jnp.zeros((1, 3 * E), jnp.float32)
    Wo1 = 0.02 * jax.random.normal(ks[1], (E, E), jnp.float32)
    bo1 = jnp.zeros((1, E), jnp.float32)
    W2 = 0.02 * jax.random.normal(ks[2], (4, E, E), jnp.float32)
    b2 = jnp.zeros((4, E), jnp.float32)
    LN = jnp.stack([jnp.ones(E), jnp.zeros(E)] * 3).astype(jnp.float32)
    Wff1 = 0.02 * jax.random.normal(ks[3], (E, F), jnp.float32)
    bff1 = jnp.zeros((1, F), jnp.float32)
    Wff2 = 0.02 * jax.random.normal(ks[4], (F, E), jnp.float32)
    bff2 = jnp.zeros((1, E), jnp.float32)
    return dict(Wqkv1=Wqkv1, bqkv1=bqkv1, Wo1=Wo1, bo1=bo1, W2=W2, b2=b2,
                LN=LN, Wff1=Wff1, bff1=bff1, Wff2=Wff2, bff2=bff2)


if __name__ == "__main__":
    embed_size, num_heads, feedforward_dim = 32, 4, 64
    batch, seq = 2, 8

    root = jax.random.PRNGKey(0)
    kq, kk, kv, kp = jax.random.split(root, 4)
    query = jax.random.normal(kq, (batch, seq, embed_size), jnp.float32)
    key_t = jax.random.normal(kk, (batch, seq, embed_size), jnp.float32)
    value = jax.random.normal(kv, (batch, seq, embed_size), jnp.float32)
    mask = jnp.tril(jnp.ones((seq, seq), jnp.float32))  # causal mask, 1 = keep

    params = make_params(kp, embed_size, feedforward_dim)

    out = decoder_block_pallas(query, key_t, value, mask, params, num_heads)
    out = jax.block_until_ready(out)

    ref = decoder_block_ref(query, key_t, value, mask, params, num_heads)
    assert out.shape == (batch, seq, embed_size)
    assert jnp.all(jnp.isfinite(out))
    # Kernel uses bf16 MXU operands + approx reciprocal softmax; compare to the
    # f32 reference with tolerances appropriate for bf16 accumulation error.
    assert jnp.allclose(out, ref, atol=5e-2, rtol=5e-2)

    print("KERNEL_OK")
</pallas_src>

<mosaic_0001>
module attributes {stable_mosaic.version = 11 : i64} {
  func.func @_decoder_block_kernel(%arg0: i32, %arg1: memref<1x8x32xf32, #tpu.memory_space<vmem>>, %arg2: memref<1x8x32xf32, #tpu.memory_space<vmem>>, %arg3: memref<1x8x32xf32, #tpu.memory_space<vmem>>, %arg4: memref<8x8xf32, #tpu.memory_space<vmem>>, %arg5: memref<32x96xf32, #tpu.memory_space<vmem>>, %arg6: memref<1x96xf32, #tpu.memory_space<vmem>>, %arg7: memref<32x32xf32, #tpu.memory_space<vmem>>, %arg8: memref<1x32xf32, #tpu.memory_space<vmem>>, %arg9: memref<4x32x32xf32, #tpu.memory_space<vmem>>, %arg10: memref<4x32xf32, #tpu.memory_space<vmem>>, %arg11: memref<6x32xf32, #tpu.memory_space<vmem>>, %arg12: memref<32x64xf32, #tpu.memory_space<vmem>>, %arg13: memref<1x64xf32, #tpu.memory_space<vmem>>, %arg14: memref<64x32xf32, #tpu.memory_space<vmem>>, %arg15: memref<1x32xf32, #tpu.memory_space<vmem>>, %arg16: memref<1x8x32xf32, #tpu.memory_space<vmem>>) attributes {dimension_semantics = [#tpu.dimension_semantics<parallel>], iteration_bounds = array<i64: 2>, scalar_prefetch = 0 : i64, scratch_operands = 0 : i64, tpu.core_type = #tpu.core_type<tc>, window_params = [{transform_indices = @transform_0, window_bounds = array<i64: 1, 8, 32>}, {transform_indices = @transform_1, window_bounds = array<i64: 1, 8, 32>}, {transform_indices = @transform_2, window_bounds = array<i64: 1, 8, 32>}, {pipeline_mode = #tpu.pipeline_mode<synchronous>, transform_indices = @transform_3, window_bounds = array<i64: 8, 8>}, {pipeline_mode = #tpu.pipeline_mode<synchronous>, transform_indices = @transform_4, window_bounds = array<i64: 32, 96>}, {pipeline_mode = #tpu.pipeline_mode<synchronous>, transform_indices = @transform_5, window_bounds = array<i64: 1, 96>}, {pipeline_mode = #tpu.pipeline_mode<synchronous>, transform_indices = @transform_6, window_bounds = array<i64: 32, 32>}, {pipeline_mode = #tpu.pipeline_mode<synchronous>, transform_indices = @transform_7, window_bounds = array<i64: 1, 32>}, {pipeline_mode = #tpu.pipeline_mode<synchronous>, transform_indices = @transform_8, window_bounds = array<i64: 4, 32, 32>}, {pipeline_mode = #tpu.pipeline_mode<synchronous>, transform_indices = @transform_9, window_bounds = array<i64: 4, 32>}, {pipeline_mode = #tpu.pipeline_mode<synchronous>, transform_indices = @transform_10, window_bounds = array<i64: 6, 32>}, {pipeline_mode = #tpu.pipeline_mode<synchronous>, transform_indices = @transform_11, window_bounds = array<i64: 32, 64>}, {pipeline_mode = #tpu.pipeline_mode<synchronous>, transform_indices = @transform_12, window_bounds = array<i64: 1, 64>}, {pipeline_mode = #tpu.pipeline_mode<synchronous>, transform_indices = @transform_13, window_bounds = array<i64: 64, 32>}, {pipeline_mode = #tpu.pipeline_mode<synchronous>, transform_indices = @transform_14, window_bounds = array<i64: 1, 32>}, {transform_indices = @transform_15, window_bounds = array<i64: 1, 8, 32>}]} {
    %c0 = arith.constant 0 : index
    %c0_0 = arith.constant 0 : index
    %c0_1 = arith.constant 0 : index
    %0 = vector.load %arg1[%c0, %c0_0, %c0_1] : memref<1x8x32xf32, #tpu.memory_space<vmem>>, vector<1x8x32xf32>
    %1 = vector.shape_cast %0 : vector<1x8x32xf32> to vector<8x32xf32>
    %c0_2 = arith.constant 0 : index
    %c0_3 = arith.constant 0 : index
    %c0_4 = arith.constant 0 : index
    %2 = vector.load %arg2[%c0_2, %c0_3, %c0_4] : memref<1x8x32xf32, #tpu.memory_space<vmem>>, vector<1x8x32xf32>
    %3 = vector.shape_cast %2 : vector<1x8x32xf32> to vector<8x32xf32>
    %c0_5 = arith.constant 0 : index
    %c0_6 = arith.constant 0 : index
    %c0_7 = arith.constant 0 : index
    %4 = vector.load %arg3[%c0_5, %c0_6, %c0_7] : memref<1x8x32xf32, #tpu.memory_space<vmem>>, vector<1x8x32xf32>
    %5 = vector.shape_cast %4 : vector<1x8x32xf32> to vector<8x32xf32>
    %c0_8 = arith.constant 0 : index
    %c0_9 = arith.constant 0 : index
    %6 = vector.load %arg4[%c0_8, %c0_9] : memref<8x8xf32, #tpu.memory_space<vmem>>, vector<8x8xf32>
    %c0_10 = arith.constant 0 : index
    %c0_11 = arith.constant 0 : index
    %7 = vector.load %arg11[%c0_10, %c0_11] : memref<6x32xf32, #tpu.memory_space<vmem>>, vector<6x32xf32>
    %8 = arith.truncf %1 : vector<8x32xf32> to vector<8x32xbf16>
    %c0_12 = arith.constant 0 : index
    %c0_13 = arith.constant 0 : index
    %9 = vector.load %arg5[%c0_12, %c0_13] : memref<32x96xf32, #tpu.memory_space<vmem>>, vector<32x96xf32>
    %10 = arith.truncf %9 : vector<32x96xf32> to vector<32x96xbf16>
    %cst = arith.constant dense<0.000000e+00> : vector<8x96xf32>
    %11 = tpu.matmul %8, %10, %cst {dimension_numbers = #tpu.dot_dimension_numbers<[1], [0], [0], [1], [0, 0, 1, 1], [], []>} : vector<8x32xbf16>, vector<32x96xbf16>, vector<8x96xf32> -> vector<8x96xf32>
    %c0_14 = arith.constant 0 : index
    %c0_15 = arith.constant 0 : index
    %12 = vector.load %arg6[%c0_14, %c0_15] : memref<1x96xf32, #tpu.memory_space<vmem>>, vector<1x96xf32>
    %13 = vector.broadcast %12 : vector<1x96xf32> to vector<8x96xf32>
    %14 = arith.addf %11, %13 : vector<8x96xf32>
    %15 = vector.extract_strided_slice %14 {offsets = [0, 0], sizes = [8, 32], strides = [1, 1]} : vector<8x96xf32> to vector<8x32xf32>
    %16 = vector.extract_strided_slice %14 {offsets = [0, 32], sizes = [8, 32], strides = [1, 1]} : vector<8x96xf32> to vector<8x32xf32>
    %17 = vector.extract_strided_slice %14 {offsets = [0, 64], sizes = [8, 32], strides = [1, 1]} : vector<8x96xf32> to vector<8x32xf32>
    %18 = vector.shape_cast %15 : vector<8x32xf32> to vector<8x4x8xf32>
    %19 = arith.truncf %18 : vector<8x4x8xf32> to vector<8x4x8xbf16>
    %20 = vector.shape_cast %16 : vector<8x32xf32> to vector<8x4x8xf32>
    %21 = arith.truncf %20 : vector<8x4x8xf32> to vector<8x4x8xbf16>
    %22 = vector.shape_cast %17 : vector<8x32xf32> to vector<8x4x8xf32>
    %23 = arith.truncf %22 : vector<8x4x8xf32> to vector<8x4x8xbf16>
    "tpu.trace_start"() <{level = 10 : i32, message = "qhd,khd->hqk"}> : () -> ()
    %cst_16 = arith.constant dense<0.000000e+00> : vector<4x8x8xf32>
    %24 = tpu.matmul %19, %21, %cst_16 {dimension_numbers = #tpu.dot_dimension_numbers<[2], [2], [0], [0], [0, 1, 0, 0, 1, 0], [1], [1]>} : vector<8x4x8xbf16>, vector<8x4x8xbf16>, vector<4x8x8xf32> -> vector<4x8x8xf32>
    "tpu.trace_stop"() : () -> ()
    %cst_17 = arith.constant 0.353553385 : f32
    %25 = vector.broadcast %cst_17 : f32 to vector<4x8x8xf32>
    %26 = arith.mulf %24, %25 : vector<4x8x8xf32>
    %27 = vector.shape_cast %6 : vector<8x8xf32> to vector<1x8x8xf32>
    %28 = vector.broadcast %27 : vector<1x8x8xf32> to vector<4x8x8xf32>
    %29 = arith.addf %26, %28 : vector<4x8x8xf32>
    %cst_18 = arith.constant dense<0xFF800000> : vector<4x8xf32>
    %30 = vector.multi_reduction <maximumf>, %29, %cst_18 [2] : vector<4x8x8xf32> to vector<4x8xf32>
    %31 = vector.shape_cast %30 : vector<4x8xf32> to vector<4x8x1xf32>
    %32 = vector.broadcast %31 : vector<4x8x1xf32> to vector<4x8x8xf32>
    %33 = arith.subf %29, %32 : vector<4x8x8xf32>
    %34 = math.exp %33 : vector<4x8x8xf32>
    %cst_19 = arith.constant dense<0.000000e+00> : vector<4x8xf32>
    %35 = vector.multi_reduction <add>, %34, %cst_19 [2] : vector<4x8x8xf32> to vector<4x8xf32>
    %36 = vector.shape_cast %35 : vector<4x8xf32> to vector<4x8x1xf32>
    %37 = tpu.reciprocal %36 {approx = true} : vector<4x8x1xf32> -> vector<4x8x1xf32>
    %38 = vector.broadcast %37 : vector<4x8x1xf32> to vector<4x8x8xf32>
    %39 = arith.mulf %34, %38 : vector<4x8x8xf32>
    %40 = arith.truncf %39 : vector<4x8x8xf32> to vector<4x8x8xbf16>
    "tpu.trace_start"() <{level = 10 : i32, message = "hqk,khd->qhd"}> : () -> ()
    %cst_20 = arith.constant dense<0.000000e+00> : vector<4x8x8xf32>
    %41 = tpu.matmul %23, %40, %cst_20 {dimension_numbers = #tpu.dot_dimension_numbers<[0], [2], [2], [1], [0, 1, 0, 2, 1, 1], [1], [0]>} : vector<8x4x8xbf16>, vector<4x8x8xbf16>, vector<4x8x8xf32> -> vector<4x8x8xf32>
    %42 = tpu.transpose %41, [2, 0, 1] : vector<4x8x8xf32> -> vector<8x4x8xf32>
    "tpu.trace_stop"() : () -> ()
    %43 = vector.shape_cast %42 : vector<8x4x8xf32> to vector<8x32xf32>
    %44 = arith.truncf %43 : vector<8x32xf32> to vector<8x32xbf16>
    %c0_21 = arith.constant 0 : index
    %c0_22 = arith.constant 0 : index
    %45 = vector.load %arg7[%c0_21, %c0_22] : memref<32x32xf32, #tpu.memory_space<vmem>>, vector<32x32xf32>
    %46 = arith.truncf %45 : vector<32x32xf32> to vector<32x32xbf16>
    %cst_23 = arith.constant dense<0.000000e+00> : vector<8x32xf32>
    %47 = tpu.matmul %44, %46, %cst_23 {dimension_numbers = #tpu.dot_dimension_numbers<[1], [0], [0], [1], [0, 0, 1, 1], [], []>} : vector<8x32xbf16>, vector<32x32xbf16>, vector<8x32xf32> -> vector<8x32xf32>
    %c0_24 = arith.constant 0 : index
    %c0_25 = arith.constant 0 : index
    %48 = vector.load %arg8[%c0_24, %c0_25] : memref<1x32xf32, #tpu.memory_space<vmem>>, vector<1x32xf32>
    %49 = vector.broadcast %48 : vector<1x32xf32> to vector<8x32xf32>
    %50 = arith.addf %47, %49 : vector<8x32xf32>
    %51 = arith.addf %50, %1 : vector<8x32xf32>
    %52 = vector.extract_strided_slice %7 {offsets = [0, 0], sizes = [1, 32], strides = [1, 1]} : vector<6x32xf32> to vector<1x32xf32>
    %53 = vector.shape_cast %52 : vector<1x32xf32> to vector<32xf32>
    %54 = vector.extract_strided_slice %7 {offsets = [1, 0], sizes = [1, 32], strides = [1, 1]} : vector<6x32xf32> to vector<1x32xf32>
    %55 = vector.shape_cast %54 : vector<1x32xf32> to vector<32xf32>
    %cst_26 = arith.constant dense<0.000000e+00> : vector<8xf32>
    %56 = vector.multi_reduction <add>, %51, %cst_26 [1] : vector<8x32xf32> to vector<8xf32>
    %57 = vector.shape_cast %56 : vector<8xf32> to vector<8x1xf32>
    %cst_27 = arith.constant 3.200000e+01 : f32
    %58 = vector.broadcast %cst_27 : f32 to vector<8x1xf32>
    %59 = arith.divf %57, %58 : vector<8x1xf32>
    %60 = vector.broadcast %59 : vector<8x1xf32> to vector<8x32xf32>
    %61 = arith.subf %51, %60 : vector<8x32xf32>
    %62 = arith.mulf %61, %61 : vector<8x32xf32>
    %cst_28 = arith.constant dense<0.000000e+00> : vector<8xf32>
    %63 = vector.multi_reduction <add>, %62, %cst_28 [1] : vector<8x32xf32> to vector<8xf32>
    %64 = vector.shape_cast %63 : vector<8xf32> to vector<8x1xf32>
    %cst_29 = arith.constant 3.200000e+01 : f32
    %65 = vector.broadcast %cst_29 : f32 to vector<8x1xf32>
    %66 = arith.divf %64, %65 : vector<8x1xf32>
    %67 = vector.broadcast %59 : vector<8x1xf32> to vector<8x32xf32>
    %68 = arith.subf %51, %67 : vector<8x32xf32>
    %cst_30 = arith.constant 9.99999974E-6 : f32
    %69 = vector.broadcast %cst_30 : f32 to vector<8x1xf32>
    %70 = arith.addf %66, %69 : vector<8x1xf32>
    %71 = math.rsqrt %70 : vector<8x1xf32>
    %72 = vector.broadcast %71 : vector<8x1xf32> to vector<8x32xf32>
    %73 = arith.mulf %68, %72 : vector<8x32xf32>
    %74 = vector.shape_cast %53 : vector<32xf32> to vector<1x32xf32>
    %75 = vector.broadcast %74 : vector<1x32xf32> to vector<8x32xf32>
    %76 = arith.mulf %73, %75 : vector<8x32xf32>
    %77 = vector.shape_cast %55 : vector<32xf32> to vector<1x32xf32>
    %78 = vector.broadcast %77 : vector<1x32xf32> to vector<8x32xf32>
    %79 = arith.addf %76, %78 : vector<8x32xf32>
    %c0_31 = arith.constant 0 : index
    %c0_32 = arith.constant 0 : index
    %c0_33 = arith.constant 0 : index
    %80 = vector.load %arg9[%c0_31, %c0_32, %c0_33] : memref<4x32x32xf32, #tpu.memory_space<vmem>>, vector<4x32x32xf32>
    %81 = arith.truncf %80 : vector<4x32x32xf32> to vector<4x32x32xbf16>
    %c0_34 = arith.constant 0 : index
    %c0_35 = arith.constant 0 : index
    %82 = vector.load %arg10[%c0_34, %c0_35] : memref<4x32xf32, #tpu.memory_space<vmem>>, vector<4x32xf32>
    %83 = arith.truncf %79 : vector<8x32xf32> to vector<8x32xbf16>
    %84 = vector.extract_strided_slice %81 {offsets = [0, 0, 0], sizes = [1, 32, 32], strides = [1, 1, 1]} : vector<4x32x32xbf16> to vector<1x32x32xbf16>
    %85 = vector.shape_cast %84 : vector<1x32x32xbf16> to vector<32x32xbf16>
    %cst_36 = arith.constant dense<0.000000e+00> : vector<8x32xf32>
    %86 = tpu.matmul %83, %85, %cst_36 {dimension_numbers = #tpu.dot_dimension_numbers<[1], [0], [0], [1], [0, 0, 1, 1], [], []>} : vector<8x32xbf16>, vector<32x32xbf16>, vector<8x32xf32> -> vector<8x32xf32>
    %87 = vector.extract_strided_slice %82 {offsets = [0, 0], sizes = [1, 32], strides = [1, 1]} : vector<4x32xf32> to vector<1x32xf32>
    %88 = vector.shape_cast %87 : vector<1x32xf32> to vector<32xf32>
    %89 = vector.shape_cast %88 : vector<32xf32> to vector<1x32xf32>
    %90 = vector.broadcast %89 : vector<1x32xf32> to vector<8x32xf32>
    %91 = arith.addf %86, %90 : vector<8x32xf32>
    %92 = arith.truncf %3 : vector<8x32xf32> to vector<8x32xbf16>
    %93 = vector.extract_strided_slice %81 {offsets = [1, 0, 0], sizes = [1, 32, 32], strides = [1, 1, 1]} : vector<4x32x32xbf16> to vector<1x32x32xbf16>
    %94 = vector.shape_cast %93 : vector<1x32x32xbf16> to vector<32x32xbf16>
    %cst_37 = arith.constant dense<0.000000e+00> : vector<8x32xf32>
    %95 = tpu.matmul %92, %94, %cst_37 {dimension_numbers = #tpu.dot_dimension_numbers<[1], [0], [0], [1], [0, 0, 1, 1], [], []>} : vector<8x32xbf16>, vector<32x32xbf16>, vector<8x32xf32> -> vector<8x32xf32>
    %96 = vector.extract_strided_slice %82 {offsets = [1, 0], sizes = [1, 32], strides = [1, 1]} : vector<4x32xf32> to vector<1x32xf32>
    %97 = vector.shape_cast %96 : vector<1x32xf32> to vector<32xf32>
    %98 = vector.shape_cast %97 : vector<32xf32> to vector<1x32xf32>
    %99 = vector.broadcast %98 : vector<1x32xf32> to vector<8x32xf32>
    %100 = arith.addf %95, %99 : vector<8x32xf32>
    %101 = arith.truncf %5 : vector<8x32xf32> to vector<8x32xbf16>
    %102 = vector.extract_strided_slice %81 {offsets = [2, 0, 0], sizes = [1, 32, 32], strides = [1, 1, 1]} : vector<4x32x32xbf16> to vector<1x32x32xbf16>
    %103 = vector.shape_cast %102 : vector<1x32x32xbf16> to vector<32x32xbf16>
    %cst_38 = arith.constant dense<0.000000e+00> : vector<8x32xf32>
    %104 = tpu.matmul %101, %103, %cst_38 {dimension_numbers = #tpu.dot_dimension_numbers<[1], [0], [0], [1], [0, 0, 1, 1], [], []>} : vector<8x32xbf16>, vector<32x32xbf16>, vector<8x32xf32> -> vector<8x32xf32>
    %105 = vector.extract_strided_slice %82 {offsets = [2, 0], sizes = [1, 32], strides = [1, 1]} : vector<4x32xf32> to vector<1x32xf32>
    %106 = vector.shape_cast %105 : vector<1x32xf32> to vector<32xf32>
    %107 = vector.shape_cast %106 : vector<32xf32> to vector<1x32xf32>
    %108 = vector.broadcast %107 : vector<1x32xf32> to vector<8x32xf32>
    %109 = arith.addf %104, %108 : vector<8x32xf32>
    %110 = vector.shape_cast %91 : vector<8x32xf32> to vector<8x4x8xf32>
    %111 = arith.truncf %110 : vector<8x4x8xf32> to vector<8x4x8xbf16>
    %112 = vector.shape_cast %100 : vector<8x32xf32> to vector<8x4x8xf32>
    %113 = arith.truncf %112 : vector<8x4x8xf32> to vector<8x4x8xbf16>
    %114 = vector.shape_cast %109 : vector<8x32xf32> to vector<8x4x8xf32>
    %115 = arith.truncf %114 : vector<8x4x8xf32> to vector<8x4x8xbf16>
    "tpu.trace_start"() <{level = 10 : i32, message = "qhd,khd->hqk"}> : () -> ()
    %cst_39 = arith.constant dense<0.000000e+00> : vector<4x8x8xf32>
    %116 = tpu.matmul %111, %113, %cst_39 {dimension_numbers = #tpu.dot_dimension_numbers<[2], [2], [0], [0], [0, 1, 0, 0, 1, 0], [1], [1]>} : vector<8x4x8xbf16>, vector<8x4x8xbf16>, vector<4x8x8xf32> -> vector<4x8x8xf32>
    "tpu.trace_stop"() : () -> ()
    %cst_40 = arith.constant 0.353553385 : f32
    %117 = vector.broadcast %cst_40 : f32 to vector<4x8x8xf32>
    %118 = arith.mulf %116, %117 : vector<4x8x8xf32>
    %cst_41 = arith.constant dense<0xFF800000> : vector<4x8xf32>
    %119 = vector.multi_reduction <maximumf>, %118, %cst_41 [2] : vector<4x8x8xf32> to vector<4x8xf32>
    %120 = vector.shape_cast %119 : vector<4x8xf32> to vector<4x8x1xf32>
    %121 = vector.broadcast %120 : vector<4x8x1xf32> to vector<4x8x8xf32>
    %122 = arith.subf %118, %121 : vector<4x8x8xf32>
    %123 = math.exp %122 : vector<4x8x8xf32>
    %cst_42 = arith.constant dense<0.000000e+00> : vector<4x8xf32>
    %124 = vector.multi_reduction <add>, %123, %cst_42 [2] : vector<4x8x8xf32> to vector<4x8xf32>
    %125 = vector.shape_cast %124 : vector<4x8xf32> to vector<4x8x1xf32>
    %126 = tpu.reciprocal %125 {approx = true} : vector<4x8x1xf32> -> vector<4x8x1xf32>
    %127 = vector.broadcast %126 : vector<4x8x1xf32> to vector<4x8x8xf32>
    %128 = arith.mulf %123, %127 : vector<4x8x8xf32>
    %129 = arith.truncf %128 : vector<4x8x8xf32> to vector<4x8x8xbf16>
    "tpu.trace_start"() <{level = 10 : i32, message = "hqk,khd->qhd"}> : () -> ()
    %cst_43 = arith.constant dense<0.000000e+00> : vector<4x8x8xf32>
    %130 = tpu.matmul %115, %129, %cst_43 {dimension_numbers = #tpu.dot_dimension_numbers<[0], [2], [2], [1], [0, 1, 0, 2, 1, 1], [1], [0]>} : vector<8x4x8xbf16>, vector<4x8x8xbf16>, vector<4x8x8xf32> -> vector<4x8x8xf32>
    %131 = tpu.transpose %130, [2, 0, 1] : vector<4x8x8xf32> -> vector<8x4x8xf32>
    "tpu.trace_stop"() : () -> ()
    %132 = vector.shape_cast %131 : vector<8x4x8xf32> to vector<8x32xf32>
    %133 = arith.truncf %132 : vector<8x32xf32> to vector<8x32xbf16>
    %134 = vector.extract_strided_slice %81 {offsets = [3, 0, 0], sizes = [1, 32, 32], strides = [1, 1, 1]} : vector<4x32x32xbf16> to vector<1x32x32xbf16>
    %135 = vector.shape_cast %134 : vector<1x32x32xbf16> to vector<32x32xbf16>
    %cst_44 = arith.constant dense<0.000000e+00> : vector<8x32xf32>
    %136 = tpu.matmul %133, %135, %cst_44 {dimension_numbers = #tpu.dot_dimension_numbers<[1], [0], [0], [1], [0, 0, 1, 1], [], []>} : vector<8x32xbf16>, vector<32x32xbf16>, vector<8x32xf32> -> vector<8x32xf32>
    %137 = vector.extract_strided_slice %82 {offsets = [3, 0], sizes = [1, 32], strides = [1, 1]} : vector<4x32xf32> to vector<1x32xf32>
    %138 = vector.shape_cast %137 : vector<1x32xf32> to vector<32xf32>
    %139 = vector.shape_cast %138 : vector<32xf32> to vector<1x32xf32>
    %140 = vector.broadcast %139 : vector<1x32xf32> to vector<8x32xf32>
    %141 = arith.addf %136, %140 : vector<8x32xf32>
    %142 = arith.addf %141, %79 : vector<8x32xf32>
    %143 = vector.extract_strided_slice %7 {offsets = [2, 0], sizes = [1, 32], strides = [1, 1]} : vector<6x32xf32> to vector<1x32xf32>
    %144 = vector.shape_cast %143 : vector<1x32xf32> to vector<32xf32>
    %145 = vector.extract_strided_slice %7 {offsets = [3, 0], sizes = [1, 32], strides = [1, 1]} : vector<6x32xf32> to vector<1x32xf32>
    %146 = vector.shape_cast %145 : vector<1x32xf32> to vector<32xf32>
    %cst_45 = arith.constant dense<0.000000e+00> : vector<8xf32>
    %147 = vector.multi_reduction <add>, %142, %cst_45 [1] : vector<8x32xf32> to vector<8xf32>
    %148 = vector.shape_cast %147 : vector<8xf32> to vector<8x1xf32>
    %cst_46 = arith.constant 3.200000e+01 : f32
    %149 = vector.broadcast %cst_46 : f32 to vector<8x1xf32>
    %150 = arith.divf %148, %149 : vector<8x1xf32>
    %151 = vector.broadcast %150 : vector<8x1xf32> to vector<8x32xf32>
    %152 = arith.subf %142, %151 : vector<8x32xf32>
    %153 = arith.mulf %152, %152 : vector<8x32xf32>
    %cst_47 = arith.constant dense<0.000000e+00> : vector<8xf32>
    %154 = vector.multi_reduction <add>, %153, %cst_47 [1] : vector<8x32xf32> to vector<8xf32>
    %155 = vector.shape_cast %154 : vector<8xf32> to vector<8x1xf32>
    %cst_48 = arith.constant 3.200000e+01 : f32
    %156 = vector.broadcast %cst_48 : f32 to vector<8x1xf32>
    %157 = arith.divf %155, %156 : vector<8x1xf32>
    %158 = vector.broadcast %150 : vector<8x1xf32> to vector<8x32xf32>
    %159 = arith.subf %142, %158 : vector<8x32xf32>
    %cst_49 = arith.constant 9.99999974E-6 : f32
    %160 = vector.broadcast %cst_49 : f32 to vector<8x1xf32>
    %161 = arith.addf %157, %160 : vector<8x1xf32>
    %162 = math.rsqrt %161 : vector<8x1xf32>
    %163 = vector.broadcast %162 : vector<8x1xf32> to vector<8x32xf32>
    %164 = arith.mulf %159, %163 : vector<8x32xf32>
    %165 = vector.shape_cast %144 : vector<32xf32> to vector<1x32xf32>
    %166 = vector.broadcast %165 : vector<1x32xf32> to vector<8x32xf32>
    %167 = arith.mulf %164, %166 : vector<8x32xf32>
    %168 = vector.shape_cast %146 : vector<32xf32> to vector<1x32xf32>
    %169 = vector.broadcast %168 : vector<1x32xf32> to vector<8x32xf32>
    %170 = arith.addf %167, %169 : vector<8x32xf32>
    %171 = arith.truncf %170 : vector<8x32xf32> to vector<8x32xbf16>
    %c0_50 = arith.constant 0 : index
    %c0_51 = arith.constant 0 : index
    %172 = vector.load %arg12[%c0_50, %c0_51] : memref<32x64xf32, #tpu.memory_space<vmem>>, vector<32x64xf32>
    %173 = arith.truncf %172 : vector<32x64xf32> to vector<32x64xbf16>
    %cst_52 = arith.constant dense<0.000000e+00> : vector<8x64xf32>
    %174 = tpu.matmul %171, %173, %cst_52 {dimension_numbers = #tpu.dot_dimension_numbers<[1], [0], [0], [1], [0, 0, 1, 1], [], []>} : vector<8x32xbf16>, vector<32x64xbf16>, vector<8x64xf32> -> vector<8x64xf32>
    %c0_53 = arith.constant 0 : index
    %c0_54 = arith.constant 0 : index
    %175 = vector.load %arg13[%c0_53, %c0_54] : memref<1x64xf32, #tpu.memory_space<vmem>>, vector<1x64xf32>
    %176 = vector.broadcast %175 : vector<1x64xf32> to vector<8x64xf32>
    %177 = arith.addf %174, %176 : vector<8x64xf32>
    %cst_55 = arith.constant 0.000000e+00 : f32
    %178 = vector.broadcast %cst_55 : f32 to vector<8x64xf32>
    %179 = arith.maximumf %177, %178 : vector<8x64xf32>
    %180 = arith.truncf %179 : vector<8x64xf32> to vector<8x64xbf16>
    %c0_56 = arith.constant 0 : index
    %c0_57 = arith.constant 0 : index
    %181 = vector.load %arg14[%c0_56, %c0_57] : memref<64x32xf32, #tpu.memory_space<vmem>>, vector<64x32xf32>
    %182 = arith.truncf %181 : vector<64x32xf32> to vector<64x32xbf16>
    %cst_58 = arith.constant dense<0.000000e+00> : vector<8x32xf32>
    %183 = tpu.matmul %180, %182, %cst_58 {dimension_numbers = #tpu.dot_dimension_numbers<[1], [0], [0], [1], [0, 0, 1, 1], [], []>} : vector<8x64xbf16>, vector<64x32xbf16>, vector<8x32xf32> -> vector<8x32xf32>
    %c0_59 = arith.constant 0 : index
    %c0_60 = arith.constant 0 : index
    %184 = vector.load %arg15[%c0_59, %c0_60] : memref<1x32xf32, #tpu.memory_space<vmem>>, vector<1x32xf32>
    %185 = vector.broadcast %184 : vector<1x32xf32> to vector<8x32xf32>
    %186 = arith.addf %183, %185 : vector<8x32xf32>
    %187 = arith.addf %186, %170 : vector<8x32xf32>
    %188 = vector.extract_strided_slice %7 {offsets = [4, 0], sizes = [1, 32], strides = [1, 1]} : vector<6x32xf32> to vector<1x32xf32>
    %189 = vector.shape_cast %188 : vector<1x32xf32> to vector<32xf32>
    %190 = vector.extract_strided_slice %7 {offsets = [5, 0], sizes = [1, 32], strides = [1, 1]} : vector<6x32xf32> to vector<1x32xf32>
    %191 = vector.shape_cast %190 : vector<1x32xf32> to vector<32xf32>
    %cst_61 = arith.constant dense<0.000000e+00> : vector<8xf32>
    %192 = vector.multi_reduction <add>, %187, %cst_61 [1] : vector<8x32xf32> to vector<8xf32>
    %193 = vector.shape_cast %192 : vector<8xf32> to vector<8x1xf32>
    %cst_62 = arith.constant 3.200000e+01 : f32
    %194 = vector.broadcast %cst_62 : f32 to vector<8x1xf32>
    %195 = arith.divf %193, %194 : vector<8x1xf32>
    %196 = vector.broadcast %195 : vector<8x1xf32> to vector<8x32xf32>
    %197 = arith.subf %187, %196 : vector<8x32xf32>
    %198 = arith.mulf %197, %197 : vector<8x32xf32>
    %cst_63 = arith.constant dense<0.000000e+00> : vector<8xf32>
    %199 = vector.multi_reduction <add>, %198, %cst_63 [1] : vector<8x32xf32> to vector<8xf32>
    %200 = vector.shape_cast %199 : vector<8xf32> to vector<8x1xf32>
    %cst_64 = arith.constant 3.200000e+01 : f32
    %201 = vector.broadcast %cst_64 : f32 to vector<8x1xf32>
    %202 = arith.divf %200, %201 : vector<8x1xf32>
    %203 = vector.broadcast %195 : vector<8x1xf32> to vector<8x32xf32>
    %204 = arith.subf %187, %203 : vector<8x32xf32>
    %cst_65 = arith.constant 9.99999974E-6 : f32
    %205 = vector.broadcast %cst_65 : f32 to vector<8x1xf32>
    %206 = arith.addf %202, %205 : vector<8x1xf32>
    %207 = math.rsqrt %206 : vector<8x1xf32>
    %208 = vector.broadcast %207 : vector<8x1xf32> to vector<8x32xf32>
    %209 = arith.mulf %204, %208 : vector<8x32xf32>
    %210 = vector.shape_cast %189 : vector<32xf32> to vector<1x32xf32>
    %211 = vector.broadcast %210 : vector<1x32xf32> to vector<8x32xf32>
    %212 = arith.mulf %209, %211 : vector<8x32xf32>
    %213 = vector.shape_cast %191 : vector<32xf32> to vector<1x32xf32>
    %214 = vector.broadcast %213 : vector<1x32xf32> to vector<8x32xf32>
    %215 = arith.addf %212, %214 : vector<8x32xf32>
    %c0_66 = arith.constant 0 : index
    %c0_67 = arith.constant 0 : index
    %c0_68 = arith.constant 0 : index
    %216 = vector.load %arg16[%c0_66, %c0_67, %c0_68] : memref<1x8x32xf32, #tpu.memory_space<vmem>>, vector<1x8x32xf32>
    %217 = vector.shape_cast %216 : vector<1x8x32xf32> to vector<8x32xf32>
    %218 = vector.shape_cast %215 : vector<8x32xf32> to vector<1x8x32xf32>
    tpu.vector_store %arg16[%c0_66, %c0_67, %c0_68], %218 {strides = array<i32>} : memref<1x8x32xf32, #tpu.memory_space<vmem>>, vector<1x8x32xf32>,
    return
  }
  func.func @transform_0(%arg0: i32) -> (i32, i32, i32) {
    %c0_i32 = arith.constant 0 : i32
    %c0_i32_0 = arith.constant 0 : i32
    %c0_i32_1 = arith.constant 0 : i32
    return %arg0, %c0_i32, %c0_i32_0 : i32, i32, i32
  }
  func.func @transform_1(%arg0: i32) -> (i32, i32, i32) {
    %c0_i32 = arith.constant 0 : i32
    %c0_i32_0 = arith.constant 0 : i32
    %c0_i32_1 = arith.constant 0 : i32
    return %arg0, %c0_i32, %c0_i32_0 : i32, i32, i32
  }
  func.func @transform_2(%arg0: i32) -> (i32, i32, i32) {
    %c0_i32 = arith.constant 0 : i32
    %c0_i32_0 = arith.constant 0 : i32
    %c0_i32_1 = arith.constant 0 : i32
    return %arg0, %c0_i32, %c0_i32_0 : i32, i32, i32
  }
  func.func @transform_3(%arg0: i32) -> (i32, i32) {
    %c0_i32 = arith.constant 0 : i32
    %c0_i32_0 = arith.constant 0 : i32
    %c0_i32_1 = arith.constant 0 : i32
    return %c0_i32, %c0_i32_0 : i32, i32
  }
  func.func @transform_4(%arg0: i32) -> (i32, i32) {
    %c0_i32 = arith.constant 0 : i32
    %c0_i32_0 = arith.constant 0 : i32
    %c0_i32_1 = arith.constant 0 : i32
    return %c0_i32, %c0_i32_0 : i32, i32
  }
  func.func @transform_5(%arg0: i32) -> (i32, i32) {
    %c0_i32 = arith.constant 0 : i32
    %c0_i32_0 = arith.constant 0 : i32
    %c0_i32_1 = arith.constant 0 : i32
    return %c0_i32, %c0_i32_0 : i32, i32
  }
  func.func @transform_6(%arg0: i32) -> (i32, i32) {
    %c0_i32 = arith.constant 0 : i32
    %c0_i32_0 = arith.constant 0 : i32
    %c0_i32_1 = arith.constant 0 : i32
    return %c0_i32, %c0_i32_0 : i32, i32
  }
  func.func @transform_7(%arg0: i32) -> (i32, i32) {
    %c0_i32 = arith.constant 0 : i32
    %c0_i32_0 = arith.constant 0 : i32
    %c0_i32_1 = arith.constant 0 : i32
    return %c0_i32, %c0_i32_0 : i32, i32
  }
  func.func @transform_8(%arg0: i32) -> (i32, i32, i32) {
    %c0_i32 = arith.constant 0 : i32
    %c0_i32_0 = arith.constant 0 : i32
    %c0_i32_1 = arith.constant 0 : i32
    %c0_i32_2 = arith.constant 0 : i32
    return %c0_i32, %c0_i32_0, %c0_i32_1 : i32, i32, i32
  }
  func.func @transform_9(%arg0: i32) -> (i32, i32) {
    %c0_i32 = arith.constant 0 : i32
    %c0_i32_0 = arith.constant 0 : i32
    %c0_i32_1 = arith.constant 0 : i32
    return %c0_i32, %c0_i32_0 : i32, i32
  }
  func.func @transform_10(%arg0: i32) -> (i32, i32) {
    %c0_i32 = arith.constant 0 : i32
    %c0_i32_0 = arith.constant 0 : i32
    %c0_i32_1 = arith.constant 0 : i32
    return %c0_i32, %c0_i32_0 : i32, i32
  }
  func.func @transform_11(%arg0: i32) -> (i32, i32) {
    %c0_i32 = arith.constant 0 : i32
    %c0_i32_0 = arith.constant 0 : i32
    %c0_i32_1 = arith.constant 0 : i32
    return %c0_i32, %c0_i32_0 : i32, i32
  }
  func.func @transform_12(%arg0: i32) -> (i32, i32) {
    %c0_i32 = arith.constant 0 : i32
    %c0_i32_0 = arith.constant 0 : i32
    %c0_i32_1 = arith.constant 0 : i32
    return %c0_i32, %c0_i32_0 : i32, i32
  }
  func.func @transform_13(%arg0: i32) -> (i32, i32) {
    %c0_i32 = arith.constant 0 : i32
    %c0_i32_0 = arith.constant 0 : i32
    %c0_i32_1 = arith.constant 0 : i32
    return %c0_i32, %c0_i32_0 : i32, i32
  }
  func.func @transform_14(%arg0: i32) -> (i32, i32) {
    %c0_i32 = arith.constant 0 : i32
    %c0_i32_0 = arith.constant 0 : i32
    %c0_i32_1 = arith.constant 0 : i32
    return %c0_i32, %c0_i32_0 : i32, i32
  }
  func.func @transform_15(%arg0: i32) -> (i32, i32, i32) {
    %c0_i32 = arith.constant 0 : i32
    %c0_i32_0 = arith.constant 0 : i32
    %c0_i32_1 = arith.constant 0 : i32
    return %arg0, %c0_i32, %c0_i32_0 : i32, i32, i32
  }
}

</mosaic_0001>

<llo_original>
// kernel: tpu_custom_call.1
$region0: #{tpu_custom_call.1}
  #allocation0 [shape = 'u32[]', space=smem, size = 0x4, offset = 0x4, fixed_abs, tag = 'smem constant byte address 0x4 - core index']
  #allocation1 [shape = 'u32[144,128]{1,0:T(1,128)}', space=vmem, size = 0x12000, scoped, tag = 'internal scratch']
  %s0 = inlined_call_operand.hbm [shape: f32[2,8,32], index: 0, kind: input, shape index: {}]
  %s1 = inlined_call_operand.hbm [shape: f32[2,8,32], index: 1, kind: input, shape index: {}]
  %s2 = inlined_call_operand.hbm [shape: f32[2,8,32], index: 2, kind: input, shape index: {}]
  %s3 = inlined_call_operand.hbm [shape: f32[8,8], index: 3, kind: input, shape index: {}]
  %s4 = inlined_call_operand.hbm [shape: f32[32,96], index: 4, kind: input, shape index: {}]
  %s5 = inlined_call_operand.hbm [shape: f32[1,96], index: 5, kind: input, shape index: {}]
  %s6 = inlined_call_operand.hbm [shape: f32[32,32], index: 6, kind: input, shape index: {}]
  %s7 = inlined_call_operand.hbm [shape: f32[1,32], index: 7, kind: input, shape index: {}]
  %s8 = inlined_call_operand.hbm [shape: f32[4,32,32], index: 8, kind: input, shape index: {}]
  %s9 = inlined_call_operand.hbm [shape: f32[4,32], index: 9, kind: input, shape index: {}]
  %s10 = inlined_call_operand.hbm [shape: f32[6,32], index: 10, kind: input, shape index: {}]
  %s11 = inlined_call_operand.hbm [shape: f32[32,64], index: 11, kind: input, shape index: {}]
  %s12 = inlined_call_operand.hbm [shape: f32[1,64], index: 12, kind: input, shape index: {}]
  %s13 = inlined_call_operand.hbm [shape: f32[64,32], index: 13, kind: input, shape index: {}]
  %s14 = inlined_call_operand.hbm [shape: f32[1,32], index: 14, kind: input, shape index: {}]
  %s15 = inlined_call_operand.hbm [shape: f32[2,8,32], index: 15, kind: output, shape index: {}]
  %s16 = sld [smem:[#allocation0]]
  $region153: #{tpu_custom_call.1} parent=0
    _
  %s18 = ssub.s32 1, %s16
  %s19 = scalar_select 0, %s18, %s16
  $region1: #{tpu_custom_call.1} parent=0
    #allocation2 [shape = 'u8[8192]{0}', space=vmem, size = 0x2000, scoped, tag = 'input window, operand 0']
    #allocation3 [shape = 's32[2]{0}', space=sflag, size = 0x8, scoped, tag = 'scoped memory for tpu_custom_call.1']
    #allocation4 [shape = 's32[2]{0}', space=sflag, size = 0x8, scoped, tag = 'scoped memory for tpu_custom_call.1']
    #allocation5 [shape = 'u8[8192]{0}', space=vmem, size = 0x2000, scoped, tag = 'input window, operand 1']
    #allocation6 [shape = 's32[2]{0}', space=sflag, size = 0x8, scoped, tag = 'scoped memory for tpu_custom_call.1']
    #allocation7 [shape = 'u8[8192]{0}', space=vmem, size = 0x2000, scoped, tag = 'input window, operand 2']
    #allocation8 [shape = 'u8[4096]{0}', space=vmem, size = 0x1000, scoped, tag = 'input window, operand 3, single buffered']
    #allocation9 [shape = 's32[1]{0}', space=sflag, size = 0x4, scoped, tag = 'scoped memory for tpu_custom_call.1']
    #allocation10 [shape = 'u8[16384]{0}', space=vmem, size = 0x4000, scoped, tag = 'input window, operand 4, single buffered']
    #allocation11 [shape = 'u8[512]{0}', space=vmem, size = 0x400, scoped, tag = 'input window, operand 5, single buffered']
    #allocation12 [shape = 's32[1]{0}', space=sflag, size = 0x4, scoped, tag = 'scoped memory for tpu_custom_call.1']
    #allocation13 [shape = 'u8[16384]{0}', space=vmem, size = 0x4000, scoped, tag = 'input window, operand 6, single buffered']
    #allocation14 [shape = 'u8[512]{0}', space=vmem, size = 0x400, scoped, tag = 'input window, operand 7, single buffered']
    #allocation15 [shape = 's32[1]{0}', space=sflag, size = 0x4, scoped, tag = 'scoped memory for tpu_custom_call.1']
    #allocation16 [shape = 'u8[65536]{0}', space=vmem, size = 0x10000, scoped, tag = 'input window, operand 8, single buffered']
    #allocation17 [shape = 'u8[2048]{0}', space=vmem, size = 0x800, scoped, tag = 'input window, operand 9, single buffered']
    #allocation18 [shape = 's32[1]{0}', space=sflag, size = 0x4, scoped, tag = 'scoped memory for tpu_custom_call.1']
    #allocation19 [shape = 'u8[4096]{0}', space=vmem, size = 0x1000, scoped, tag = 'input window, operand 10, single buffered']
    #allocation20 [shape = 'u8[16384]{0}', space=vmem, size = 0x4000, scoped, tag = 'input window, operand 11, single buffered']
    #allocation21 [shape = 's32[1]{0}', space=sflag, size = 0x4, scoped, tag = 'scoped memory for tpu_custom_call.1']
    #allocation22 [shape = 'u8[512]{0}', space=vmem, size = 0x400, scoped, tag = 'input window, operand 12, single buffered']
    #allocation23 [shape = 'u8[32768]{0}', space=vmem, size = 0x8000, scoped, tag = 'input window, operand 13, single buffered']
    #allocation24 [shape = 's32[1]{0}', space=sflag, size = 0x4, scoped, tag = 'scoped memory for tpu_custom_call.1']
    #allocation25 [shape = 'u8[512]{0}', space=vmem, size = 0x400, scoped, tag = 'input window, operand 14, single buffered']
    #allocation26 [shape = 'u8[8192]{0}', space=vmem, size = 0x2000, scoped, tag = 'output window, operand 0']
    %20 = vsyncpa [#allocation3], 0
    %s21 = scalar_lea.sflag [#allocation3], 1
    %22 = vsyncpa %s21, 0
    %23 = vsyncpa [#allocation6], 0
    %s24 = scalar_lea.sflag [#allocation6], 1
    %25 = vsyncpa %s24, 0
    %26 = vsyncpa [#allocation9], 0
    %27 = vsyncpa [#allocation12], 0
    %28 = vsyncpa [#allocation15], 0
    %29 = vsyncpa [#allocation18], 0
    %30 = vsyncpa [#allocation21], 0
    %31 = vsyncpa [#allocation24], 0
    %32 = vsyncpa [#allocation4], 0
    %s33 = scalar_lea.sflag [#allocation4], 1
    %34 = vsyncpa %s33, 0
    loop: start=0, step=1, limit=4
    $region2: #{tpu_custom_call.1} parent=1 // loop_pre_header
      _
    $region3: #{tpu_custom_call.1} parent=1 // loop_header
      %s36 = sphi 0, %s40
      %p37 = scmp.ge.s32.totalorder %s36, 4
      %s46 = sphi 0, %s48
      %s49 = sphi 0, %s46
      %s50 = sphi 0, %s49
      %s66 = sphi 0, %s50
      %s72 = sphi 0, %s74
      %s75 = sphi 0, %s72
      %s76 = sphi 0, %s75
      %s92 = sphi 0, %s76
      %s98 = sphi 0, %s100
      %s101 = sphi 0, %s98
      %s102 = sphi 0, %s101
      %s118 = sphi 0, %s102
      %s122 = sphi 0, %s122
      %s124 = sphi 0, %s122
      %s125 = sphi 0, %s124
      %s139 = sphi 0, %s125
      %s143 = sphi 0, %s143
      %s145 = sphi 0, %s143
      %s146 = sphi 0, %s145
      %s160 = sphi 0, %s146
      %s164 = sphi 0, %s164
      %s166 = sphi 0, %s164
      %s167 = sphi 0, %s166
      %s181 = sphi 0, %s167
      %s185 = sphi 0, %s185
      %s187 = sphi 0, %s185
      %s188 = sphi 0, %s187
      %s202 = sphi 0, %s188
      %s206 = sphi 0, %s206
      %s208 = sphi 0, %s206
      %s209 = sphi 0, %s208
      %s223 = sphi 0, %s209
      %s227 = sphi 0, %s227
      %s229 = sphi 0, %s227
      %s230 = sphi 0, %s229
      %s244 = sphi 0, %s230
      %s248 = sphi 0, %s248
      %s250 = sphi 0, %s248
      %s251 = sphi 0, %s250
      %s265 = sphi 0, %s251
      %s269 = sphi 0, %s269
      %s271 = sphi 0, %s269
      %s272 = sphi 0, %s271
      %s286 = sphi 0, %s272
      %s290 = sphi 0, %s290
      %s292 = sphi 0, %s290
      %s293 = sphi 0, %s292
      %s307 = sphi 0, %s293
      %s311 = sphi 0, %s311
      %s313 = sphi 0, %s311
      %s314 = sphi 0, %s313
      %s328 = sphi 0, %s314
      %s332 = sphi 0, %s332
      %s334 = sphi 0, %s332
      %s335 = sphi 0, %s334
      %s349 = sphi 0, %s335
      %s353 = sphi 0, %s353
      %s355 = sphi 0, %s353
      %s356 = sphi 0, %s355
      %s370 = sphi 0, %s356
      %s376 = sphi 0, %s378
      %s379 = sphi 0, %s376
      %s380 = sphi 0, %s379
      %s396 = sphi 0, %s380
    $region4: #{tpu_custom_call.1} parent=1 // loop_header_branch
      %39 = sbr.rel (%p37) target = $region8
    $region5: #{tpu_custom_call.1} parent=1 // loop_body
      %s41 = ssub.s32 %s36, 1
      %s42 = ssub.s32 %s36, 2
      %s43 = sadd.s32 %s36, 1
      %s44 = ssub.s32 %s36, %s43
      %p45 = scmp.eq.s32.totalorder %s44, 0
      %s47 = sadd.s32 %s46, 1
      %s48 = scalar_select %p45, %s46, %s47
      %p51 = pneg %p45
      %p52 = scmp.eq.s32.totalorder %s36, 1
      %p53 = por %p51, %p52
      %p54 = scmp.ne.s32.totalorder %s46, %s49
      %p55 = scmp.eq.s32.totalorder %s36, 0
      %p56 = por %p54, %p55
      %p57 = scmp.ne.s32.totalorder %s46, %s49
      %p58 = scmp.eq.s32.totalorder %s41, 1
      %p59 = por %p57, %p58
      %p60 = scmp.ne.s32.totalorder %s49, %s50
      %p61 = scmp.eq.s32.totalorder %s41, 0
      %p62 = por %p60, %p61
      %p63 = scmp.ne.s32.totalorder %s49, %s50
      %p64 = scmp.eq.s32.totalorder %s42, 1
      %p65 = por %p63, %p64
      %p67 = scmp.ne.s32.totalorder %s50, %s66
      %p68 = scmp.eq.s32.totalorder %s42, 0
      %p69 = por %p67, %p68
      %s70 = ssub.s32 %s36, %s43
      %p71 = scmp.eq.s32.totalorder %s70, 0
      %s73 = sadd.s32 %s72, 1
      %s74 = scalar_select %p71, %s72, %s73
      %p77 = pneg %p71
      %p78 = scmp.eq.s32.totalorder %s36, 1
      %p79 = por %p77, %p78
      %p80 = scmp.ne.s32.totalorder %s72, %s75
      %p81 = scmp.eq.s32.totalorder %s36, 0
      %p82 = por %p80, %p81
      %p83 = scmp.ne.s32.totalorder %s72, %s75
      %p84 = scmp.eq.s32.totalorder %s41, 1
      %p85 = por %p83, %p84
      %p86 = scmp.ne.s32.totalorder %s75, %s76
      %p87 = scmp.eq.s32.totalorder %s41, 0
      %p88 = por %p86, %p87
      %p89 = scmp.ne.s32.totalorder %s75, %s76
      %p90 = scmp.eq.s32.totalorder %s42, 1
      %p91 = por %p89, %p90
      %p93 = scmp.ne.s32.totalorder %s76, %s92
      %p94 = scmp.eq.s32.totalorder %s42, 0
      %p95 = por %p93, %p94
      %s96 = ssub.s32 %s36, %s43
      %p97 = scmp.eq.s32.totalorder %s96, 0
      %s99 = sadd.s32 %s98, 1
      %s100 = scalar_select %p97, %s98, %s99
      %p103 = pneg %p97
      %p104 = scmp.eq.s32.totalorder %s36, 1
      %p105 = por %p103, %p104
      %p106 = scmp.ne.s32.totalorder %s98, %s101
      %p107 = scmp.eq.s32.totalorder %s36, 0
      %p108 = por %p106, %p107
      %p109 = scmp.ne.s32.totalorder %s98, %s101
      %p110 = scmp.eq.s32.totalorder %s41, 1
      %p111 = por %p109, %p110
      %p112 = scmp.ne.s32.totalorder %s101, %s102
      %p113 = scmp.eq.s32.totalorder %s41, 0
      %p114 = por %p112, %p113
      %p115 = scmp.ne.s32.totalorder %s101, %s102
      %p116 = scmp.eq.s32.totalorder %s42, 1
      %p117 = por %p115, %p116
      %p119 = scmp.ne.s32.totalorder %s102, %s118
      %p120 = scmp.eq.s32.totalorder %s42, 0
      %p121 = por %p119, %p120
      %s123 = sadd.s32 %s122, 1
      %p126 = scmp.eq.s32.totalorder %s36, 1
      %p127 = scmp.ne.s32.totalorder %s122, %s124
      %p128 = scmp.eq.s32.totalorder %s36, 0
      %p129 = por %p127, %p128
      %p130 = scmp.ne.s32.totalorder %s122, %s124
      %p131 = scmp.eq.s32.totalorder %s41, 1
      %p132 = por %p130, %p131
      %p133 = scmp.ne.s32.totalorder %s124, %s125
      %p134 = scmp.eq.s32.totalorder %s41, 0
      %p135 = por %p133, %p134
      %p136 = scmp.ne.s32.totalorder %s124, %s125
      %p137 = scmp.eq.s32.totalorder %s42, 1
      %p138 = por %p136, %p137
      %p140 = scmp.ne.s32.totalorder %s125, %s139
      %p141 = scmp.eq.s32.totalorder %s42, 0
      %p142 = por %p140, %p141
      %s144 = sadd.s32 %s143, 1
      %p147 = scmp.eq.s32.totalorder %s36, 1
      %p148 = scmp.ne.s32.totalorder %s143, %s145
      %p149 = scmp.eq.s32.totalorder %s36, 0
      %p150 = por %p148, %p149
      %p151 = scmp.ne.s32.totalorder %s143, %s145
      %p152 = scmp.eq.s32.totalorder %s41, 1
      %p153 = por %p151, %p152
      %p154 = scmp.ne.s32.totalorder %s145, %s146
      %p155 = scmp.eq.s32.totalorder %s41, 0
      %p156 = por %p154, %p155
      %p157 = scmp.ne.s32.totalorder %s145, %s146
      %p158 = scmp.eq.s32.totalorder %s42, 1
      %p159 = por %p157, %p158
      %p161 = scmp.ne.s32.totalorder %s146, %s160
      %p162 = scmp.eq.s32.totalorder %s42, 0
      %p163 = por %p161, %p162
      %s165 = sadd.s32 %s164, 1
      %p168 = scmp.eq.s32.totalorder %s36, 1
      %p169 = scmp.ne.s32.totalorder %s164, %s166
      %p170 = scmp.eq.s32.totalorder %s36, 0
      %p171 = por %p169, %p170
      %p172 = scmp.ne.s32.totalorder %s164, %s166
      %p173 = scmp.eq.s32.totalorder %s41, 1
      %p174 = por %p172, %p173
      %p175 = scmp.ne.s32.totalorder %s166, %s167
      %p176 = scmp.eq.s32.totalorder %s41, 0
      %p177 = por %p175, %p176
      %p178 = scmp.ne.s32.totalorder %s166, %s167
      %p179 = scmp.eq.s32.totalorder %s42, 1
      %p180 = por %p178, %p179
      %p182 = scmp.ne.s32.totalorder %s167, %s181
      %p183 = scmp.eq.s32.totalorder %s42, 0
      %p184 = por %p182, %p183
      %s186 = sadd.s32 %s185, 1
      %p189 = scmp.eq.s32.totalorder %s36, 1
      %p190 = scmp.ne.s32.totalorder %s185, %s187
      %p191 = scmp.eq.s32.totalorder %s36, 0
      %p192 = por %p190, %p191
      %p193 = scmp.ne.s32.totalorder %s185, %s187
      %p194 = scmp.eq.s32.totalorder %s41, 1
      %p195 = por %p193, %p194
      %p196 = scmp.ne.s32.totalorder %s187, %s188
      %p197 = scmp.eq.s32.totalorder %s41, 0
      %p198 = por %p196, %p197
      %p199 = scmp.ne.s32.totalorder %s187, %s188
      %p200 = scmp.eq.s32.totalorder %s42, 1
      %p201 = por %p199, %p200
      %p203 = scmp.ne.s32.totalorder %s188, %s202
      %p204 = scmp.eq.s32.totalorder %s42, 0
      %p205 = por %p203, %p204
      %s207 = sadd.s32 %s206, 1
      %p210 = scmp.eq.s32.totalorder %s36, 1
      %p211 = scmp.ne.s32.totalorder %s206, %s208
      %p212 = scmp.eq.s32.totalorder %s36, 0
      %p213 = por %p211, %p212
      %p214 = scmp.ne.s32.totalorder %s206, %s208
      %p215 = scmp.eq.s32.totalorder %s41, 1
      %p216 = por %p214, %p215
      %p217 = scmp.ne.s32.totalorder %s208, %s209
      %p218 = scmp.eq.s32.totalorder %s41, 0
      %p219 = por %p217, %p218
      %p220 = scmp.ne.s32.totalorder %s208, %s209
      %p221 = scmp.eq.s32.totalorder %s42, 1
      %p222 = por %p220, %p221
      %p224 = scmp.ne.s32.totalorder %s209, %s223
      %p225 = scmp.eq.s32.totalorder %s42, 0
      %p226 = por %p224, %p225
      %s228 = sadd.s32 %s227, 1
      %p231 = scmp.eq.s32.totalorder %s36, 1
      %p232 = scmp.ne.s32.totalorder %s227, %s229
      %p233 = scmp.eq.s32.totalorder %s36, 0
      %p234 = por %p232, %p233
      %p235 = scmp.ne.s32.totalorder %s227, %s229
      %p236 = scmp.eq.s32.totalorder %s41, 1
      %p237 = por %p235, %p236
      %p238 = scmp.ne.s32.totalorder %s229, %s230
      %p239 = scmp.eq.s32.totalorder %s41, 0
      %p240 = por %p238, %p239
      %p241 = scmp.ne.s32.totalorder %s229, %s230
      %p242 = scmp.eq.s32.totalorder %s42, 1
      %p243 = por %p241, %p242
      %p245 = scmp.ne.s32.totalorder %s230, %s244
      %p246 = scmp.eq.s32.totalorder %s42, 0
      %p247 = por %p245, %p246
      %s249 = sadd.s32 %s248, 1
      %p252 = scmp.eq.s32.totalorder %s36, 1
      %p253 = scmp.ne.s32.totalorder %s248, %s250
      %p254 = scmp.eq.s32.totalorder %s36, 0
      %p255 = por %p253, %p254
      %p256 = scmp.ne.s32.totalorder %s248, %s250
      %p257 = scmp.eq.s32.totalorder %s41, 1
      %p258 = por %p256, %p257
      %p259 = scmp.ne.s32.totalorder %s250, %s251
      %p260 = scmp.eq.s32.totalorder %s41, 0
      %p261 = por %p259, %p260
      %p262 = scmp.ne.s32.totalorder %s250, %s251
      %p263 = scmp.eq.s32.totalorder %s42, 1
      %p264 = por %p262, %p263
      %p266 = scmp.ne.s32.totalorder %s251, %s265
      %p267 = scmp.eq.s32.totalorder %s42, 0
      %p268 = por %p266, %p267
      %s270 = sadd.s32 %s269, 1
      %p273 = scmp.eq.s32.totalorder %s36, 1
      %p274 = scmp.ne.s32.totalorder %s269, %s271
      %p275 = scmp.eq.s32.totalorder %s36, 0
      %p276 = por %p274, %p275
      %p277 = scmp.ne.s32.totalorder %s269, %s271
      %p278 = scmp.eq.s32.totalorder %s41, 1
      %p279 = por %p277, %p278
      %p280 = scmp.ne.s32.totalorder %s271, %s272
      %p281 = scmp.eq.s32.totalorder %s41, 0
      %p282 = por %p280, %p281
      %p283 = scmp.ne.s32.totalorder %s271, %s272
      %p284 = scmp.eq.s32.totalorder %s42, 1
      %p285 = por %p283, %p284
      %p287 = scmp.ne.s32.totalorder %s272, %s286
      %p288 = scmp.eq.s32.totalorder %s42, 0
      %p289 = por %p287, %p288
      %s291 = sadd.s32 %s290, 1
      %p294 = scmp.eq.s32.totalorder %s36, 1
      %p295 = scmp.ne.s32.totalorder %s290, %s292
      %p296 = scmp.eq.s32.totalorder %s36, 0
      %p297 = por %p295, %p296
      %p298 = scmp.ne.s32.totalorder %s290, %s292
      %p299 = scmp.eq.s32.totalorder %s41, 1
      %p300 = por %p298, %p299
      %p301 = scmp.ne.s32.totalorder %s292, %s293
      %p302 = scmp.eq.s32.totalorder %s41, 0
      %p303 = por %p301, %p302
      %p304 = scmp.ne.s32.totalorder %s292, %s293
      %p305 = scmp.eq.s32.totalorder %s42, 1
      %p306 = por %p304, %p305
      %p308 = scmp.ne.s32.totalorder %s293, %s307
      %p309 = scmp.eq.s32.totalorder %s42, 0
      %p310 = por %p308, %p309
      %s312 = sadd.s32 %s311, 1
      %p315 = scmp.eq.s32.totalorder %s36, 1
      %p316 = scmp.ne.s32.totalorder %s311, %s313
      %p317 = scmp.eq.s32.totalorder %s36, 0
      %p318 = por %p316, %p317
      %p319 = scmp.ne.s32.totalorder %s311, %s313
      %p320 = scmp.eq.s32.totalorder %s41, 1
      %p321 = por %p319, %p320
      %p322 = scmp.ne.s32.totalorder %s313, %s314
      %p323 = scmp.eq.s32.totalorder %s41, 0
      %p324 = por %p322, %p323
      %p325 = scmp.ne.s32.totalorder %s313, %s314
      %p326 = scmp.eq.s32.totalorder %s42, 1
      %p327 = por %p325, %p326
      %p329 = scmp.ne.s32.totalorder %s314, %s328
      %p330 = scmp.eq.s32.totalorder %s42, 0
      %p331 = por %p329, %p330
      %s333 = sadd.s32 %s332, 1
      %p336 = scmp.eq.s32.totalorder %s36, 1
      %p337 = scmp.ne.s32.totalorder %s332, %s334
      %p338 = scmp.eq.s32.totalorder %s36, 0
      %p339 = por %p337, %p338
      %p340 = scmp.ne.s32.totalorder %s332, %s334
      %p341 = scmp.eq.s32.totalorder %s41, 1
      %p342 = por %p340, %p341
      %p343 = scmp.ne.s32.totalorder %s334, %s335
      %p344 = scmp.eq.s32.totalorder %s41, 0
      %p345 = por %p343, %p344
      %p346 = scmp.ne.s32.totalorder %s334, %s335
      %p347 = scmp.eq.s32.totalorder %s42, 1
      %p348 = por %p346, %p347
      %p350 = scmp.ne.s32.totalorder %s335, %s349
      %p351 = scmp.eq.s32.totalorder %s42, 0
      %p352 = por %p350, %p351
      %s354 = sadd.s32 %s353, 1
      %p357 = scmp.eq.s32.totalorder %s36, 1
      %p358 = scmp.ne.s32.totalorder %s353, %s355
      %p359 = scmp.eq.s32.totalorder %s36, 0
      %p360 = por %p358, %p359
      %p361 = scmp.ne.s32.totalorder %s353, %s355
      %p362 = scmp.eq.s32.totalorder %s41, 1
      %p363 = por %p361, %p362
      %p364 = scmp.ne.s32.totalorder %s355, %s356
      %p365 = scmp.eq.s32.totalorder %s41, 0
      %p366 = por %p364, %p365
      %p367 = scmp.ne.s32.totalorder %s355, %s356
      %p368 = scmp.eq.s32.totalorder %s42, 1
      %p369 = por %p367, %p368
      %p371 = scmp.ne.s32.totalorder %s356, %s370
      %p372 = scmp.eq.s32.totalorder %s42, 0
      %p373 = por %p371, %p372
      %s374 = ssub.s32 %s36, %s43
      %p375 = scmp.eq.s32.totalorder %s374, 0
      %s377 = sadd.s32 %s376, 1
      %s378 = scalar_select %p375, %s376, %s377
      %p381 = pneg %p375
      %p382 = scmp.eq.s32.totalorder %s36, 1
      %p383 = por %p381, %p382
      %p384 = scmp.ne.s32.totalorder %s376, %s379
      %p385 = scmp.eq.s32.totalorder %s36, 0
      %p386 = por %p384, %p385
      %p387 = scmp.ne.s32.totalorder %s376, %s379
      %p388 = scmp.eq.s32.totalorder %s41, 1
      %p389 = por %p387, %p388
      %p390 = scmp.ne.s32.totalorder %s379, %s380
      %p391 = scmp.eq.s32.totalorder %s41, 0
      %p392 = por %p390, %p391
      %p393 = scmp.ne.s32.totalorder %s379, %s380
      %p394 = scmp.eq.s32.totalorder %s42, 1
      %p395 = por %p393, %p394
      %p397 = scmp.ne.s32.totalorder %s380, %s396
      %p398 = scmp.eq.s32.totalorder %s42, 0
      %p399 = por %p397, %p398
      %p400 = scmp.le.s32.totalorder 1, %s36
      %p401 = scmp.lt.s32.totalorder %s36, 3
      %p402 = pnand %p400, %p401
      %p403 = pneg %p402
      // Predicated region
      $region9: #{tpu_custom_call.1} parent=5 // pred_check
        _
      $region10: #{tpu_custom_call.1} parent=5 // pred_check_branch
        %405 = sbr.rel (%p402) target = $region12
      $region11: #{tpu_custom_call.1} parent=5 // pred_region
        %s406 = ssub.s32 %s36, 1
        // Predicated region
        $region13: #{tpu_custom_call.1} parent=11 // pred_check
          %p407 = pneg %p135
        $region14: #{tpu_custom_call.1} parent=11 // pred_check_branch
          %409 = sbr.rel (%p407) target = $region16
        $region15: #{tpu_custom_call.1} parent=11 // pred_region
          %s411 = ssub.s32 128, 128
          %412 = vsyncadd [#allocation9], %s411
          %s414 = sshll.u32 [#allocation8], 4
          %s415 = int_to_ptr.vmem [resolvable:$true] %s414
          %417 = dma.hbm_to_vmem [thread:$0]  %s3, 128, %s415, [#allocation9]
        $region16: #{tpu_custom_call.1} parent=11 // pred_fallthru
          _
        // Predicated region
        $region17: #{tpu_custom_call.1} parent=11 // pred_check
          %p418 = pneg %p156
        $region18: #{tpu_custom_call.1} parent=11 // pred_check_branch
          %420 = sbr.rel (%p418) target = $region20
        $region19: #{tpu_custom_call.1} parent=11 // pred_region
          %s422 = ssub.s32 512, 512
          %423 = vsyncadd [#allocation9], %s422
          %s424 = sshll.u32 [#allocation10], 4
          %s425 = int_to_ptr.vmem [resolvable:$true] %s424
          %430 = dma.hbm_to_vmem [thread:$0]  %s4, 512, %s425, [#allocation9], 128, 128, 8
        $region20: #{tpu_custom_call.1} parent=11 // pred_fallthru
          _
        // Predicated region
        $region21: #{tpu_custom_call.1} parent=11 // pred_check
          %p431 = pneg %p177
        $region22: #{tpu_custom_call.1} parent=11 // pred_check_branch
          %433 = sbr.rel (%p431) target = $region24
        $region23: #{tpu_custom_call.1} parent=11 // pred_region
          %s435 = ssub.s32 16, 16
          %436 = vsyncadd [#allocation12], %s435
          %s438 = sshll.u32 [#allocation11], 4
          %s439 = int_to_ptr.vmem [resolvable:$true] %s438
          %441 = dma.hbm_to_vmem [thread:$0]  %s5, 16, %s439, [#allocation12]
        $region24: #{tpu_custom_call.1} parent=11 // pred_fallthru
          _
        // Predicated region
        $region25: #{tpu_custom_call.1} parent=11 // pred_check
          %p442 = pneg %p198
        $region26: #{tpu_custom_call.1} parent=11 // pred_check_branch
          %444 = sbr.rel (%p442) target = $region28
        $region27: #{tpu_custom_call.1} parent=11 // pred_region
          %s446 = ssub.s32 512, 512
          %447 = vsyncadd [#allocation12], %s446
          %s448 = sshll.u32 [#allocation13], 4
          %s449 = int_to_ptr.vmem [resolvable:$true] %s448
          %454 = dma.hbm_to_vmem [thread:$0]  %s6, 512, %s449, [#allocation12], 128, 128, 8
        $region28: #{tpu_custom_call.1} parent=11 // pred_fallthru
          _
        // Predicated region
        $region29: #{tpu_custom_call.1} parent=11 // pred_check
          %p455 = pneg %p219
        $region30: #{tpu_custom_call.1} parent=11 // pred_check_branch
          %457 = sbr.rel (%p455) target = $region32
        $region31: #{tpu_custom_call.1} parent=11 // pred_region
          %s459 = ssub.s32 16, 16
          %460 = vsyncadd [#allocation15], %s459
          %s462 = sshll.u32 [#allocation14], 4
          %s463 = int_to_ptr.vmem [resolvable:$true] %s462
          %465 = dma.hbm_to_vmem [thread:$0]  %s7, 16, %s463, [#allocation15]
        $region32: #{tpu_custom_call.1} parent=11 // pred_fallthru
          _
        // Predicated region
        $region33: #{tpu_custom_call.1} parent=11 // pred_check
          %p466 = pneg %p240
        $region34: #{tpu_custom_call.1} parent=11 // pred_check_branch
          %468 = sbr.rel (%p466) target = $region36
        $region35: #{tpu_custom_call.1} parent=11 // pred_region
          %s470 = ssub.s32 2048, 2048
          %471 = vsyncadd [#allocation15], %s470
          %s472 = sshll.u32 [#allocation16], 4
          %s473 = int_to_ptr.vmem [resolvable:$true] %s472
          %478 = dma.hbm_to_vmem [thread:$0]  %s8, 2048, %s473, [#allocation15], 128, 128, 8
        $region36: #{tpu_custom_call.1} parent=11 // pred_fallthru
          _
        // Predicated region
        $region37: #{tpu_custom_call.1} parent=11 // pred_check
          %p479 = pneg %p261
        $region38: #{tpu_custom_call.1} parent=11 // pred_check_branch
          %481 = sbr.rel (%p479) target = $region40
        $region39: #{tpu_custom_call.1} parent=11 // pred_region
          %s483 = ssub.s32 64, 64
          %484 = vsyncadd [#allocation18], %s483
          %s486 = sshll.u32 [#allocation17], 4
          %s487 = int_to_ptr.vmem [resolvable:$true] %s486
          %489 = dma.hbm_to_vmem [thread:$0]  %s9, 64, %s487, [#allocation18]
        $region40: #{tpu_custom_call.1} parent=11 // pred_fallthru
          _
        // Predicated region
        $region41: #{tpu_custom_call.1} parent=11 // pred_check
          %p490 = pneg %p282
        $region42: #{tpu_custom_call.1} parent=11 // pred_check_branch
          %492 = sbr.rel (%p490) target = $region44
        $region43: #{tpu_custom_call.1} parent=11 // pred_region
          %s494 = ssub.s32 128, 128
          %495 = vsyncadd [#allocation18], %s494
          %s497 = sshll.u32 [#allocation19], 4
          %s498 = int_to_ptr.vmem [resolvable:$true] %s497
          %500 = dma.hbm_to_vmem [thread:$0]  %s10, 128, %s498, [#allocation18]
        $region44: #{tpu_custom_call.1} parent=11 // pred_fallthru
          _
        // Predicated region
        $region45: #{tpu_custom_call.1} parent=11 // pred_check
          %p501 = pneg %p303
        $region46: #{tpu_custom_call.1} parent=11 // pred_check_branch
          %503 = sbr.rel (%p501) target = $region48
        $region47: #{tpu_custom_call.1} parent=11 // pred_region
          %s505 = ssub.s32 512, 512
          %506 = vsyncadd [#allocation21], %s505
          %s507 = sshll.u32 [#allocation20], 4
          %s508 = int_to_ptr.vmem [resolvable:$true] %s507
          %513 = dma.hbm_to_vmem [thread:$0]  %s11, 512, %s508, [#allocation21], 128, 128, 8
        $region48: #{tpu_custom_call.1} parent=11 // pred_fallthru
          _
        // Predicated region
        $region49: #{tpu_custom_call.1} parent=11 // pred_check
          %p514 = pneg %p324
        $region50: #{tpu_custom_call.1} parent=11 // pred_check_branch
          %516 = sbr.rel (%p514) target = $region52
        $region51: #{tpu_custom_call.1} parent=11 // pred_region
          %s518 = ssub.s32 16, 16
          %519 = vsyncadd [#allocation21], %s518
          %s521 = sshll.u32 [#allocation22], 4
          %s522 = int_to_ptr.vmem [resolvable:$true] %s521
          %524 = dma.hbm_to_vmem [thread:$0]  %s12, 16, %s522, [#allocation21]
        $region52: #{tpu_custom_call.1} parent=11 // pred_fallthru
          _
        // Predicated region
        $region53: #{tpu_custom_call.1} parent=11 // pred_check
          %p525 = pneg %p345
        $region54: #{tpu_custom_call.1} parent=11 // pred_check_branch
          %527 = sbr.rel (%p525) target = $region56
        $region55: #{tpu_custom_call.1} parent=11 // pred_region
          %s529 = ssub.s32 1024, 1024
          %530 = vsyncadd [#allocation24], %s529
          %s531 = sshll.u32 [#allocation23], 4
          %s532 = int_to_ptr.vmem [resolvable:$true] %s531
          %537 = dma.hbm_to_vmem [thread:$0]  %s13, 1024, %s532, [#allocation24], 128, 128, 8
        $region56: #{tpu_custom_call.1} parent=11 // pred_fallthru
          _
        // Predicated region
        $region57: #{tpu_custom_call.1} parent=11 // pred_check
          %p538 = pneg %p366
        $region58: #{tpu_custom_call.1} parent=11 // pred_check_branch
          %540 = sbr.rel (%p538) target = $region60
        $region59: #{tpu_custom_call.1} parent=11 // pred_region
          %s542 = ssub.s32 16, 16
          %543 = vsyncadd [#allocation24], %s542
          %s545 = sshll.u32 [#allocation25], 4
          %s546 = int_to_ptr.vmem [resolvable:$true] %s545
          %548 = dma.hbm_to_vmem [thread:$0]  %s14, 16, %s546, [#allocation24]
        $region60: #{tpu_custom_call.1} parent=11 // pred_fallthru
          _
      $region12: #{tpu_custom_call.1} parent=5 // pred_fallthru
        _
      %p549 = scmp.lt.s32.totalorder %s36, 2
      // Predicated region
      $region61: #{tpu_custom_call.1} parent=5 // pred_check
        %p550 = pneg %p549
      $region62: #{tpu_custom_call.1} parent=5 // pred_check_branch
        %552 = sbr.rel (%p550) target = $region64
      $region63: #{tpu_custom_call.1} parent=5 // pred_region
        // Predicated region
        $region65: #{tpu_custom_call.1} parent=63 // pred_check
          %p553 = pneg %p56
        $region66: #{tpu_custom_call.1} parent=63 // pred_check_branch
          %555 = sbr.rel (%p553) target = $region68
        $region67: #{tpu_custom_call.1} parent=63 // pred_region
          %s556 = sand.u32 %s46, 1
          %s557 = scalar_lea.sflag [#allocation3], %s556
          %s558 = sand.u32 %s46, 1
          %s559 = smul.addr %s558, 8
          %s560 = scalar_lea.vmem [#allocation2], %s559
          %s562 = ssub.s32 128, 128
          %563 = vsyncadd %s557, %s562
          %s564 = smul.addr %s36, 128
          %s565 = scalar_lea.hbm %s0, %s564
          %s567 = sshll.u32 %s560, 4
          %s568 = int_to_ptr.vmem [resolvable:$true] %s567
          %570 = dma.hbm_to_vmem [thread:$0]  %s565, 128, %s568, %s557
        $region68: #{tpu_custom_call.1} parent=63 // pred_fallthru
          _
        // Predicated region
        $region69: #{tpu_custom_call.1} parent=63 // pred_check
          %p571 = pneg %p82
        $region70: #{tpu_custom_call.1} parent=63 // pred_check_branch
          %573 = sbr.rel (%p571) target = $region72
        $region71: #{tpu_custom_call.1} parent=63 // pred_region
          %s574 = sand.u32 %s36, 1
          %s575 = scalar_lea.sflag [#allocation6], %s574
          %s576 = sand.u32 %s72, 1
          %s577 = smul.addr %s576, 8
          %s578 = scalar_lea.vmem [#allocation5], %s577
          %s580 = ssub.s32 128, 128
          %581 = vsyncadd %s575, %s580
          %s582 = smul.addr %s36, 128
          %s583 = scalar_lea.hbm %s1, %s582
          %s585 = sshll.u32 %s578, 4
          %s586 = int_to_ptr.vmem [resolvable:$true] %s585
          %588 = dma.hbm_to_vmem [thread:$0]  %s583, 128, %s586, %s575
        $region72: #{tpu_custom_call.1} parent=63 // pred_fallthru
          _
        // Predicated region
        $region73: #{tpu_custom_call.1} parent=63 // pred_check
          %p589 = pneg %p108
        $region74: #{tpu_custom_call.1} parent=63 // pred_check_branch
          %591 = sbr.rel (%p589) target = $region76
        $region75: #{tpu_custom_call.1} parent=63 // pred_region
          %s592 = sand.u32 %s36, 1
          %s593 = scalar_lea.sflag [#allocation6], %s592
          %s594 = sand.u32 %s98, 1
          %s595 = smul.addr %s594, 8
          %s596 = scalar_lea.vmem [#allocation7], %s595
          %s598 = ssub.s32 128, 128
          %599 = vsyncadd %s593, %s598
          %s600 = smul.addr %s36, 128
          %s601 = scalar_lea.hbm %s2, %s600
          %s603 = sshll.u32 %s596, 4
          %s604 = int_to_ptr.vmem [resolvable:$true] %s603
          %606 = dma.hbm_to_vmem [thread:$0]  %s601, 128, %s604, %s593
        $region76: #{tpu_custom_call.1} parent=63 // pred_fallthru
          _
      $region64: #{tpu_custom_call.1} parent=5 // pred_fallthru
        _
      %p607 = scmp.le.s32.totalorder 1, %s36
      %p608 = scmp.lt.s32.totalorder %s36, 3
      %p609 = pnand %p607, %p608
      %p610 = pneg %p609
      // Predicated region
      $region77: #{tpu_custom_call.1} parent=5 // pred_check
        _
      $region78: #{tpu_custom_call.1} parent=5 // pred_check_branch
        %612 = sbr.rel (%p609) target = $region80
      $region79: #{tpu_custom_call.1} parent=5 // pred_region
        %s613 = ssub.s32 %s36, 1
        %s614 = sand.u32 %s49, 1
        %s615 = scalar_lea.sflag [#allocation3], %s614
        %s616 = sand.u32 %s49, 1
        %s617 = smul.addr %s616, 8
        %s618 = scalar_lea.vmem [#allocation2], %s617
        // Predicated region
        $region81: #{tpu_custom_call.1} parent=79 // pred_check
          %p619 = pneg %p62
        $region82: #{tpu_custom_call.1} parent=79 // pred_check_branch
          %621 = sbr.rel (%p619) target = $region84
        $region83: #{tpu_custom_call.1} parent=79 // pred_region
          %622 = dma.done %s615, 128
        $region84: #{tpu_custom_call.1} parent=79 // pred_fallthru
          _
        %s623 = sand.u32 %s41, 1
        %s624 = scalar_lea.sflag [#allocation6], %s623
        %s625 = sand.u32 %s75, 1
        %s626 = smul.addr %s625, 8
        %s627 = scalar_lea.vmem [#allocation5], %s626
        // Predicated region
        $region85: #{tpu_custom_call.1} parent=79 // pred_check
          %p628 = pneg %p88
        $region86: #{tpu_custom_call.1} parent=79 // pred_check_branch
          %630 = sbr.rel (%p628) target = $region88
        $region87: #{tpu_custom_call.1} parent=79 // pred_region
          %631 = dma.done %s624, 128
        $region88: #{tpu_custom_call.1} parent=79 // pred_fallthru
          _
        %s632 = sand.u32 %s41, 1
        %s633 = scalar_lea.sflag [#allocation6], %s632
        %s634 = sand.u32 %s101, 1
        %s635 = smul.addr %s634, 8
        %s636 = scalar_lea.vmem [#allocation7], %s635
        // Predicated region
        $region89: #{tpu_custom_call.1} parent=79 // pred_check
          %p637 = pneg %p114
        $region90: #{tpu_custom_call.1} parent=79 // pred_check_branch
          %639 = sbr.rel (%p637) target = $region92
        $region91: #{tpu_custom_call.1} parent=79 // pred_region
          %640 = dma.done %s633, 128
        $region92: #{tpu_custom_call.1} parent=79 // pred_fallthru
          _
        // Predicated region
        $region93: #{tpu_custom_call.1} parent=79 // pred_check
          %p641 = pneg %p135
        $region94: #{tpu_custom_call.1} parent=79 // pred_check_branch
          %643 = sbr.rel (%p641) target = $region96
        $region95: #{tpu_custom_call.1} parent=79 // pred_region
          %644 = dma.done [#allocation9], 128
        $region96: #{tpu_custom_call.1} parent=79 // pred_fallthru
          _
        // Predicated region
        $region97: #{tpu_custom_call.1} parent=79 // pred_check
          %p645 = pneg %p156
        $region98: #{tpu_custom_call.1} parent=79 // pred_check_branch
          %647 = sbr.rel (%p645) target = $region100
        $region99: #{tpu_custom_call.1} parent=79 // pred_region
          %648 = dma.done [#allocation9], 512
        $region100: #{tpu_custom_call.1} parent=79 // pred_fallthru
          _
        // Predicated region
        $region101: #{tpu_custom_call.1} parent=79 // pred_check
          %p649 = pneg %p177
        $region102: #{tpu_custom_call.1} parent=79 // pred_check_branch
          %651 = sbr.rel (%p649) target = $region104
        $region103: #{tpu_custom_call.1} parent=79 // pred_region
          %652 = dma.done [#allocation12], 16
        $region104: #{tpu_custom_call.1} parent=79 // pred_fallthru
          _
        // Predicated region
        $region105: #{tpu_custom_call.1} parent=79 // pred_check
          %p653 = pneg %p198
        $region106: #{tpu_custom_call.1} parent=79 // pred_check_branch
          %655 = sbr.rel (%p653) target = $region108
        $region107: #{tpu_custom_call.1} parent=79 // pred_region
          %656 = dma.done [#allocation12], 512
        $region108: #{tpu_custom_call.1} parent=79 // pred_fallthru
          _
        // Predicated region
        $region109: #{tpu_custom_call.1} parent=79 // pred_check
          %p657 = pneg %p219
        $region110: #{tpu_custom_call.1} parent=79 // pred_check_branch
          %659 = sbr.rel (%p657) target = $region112
        $region111: #{tpu_custom_call.1} parent=79 // pred_region
          %660 = dma.done [#allocation15], 16
        $region112: #{tpu_custom_call.1} parent=79 // pred_fallthru
          _
        // Predicated region
        $region113: #{tpu_custom_call.1} parent=79 // pred_check
          %p661 = pneg %p240
        $region114: #{tpu_custom_call.1} parent=79 // pred_check_branch
          %663 = sbr.rel (%p661) target = $region116
        $region115: #{tpu_custom_call.1} parent=79 // pred_region
          %664 = dma.done [#allocation15], 2048
        $region116: #{tpu_custom_call.1} parent=79 // pred_fallthru
          _
        // Predicated region
        $region117: #{tpu_custom_call.1} parent=79 // pred_check
          %p665 = pneg %p261
        $region118: #{tpu_custom_call.1} parent=79 // pred_check_branch
          %667 = sbr.rel (%p665) target = $region120
        $region119: #{tpu_custom_call.1} parent=79 // pred_region
          %668 = dma.done [#allocation18], 64
        $region120: #{tpu_custom_call.1} parent=79 // pred_fallthru
          _
        // Predicated region
        $region121: #{tpu_custom_call.1} parent=79 // pred_check
          %p669 = pneg %p282
        $region122: #{tpu_custom_call.1} parent=79 // pred_check_branch
          %671 = sbr.rel (%p669) target = $region124
        $region123: #{tpu_custom_call.1} parent=79 // pred_region
          %672 = dma.done [#allocation18], 128
        $region124: #{tpu_custom_call.1} parent=79 // pred_fallthru
          _
        // Predicated region
        $region125: #{tpu_custom_call.1} parent=79 // pred_check
          %p673 = pneg %p303
        $region126: #{tpu_custom_call.1} parent=79 // pred_check_branch
          %675 = sbr.rel (%p673) target = $region128
        $region127: #{tpu_custom_call.1} parent=79 // pred_region
          %676 = dma.done [#allocation21], 512
        $region128: #{tpu_custom_call.1} parent=79 // pred_fallthru
          _
        // Predicated region
        $region129: #{tpu_custom_call.1} parent=79 // pred_check
          %p677 = pneg %p324
        $region130: #{tpu_custom_call.1} parent=79 // pred_check_branch
          %679 = sbr.rel (%p677) target = $region132
        $region131: #{tpu_custom_call.1} parent=79 // pred_region
          %680 = dma.done [#allocation21], 16
        $region132: #{tpu_custom_call.1} parent=79 // pred_fallthru
          _
        // Predicated region
        $region133: #{tpu_custom_call.1} parent=79 // pred_check
          %p681 = pneg %p345
        $region134: #{tpu_custom_call.1} parent=79 // pred_check_branch
          %683 = sbr.rel (%p681) target = $region136
        $region135: #{tpu_custom_call.1} parent=79 // pred_region
          %684 = dma.done [#allocation24], 1024
        $region136: #{tpu_custom_call.1} parent=79 // pred_fallthru
          _
        // Predicated region
        $region137: #{tpu_custom_call.1} parent=79 // pred_check
          %p685 = pneg %p366
        $region138: #{tpu_custom_call.1} parent=79 // pred_check_branch
          %687 = sbr.rel (%p685) target = $region140
        $region139: #{tpu_custom_call.1} parent=79 // pred_region
          %688 = dma.done [#allocation24], 16
        $region140: #{tpu_custom_call.1} parent=79 // pred_fallthru
          _
        %s689 = sand.u32 %s49, 1
        %s690 = scalar_lea.sflag [#allocation3], %s689
        %s691 = sand.u32 %s49, 1
        %s692 = smul.addr %s691, 8
        %s693 = scalar_lea.vmem [#allocation2], %s692
        %p694 = pneg %p62
        %p695 = pneg %p59
        %s696 = sand.u32 %s41, 1
        %s697 = scalar_lea.sflag [#allocation6], %s696
        %s698 = sand.u32 %s75, 1
        %s699 = smul.addr %s698, 8
        %s700 = scalar_lea.vmem [#allocation5], %s699
        %p701 = pneg %p88
        %p702 = pneg %p85
        %s703 = sand.u32 %s41, 1
        %s704 = scalar_lea.sflag [#allocation6], %s703
        %s705 = sand.u32 %s101, 1
        %s706 = smul.addr %s705, 8
        %s707 = scalar_lea.vmem [#allocation7], %s706
        %p708 = pneg %p114
        %p709 = pneg %p111
        %p710 = pneg %p135
        %p711 = pneg %p132
        %p712 = pneg %p156
        %p713 = pneg %p153
        %p714 = pneg %p177
        %p715 = pneg %p174
        %p716 = pneg %p198
        %p717 = pneg %p195
        %p718 = pneg %p219
        %p719 = pneg %p216
        %p720 = pneg %p240
        %p721 = pneg %p237
        %p722 = pneg %p261
        %p723 = pneg %p258
        %p724 = pneg %p282
        %p725 = pneg %p279
        %p726 = pneg %p303
        %p727 = pneg %p300
        %p728 = pneg %p324
        %p729 = pneg %p321
        %p730 = pneg %p345
        %p731 = pneg %p342
        %p732 = pneg %p366
        %p733 = pneg %p363
        %p734 = pneg %p392
        %p735 = pneg %p389
        %s736 = sand.u32 %s379, 1
        %s737 = scalar_lea.sflag [#allocation4], %s736
        %s738 = sand.u32 %s379, 1
        %s739 = smul.addr %s738, 8
        %s740 = scalar_lea.vmem [#allocation26], %s739
        %v742 = vld [vmem:[%s618] sm:$0xff]
        %v743 = vld [vmem:[%s627] sm:$0xff]
        %v744 = vld [vmem:[%s636] sm:$0xff]
        %v745 = vld [vmem:[#allocation8] sm:$0xff]
        %v746 = vld [vmem:[#allocation19] sm:$0x3f]
        %v747 = vpack.c.bf16 %v742, %v742
        %v748 = vld [vmem:[#allocation10] sm:$0xff]
        %v749 = vld [vmem:[#allocation10 + $0x8] sm:$0xff]
        %v750 = vld [vmem:[#allocation10 + $0x10] sm:$0xff]
        %v751 = vld [vmem:[#allocation10 + $0x18] sm:$0xff]
        %v752 = vpack.c.bf16 %v749, %v748
        %v753 = vpack.c.bf16 %v751, %v750
        %v754 = vld [vmem:[#allocation11] sm:$0x1]
        %v756 = vlaneseq
        %v757 = vshrl.u32 %v756, 7
        %v758 = vsub.s32 0, %v757
        %v759 = vrot.slane %v754, %v758
        %vm761 = vcmask 261120
        %v763 = vsel %vm761, %v747, 0
        %765 = vmatprep.subr.bf16.mxu0 0
        %766 = vmatpush1.bf16.msra.mxu0 %v752
        %767 = vmatprep.subr.bf16.mxu0 0
        %768 = vmatpush1.bf16.msra.mxu0 %v753
        %769 = vmatprep.subr.bf16.mxu0 0
        %770 = vmatpush1.bf16.msra.mxu0 0
        %771 = vmatprep.subr.bf16.mxu0 0
        %772 = vmatpush1.bf16.msra.mxu0 0
        %773 = vmatprep.subr.bf16.mxu0 0
        %774 = vmatpush1.bf16.msra.mxu0 0
        %775 = vmatprep.subr.bf16.mxu0 0
        %776 = vmatpush1.bf16.msra.mxu0 0
        %777 = vmatprep.subr.bf16.mxu0 0
        %778 = vmatpush1.bf16.msra.mxu0 0
        %779 = vmatprep.subr.bf16.mxu0 0
        %780 = vmatpush1.bf16.msra.mxu0 0
        %781 = vmatprep.subr.bf16.mxu0 0
        %782 = vmatpush1.bf16.msra.mxu0 0
        %783 = vmatprep.subr.bf16.mxu0 0
        %784 = vmatpush1.bf16.msra.mxu0 0
        %785 = vmatprep.subr.bf16.mxu0 0
        %786 = vmatpush1.bf16.msra.mxu0 0
        %787 = vmatprep.subr.bf16.mxu0 0
        %788 = vmatpush1.bf16.msra.mxu0 0
        %789 = vmatprep.subr.bf16.mxu0 0
        %790 = vmatpush1.bf16.msra.mxu0 0
        %791 = vmatprep.subr.bf16.mxu0 0
        %792 = vmatpush1.bf16.msra.mxu0 0
        %793 = vmatprep.subr.bf16.mxu0 0
        %794 = vmatpush1.bf16.msra.mxu0 0
        %795 = vmatprep.subr.bf16.mxu0 0
        %796 = vmatpush1.bf16.msra.mxu0 0
        %797 = vmatprep.mubr.bf16.mxu0 0
        %798 = vmatmul.mubr.bf16.gmra.mrb[0].mxu0 %v763
        %v799 = vpop.f32.mrb[0].mxu0
        %v800 = vadd.f32 %v759, %v799
        %v801 = vpop.f32.mrb[0].mxu0
        %v802 = vpop.f32.mrb[0].mxu0
        %v803 = vpop.f32.mrb[0].mxu0
        %804 = vdwg.mxu0
        %806 = vrot.lane.b32.xlu0 %v800, 120
        %v807 = vpop.permute.xlu0 %806
        %809 = vrot.lane.b32.xlu0 %v800, 112
        %v810 = vpop.permute.xlu0 %809
        %812 = vrot.lane.b32.xlu0 %v800, 104
        %v813 = vpop.permute.xlu0 %812
        %v815 = vcombine.low %v800, %v810
        %v816 = vcombine.high %v800, %v810
        %v818 = vunpack.c.l.s4 1983009808
        %v819 = vunpack.c.0.s8 %v818
        %v820 = vlaneseq
        %v821 = vshrl.u32 %v820, 7
        %v822 = vsub.s32 %v819, %v821
        %v823 = vrot.slane %v815, %v822
        %v825 = vunpack.c.l.s4 1983009808
        %v826 = vunpack.c.0.s8 %v825
        %v827 = vlaneseq
        %v828 = vshrl.u32 %v827, 7
        %v829 = vsub.s32 %v826, %v828
        %v830 = vrot.slane %v816, %v829
        %v831 = vcombine.low %v807, %v813
        %v832 = vcombine.high %v807, %v813
        %v834 = vunpack.c.l.s4 1983009808
        %v835 = vunpack.c.0.s8 %v834
        %v836 = vlaneseq
        %v837 = vshrl.u32 %v836, 7
        %v838 = vsub.s32 %v835, %v837
        %v839 = vrot.slane %v831, %v838
        %v841 = vunpack.c.l.s4 1983009808
        %v842 = vunpack.c.0.s8 %v841
        %v843 = vlaneseq
        %v844 = vshrl.u32 %v843, 7
        %v845 = vsub.s32 %v842, %v844
        %v846 = vrot.slane %v832, %v845
        %v847 = vcombine.low %v823, %v839
        %v848 = vcombine.high %v823, %v839
        %v850 = vunpack.c.l.s4 1934713408
        %v851 = vunpack.c.0.s8 %v850
        %v852 = vlaneseq
        %v853 = vshrl.u32 %v852, 7
        %v854 = vsub.s32 %v851, %v853
        %v855 = vrot.slane %v847, %v854
        %v857 = vunpack.c.l.s4 1934713408
        %v858 = vunpack.c.0.s8 %v857
        %v859 = vlaneseq
        %v860 = vshrl.u32 %v859, 7
        %v861 = vsub.s32 %v858, %v860
        %v862 = vrot.slane %v848, %v861
        %v863 = vcombine.low %v830, %v846
        %v864 = vcombine.high %v830, %v846
        %v866 = vunpack.c.l.s4 1934713408
        %v867 = vunpack.c.0.s8 %v866
        %v868 = vlaneseq
        %v869 = vshrl.u32 %v868, 7
        %v870 = vsub.s32 %v867, %v869
        %v871 = vrot.slane %v863, %v870
        %v873 = vunpack.c.l.s4 1934713408
        %v874 = vunpack.c.0.s8 %v873
        %v875 = vlaneseq
        %v876 = vshrl.u32 %v875, 7
        %v877 = vsub.s32 %v874, %v876
        %v878 = vrot.slane %v864, %v877
        %v879 = vcombine.high %v855, 0.0
        %v880 = vcombine.high %v862, 0.0
        %v881 = vcombine.high %v871, 0.0
        %v882 = vcombine.high %v878, 0.0
        %v883 = vpack.c.bf16 %v855, %v855
        %v884 = vpack.c.bf16 %v879, %v879
        %v885 = vpack.c.bf16 %v862, %v862
        %v886 = vpack.c.bf16 %v880, %v880
        %v887 = vpack.c.bf16 %v871, %v871
        %v888 = vpack.c.bf16 %v881, %v881
        %v889 = vpack.c.bf16 %v878, %v878
        %v890 = vpack.c.bf16 %v882, %v882
        %891 = vrot.lane.b32.xlu0 %v800, 96
        %v892 = vpop.permute.xlu0 %891
        %893 = vrot.lane.b32.xlu0 %v807, 96
        %v894 = vpop.permute.xlu0 %893
        %895 = vrot.lane.b32.xlu0 %v810, 96
        %v896 = vpop.permute.xlu0 %895
        %897 = vrot.lane.b32.xlu0 %v813, 96
        %v898 = vpop.permute.xlu0 %897
        %v903 = vcombine.low %v892, %v896
        %v904 = vcombine.high %v892, %v896
        %v906 = vunpack.c.l.s4 1983009808
        %v907 = vunpack.c.0.s8 %v906
        %v908 = vlaneseq
        %v909 = vshrl.u32 %v908, 7
        %v910 = vsub.s32 %v907, %v909
        %v911 = vrot.slane %v903, %v910
        %v913 = vunpack.c.l.s4 1983009808
        %v914 = vunpack.c.0.s8 %v913
        %v915 = vlaneseq
        %v916 = vshrl.u32 %v915, 7
        %v917 = vsub.s32 %v914, %v916
        %v918 = vrot.slane %v904, %v917
        %v919 = vcombine.low %v894, %v898
        %v920 = vcombine.high %v894, %v898
        %v922 = vunpack.c.l.s4 1983009808
        %v923 = vunpack.c.0.s8 %v922
        %v924 = vlaneseq
        %v925 = vshrl.u32 %v924, 7
        %v926 = vsub.s32 %v923, %v925
        %v927 = vrot.slane %v919, %v926
        %v929 = vunpack.c.l.s4 1983009808
        %v930 = vunpack.c.0.s8 %v929
        %v931 = vlaneseq
        %v932 = vshrl.u32 %v931, 7
        %v933 = vsub.s32 %v930, %v932
        %v934 = vrot.slane %v920, %v933
        %v935 = vcombine.low %v911, %v927
        %v936 = vcombine.high %v911, %v927
        %v938 = vunpack.c.l.s4 1934713408
        %v939 = vunpack.c.0.s8 %v938
        %v940 = vlaneseq
        %v941 = vshrl.u32 %v940, 7
        %v942 = vsub.s32 %v939, %v941
        %v943 = vrot.slane %v935, %v942
        %v945 = vunpack.c.l.s4 1934713408
        %v946 = vunpack.c.0.s8 %v945
        %v947 = vlaneseq
        %v948 = vshrl.u32 %v947, 7
        %v949 = vsub.s32 %v946, %v948
        %v950 = vrot.slane %v936, %v949
        %v951 = vcombine.low %v918, %v934
        %v952 = vcombine.high %v918, %v934
        %v954 = vunpack.c.l.s4 1934713408
        %v955 = vunpack.c.0.s8 %v954
        %v956 = vlaneseq
        %v957 = vshrl.u32 %v956, 7
        %v958 = vsub.s32 %v955, %v957
        %v959 = vrot.slane %v951, %v958
        %v961 = vunpack.c.l.s4 1934713408
        %v962 = vunpack.c.0.s8 %v961
        %v963 = vlaneseq
        %v964 = vshrl.u32 %v963, 7
        %v965 = vsub.s32 %v962, %v964
        %v966 = vrot.slane %v952, %v965
        %v967 = vcombine.high %v943, 0.0
        %v968 = vcombine.high %v950, 0.0
        %v969 = vcombine.high %v959, 0.0
        %v970 = vcombine.high %v966, 0.0
        %v971 = vpack.c.bf16 %v943, %v943
        %v972 = vpack.c.bf16 %v967, %v967
        %v973 = vpack.c.bf16 %v950, %v950
        %v974 = vpack.c.bf16 %v968, %v968
        %v975 = vpack.c.bf16 %v959, %v959
        %v976 = vpack.c.bf16 %v969, %v969
        %v977 = vpack.c.bf16 %v966, %v966
        %v978 = vpack.c.bf16 %v970, %v970
        %979 = vrot.lane.b32.xlu0 %v800, 64
        %v980 = vpop.permute.xlu0 %979
        %981 = vrot.lane.b32.xlu0 %v807, 64
        %v982 = vpop.permute.xlu0 %981
        %983 = vrot.lane.b32.xlu0 %v810, 64
        %v984 = vpop.permute.xlu0 %983
        %985 = vrot.lane.b32.xlu0 %v813, 64
        %v986 = vpop.permute.xlu0 %985
        %v991 = vcombine.low %v980, %v984
        %v992 = vcombine.high %v980, %v984
        %v994 = vunpack.c.l.s4 1983009808
        %v995 = vunpack.c.0.s8 %v994
        %v996 = vlaneseq
        %v997 = vshrl.u32 %v996, 7
        %v998 = vsub.s32 %v995, %v997
        %v999 = vrot.slane %v991, %v998
        %v1001 = vunpack.c.l.s4 1983009808
        %v1002 = vunpack.c.0.s8 %v1001
        %v1003 = vlaneseq
        %v1004 = vshrl.u32 %v1003, 7
        %v1005 = vsub.s32 %v1002, %v1004
        %v1006 = vrot.slane %v992, %v1005
        %v1007 = vcombine.low %v982, %v986
        %v1008 = vcombine.high %v982, %v986
        %v1010 = vunpack.c.l.s4 1983009808
        %v1011 = vunpack.c.0.s8 %v1010
        %v1012 = vlaneseq
        %v1013 = vshrl.u32 %v1012, 7
        %v1014 = vsub.s32 %v1011, %v1013
        %v1015 = vrot.slane %v1007, %v1014
        %v1017 = vunpack.c.l.s4 1983009808
        %v1018 = vunpack.c.0.s8 %v1017
        %v1019 = vlaneseq
        %v1020 = vshrl.u32 %v1019, 7
        %v1021 = vsub.s32 %v1018, %v1020
        %v1022 = vrot.slane %v1008, %v1021
        %v1023 = vcombine.low %v999, %v1015
        %v1024 = vcombine.high %v999, %v1015
        %v1026 = vunpack.c.l.s4 1934713408
        %v1027 = vunpack.c.0.s8 %v1026
        %v1028 = vlaneseq
        %v1029 = vshrl.u32 %v1028, 7
        %v1030 = vsub.s32 %v1027, %v1029
        %v1031 = vrot.slane %v1023, %v1030
        %v1033 = vunpack.c.l.s4 1934713408
        %v1034 = vunpack.c.0.s8 %v1033
        %v1035 = vlaneseq
        %v1036 = vshrl.u32 %v1035, 7
        %v1037 = vsub.s32 %v1034, %v1036
        %v1038 = vrot.slane %v1024, %v1037
        %v1039 = vcombine.low %v1006, %v1022
        %v1040 = vcombine.high %v1006, %v1022
        %v1042 = vunpack.c.l.s4 1934713408
        %v1043 = vunpack.c.0.s8 %v1042
        %v1044 = vlaneseq
        %v1045 = vshrl.u32 %v1044, 7
        %v1046 = vsub.s32 %v1043, %v1045
        %v1047 = vrot.slane %v1039, %v1046
        %v1049 = vunpack.c.l.s4 1934713408
        %v1050 = vunpack.c.0.s8 %v1049
        %v1051 = vlaneseq
        %v1052 = vshrl.u32 %v1051, 7
        %v1053 = vsub.s32 %v1050, %v1052
        %v1054 = vrot.slane %v1040, %v1053
        %v1055 = vcombine.high %v1031, 0.0
        %v1056 = vcombine.high %v1038, 0.0
        %v1057 = vcombine.high %v1047, 0.0
        %v1058 = vcombine.high %v1054, 0.0
        %v1059 = vpack.c.bf16 %v1031, %v1031
        %v1060 = vpack.c.bf16 %v1055, %v1055
        %v1061 = vpack.c.bf16 %v1038, %v1038
        %v1062 = vpack.c.bf16 %v1056, %v1056
        %v1063 = vpack.c.bf16 %v1047, %v1047
        %v1064 = vpack.c.bf16 %v1057, %v1057
        %v1065 = vpack.c.bf16 %v1054, %v1054
        %v1066 = vpack.c.bf16 %v1058, %v1058
        %v1067 = vcombine.low %v883, %v887
        %v1069 = vunpack.c.l.s4 1983009808
        %v1070 = vunpack.c.0.s8 %v1069
        %v1071 = vlaneseq
        %v1072 = vshrl.u32 %v1071, 7
        %v1073 = vsub.s32 %v1070, %v1072
        %v1074 = vrot.slane %v1067, %v1073
        %v1075 = vcombine.low %v885, %v889
        %v1077 = vunpack.c.l.s4 1983009808
        %v1078 = vunpack.c.0.s8 %v1077
        %v1079 = vlaneseq
        %v1080 = vshrl.u32 %v1079, 7
        %v1081 = vsub.s32 %v1078, %v1080
        %v1082 = vrot.slane %v1075, %v1081
        %v1083 = vcombine.low %v1074, %v1082
        %v1085 = vunpack.c.l.s4 1934713408
        %v1086 = vunpack.c.0.s8 %v1085
        %v1087 = vlaneseq
        %v1088 = vshrl.u32 %v1087, 7
        %v1089 = vsub.s32 %v1086, %v1088
        %v1090 = vrot.slane %v1083, %v1089
        %v1091 = vcombine.high %v1090, 0
        %v1092 = vcombine.low %v884, %v888
        %v1094 = vunpack.c.l.s4 1983009808
        %v1095 = vunpack.c.0.s8 %v1094
        %v1096 = vlaneseq
        %v1097 = vshrl.u32 %v1096, 7
        %v1098 = vsub.s32 %v1095, %v1097
        %v1099 = vrot.slane %v1092, %v1098
        %v1100 = vcombine.low %v886, %v890
        %v1102 = vunpack.c.l.s4 1983009808
        %v1103 = vunpack.c.0.s8 %v1102
        %v1104 = vlaneseq
        %v1105 = vshrl.u32 %v1104, 7
        %v1106 = vsub.s32 %v1103, %v1105
        %v1107 = vrot.slane %v1100, %v1106
        %v1108 = vcombine.low %v1099, %v1107
        %v1110 = vunpack.c.l.s4 1934713408
        %v1111 = vunpack.c.0.s8 %v1110
        %v1112 = vlaneseq
        %v1113 = vshrl.u32 %v1112, 7
        %v1114 = vsub.s32 %v1111, %v1113
        %v1115 = vrot.slane %v1108, %v1114
        %v1116 = vcombine.high %v1115, 0
        %v1119 = vpack.i.b16 %v1115, %v1090
        %v1120 = vshrl.u32 %v1090, 16
        %v1121 = vshrl.u32 %v1115, 16
        %v1122 = vpack.i.b16 %v1121, %v1120
        %v1125 = vpack.i.b16 %v1116, %v1091
        %v1126 = vshrl.u32 %v1091, 16
        %v1127 = vshrl.u32 %v1116, 16
        %v1128 = vpack.i.b16 %v1127, %v1126
        %1129 = vxpose.xlu0.c.b16.start [1/8] %v971, 128
        %1130 = vxpose.xlu0.c.b16.cont [2/8] 0, 128
        %1131 = vxpose.xlu0.c.b16.cont [3/8] 0, 128
        %1132 = vxpose.xlu0.c.b16.cont [4/8] 0, 128
        %1133 = vxpose.xlu0.c.b16.cont [5/8] 0, 128
        %1134 = vxpose.xlu0.c.b16.cont [6/8] 0, 128
        %1135 = vxpose.xlu0.c.b16.cont [7/8] 0, 128
        %1136 = vxpose.xlu0.c.b16.end [8/8] 0, 128
        %v1137 = vpop.trf.xlu0
        %v1138 = vpop.trf.xlu0
        %v1139 = vpop.trf.xlu0
        %v1140 = vpop.trf.xlu0
        %v1141 = vpop.trf.xlu0
        %v1142 = vpop.trf.xlu0
        %v1143 = vpop.trf.xlu0
        %v1144 = vpop.trf.xlu0
        %1145 = vxpose.xlu0.c.b16.start [1/8] %v972, 128
        %1146 = vxpose.xlu0.c.b16.cont [2/8] 0, 128
        %1147 = vxpose.xlu0.c.b16.cont [3/8] 0, 128
        %1148 = vxpose.xlu0.c.b16.cont [4/8] 0, 128
        %1149 = vxpose.xlu0.c.b16.cont [5/8] 0, 128
        %1150 = vxpose.xlu0.c.b16.cont [6/8] 0, 128
        %1151 = vxpose.xlu0.c.b16.cont [7/8] 0, 128
        %1152 = vxpose.xlu0.c.b16.end [8/8] 0, 128
        %v1153 = vpop.trf.xlu0
        %v1154 = vpop.trf.xlu0
        %v1155 = vpop.trf.xlu0
        %v1156 = vpop.trf.xlu0
        %v1157 = vpop.trf.xlu0
        %v1158 = vpop.trf.xlu0
        %v1159 = vpop.trf.xlu0
        %v1160 = vpop.trf.xlu0
        %1161 = vxpose.xlu0.c.b16.start [1/8] %v973, 128
        %1162 = vxpose.xlu0.c.b16.cont [2/8] 0, 128
        %1163 = vxpose.xlu0.c.b16.cont [3/8] 0, 128
        %1164 = vxpose.xlu0.c.b16.cont [4/8] 0, 128
        %1165 = vxpose.xlu0.c.b16.cont [5/8] 0, 128
        %1166 = vxpose.xlu0.c.b16.cont [6/8] 0, 128
        %1167 = vxpose.xlu0.c.b16.cont [7/8] 0, 128
        %1168 = vxpose.xlu0.c.b16.end [8/8] 0, 128
        %v1169 = vpop.trf.xlu0
        %v1170 = vpop.trf.xlu0
        %v1171 = vpop.trf.xlu0
        %v1172 = vpop.trf.xlu0
        %v1173 = vpop.trf.xlu0
        %v1174 = vpop.trf.xlu0
        %v1175 = vpop.trf.xlu0
        %v1176 = vpop.trf.xlu0
        %1177 = vxpose.xlu0.c.b16.start [1/8] %v974, 128
        %1178 = vxpose.xlu0.c.b16.cont [2/8] 0, 128
        %1179 = vxpose.xlu0.c.b16.cont [3/8] 0, 128
        %1180 = vxpose.xlu0.c.b16.cont [4/8] 0, 128
        %1181 = vxpose.xlu0.c.b16.cont [5/8] 0, 128
        %1182 = vxpose.xlu0.c.b16.cont [6/8] 0, 128
        %1183 = vxpose.xlu0.c.b16.cont [7/8] 0, 128
        %1184 = vxpose.xlu0.c.b16.end [8/8] 0, 128
        %v1185 = vpop.trf.xlu0
        %v1186 = vpop.trf.xlu0
        %v1187 = vpop.trf.xlu0
        %v1188 = vpop.trf.xlu0
        %v1189 = vpop.trf.xlu0
        %v1190 = vpop.trf.xlu0
        %v1191 = vpop.trf.xlu0
        %v1192 = vpop.trf.xlu0
        %1193 = vxpose.xlu0.c.b16.start [1/8] %v975, 128
        %1194 = vxpose.xlu0.c.b16.cont [2/8] 0, 128
        %1195 = vxpose.xlu0.c.b16.cont [3/8] 0, 128
        %1196 = vxpose.xlu0.c.b16.cont [4/8] 0, 128
        %1197 = vxpose.xlu0.c.b16.cont [5/8] 0, 128
        %1198 = vxpose.xlu0.c.b16.cont [6/8] 0, 128
        %1199 = vxpose.xlu0.c.b16.cont [7/8] 0, 128
        %1200 = vxpose.xlu0.c.b16.end [8/8] 0, 128
        %v1201 = vpop.trf.xlu0
        %v1202 = vpop.trf.xlu0
        %v1203 = vpop.trf.xlu0
        %v1204 = vpop.trf.xlu0
        %v1205 = vpop.trf.xlu0
        %v1206 = vpop.trf.xlu0
        %v1207 = vpop.trf.xlu0
        %v1208 = vpop.trf.xlu0
        %1209 = vxpose.xlu0.c.b16.start [1/8] %v976, 128
        %1210 = vxpose.xlu0.c.b16.cont [2/8] 0, 128
        %1211 = vxpose.xlu0.c.b16.cont [3/8] 0, 128
        %1212 = vxpose.xlu0.c.b16.cont [4/8] 0, 128
        %1213 = vxpose.xlu0.c.b16.cont [5/8] 0, 128
        %1214 = vxpose.xlu0.c.b16.cont [6/8] 0, 128
        %1215 = vxpose.xlu0.c.b16.cont [7/8] 0, 128
        %1216 = vxpose.xlu0.c.b16.end [8/8] 0, 128
        %v1217 = vpop.trf.xlu0
        %v1218 = vpop.trf.xlu0
        %v1219 = vpop.trf.xlu0
        %v1220 = vpop.trf.xlu0
        %v1221 = vpop.trf.xlu0
        %v1222 = vpop.trf.xlu0
        %v1223 = vpop.trf.xlu0
        %v1224 = vpop.trf.xlu0
        %1225 = vxpose.xlu0.c.b16.start [1/8] %v977, 128
        %1226 = vxpose.xlu0.c.b16.cont [2/8] 0, 128
        %1227 = vxpose.xlu0.c.b16.cont [3/8] 0, 128
        %1228 = vxpose.xlu0.c.b16.cont [4/8] 0, 128
        %1229 = vxpose.xlu0.c.b16.cont [5/8] 0, 128
        %1230 = vxpose.xlu0.c.b16.cont [6/8] 0, 128
        %1231 = vxpose.xlu0.c.b16.cont [7/8] 0, 128
        %1232 = vxpose.xlu0.c.b16.end [8/8] 0, 128
        %v1233 = vpop.trf.xlu0
        %v1234 = vpop.trf.xlu0
        %v1235 = vpop.trf.xlu0
        %v1236 = vpop.trf.xlu0
        %v1237 = vpop.trf.xlu0
        %v1238 = vpop.trf.xlu0
        %v1239 = vpop.trf.xlu0
        %v1240 = vpop.trf.xlu0
        %1241 = vxpose.xlu0.c.b16.start [1/8] %v978, 128
        %1242 = vxpose.xlu0.c.b16.cont [2/8] 0, 128
        %1243 = vxpose.xlu0.c.b16.cont [3/8] 0, 128
        %1244 = vxpose.xlu0.c.b16.cont [4/8] 0, 128
        %1245 = vxpose.xlu0.c.b16.cont [5/8] 0, 128
        %1246 = vxpose.xlu0.c.b16.cont [6/8] 0, 128
        %1247 = vxpose.xlu0.c.b16.cont [7/8] 0, 128
        %1248 = vxpose.xlu0.c.b16.end [8/8] 0, 128
        %v1249 = vpop.trf.xlu0
        %v1250 = vpop.trf.xlu0
        %v1251 = vpop.trf.xlu0
        %v1252 = vpop.trf.xlu0
        %v1253 = vpop.trf.xlu0
        %v1254 = vpop.trf.xlu0
        %v1255 = vpop.trf.xlu0
        %v1256 = vpop.trf.xlu0
        %v1257 = vcombine.low %v1137, %v1201
        %v1259 = vunpack.c.l.s4 1983009808
        %v1260 = vunpack.c.0.s8 %v1259
        %v1261 = vlaneseq
        %v1262 = vshrl.u32 %v1261, 7
        %v1263 = vsub.s32 %v1260, %v1262
        %v1264 = vrot.slane %v1257, %v1263
        %v1265 = vcombine.low %v1169, %v1233
        %v1267 = vunpack.c.l.s4 1983009808
        %v1268 = vunpack.c.0.s8 %v1267
        %v1269 = vlaneseq
        %v1270 = vshrl.u32 %v1269, 7
        %v1271 = vsub.s32 %v1268, %v1270
        %v1272 = vrot.slane %v1265, %v1271
        %v1273 = vcombine.low %v1264, %v1272
        %v1274 = vcombine.high %v1264, %v1272
        %v1276 = vunpack.c.l.s4 1934713408
        %v1277 = vunpack.c.0.s8 %v1276
        %v1278 = vlaneseq
        %v1279 = vshrl.u32 %v1278, 7
        %v1280 = vsub.s32 %v1277, %v1279
        %v1281 = vrot.slane %v1273, %v1280
        %v1283 = vunpack.c.l.s4 1934713408
        %v1284 = vunpack.c.0.s8 %v1283
        %v1285 = vlaneseq
        %v1286 = vshrl.u32 %v1285, 7
        %v1287 = vsub.s32 %v1284, %v1286
        %v1288 = vrot.slane %v1274, %v1287
        %v1289 = vcombine.high %v1281, 0
        %v1290 = vcombine.high %v1288, 0
        %v1291 = vcombine.low %v1153, %v1217
        %v1293 = vunpack.c.l.s4 1983009808
        %v1294 = vunpack.c.0.s8 %v1293
        %v1295 = vlaneseq
        %v1296 = vshrl.u32 %v1295, 7
        %v1297 = vsub.s32 %v1294, %v1296
        %v1298 = vrot.slane %v1291, %v1297
        %v1299 = vcombine.low %v1185, %v1249
        %v1301 = vunpack.c.l.s4 1983009808
        %v1302 = vunpack.c.0.s8 %v1301
        %v1303 = vlaneseq
        %v1304 = vshrl.u32 %v1303, 7
        %v1305 = vsub.s32 %v1302, %v1304
        %v1306 = vrot.slane %v1299, %v1305
        %v1307 = vcombine.low %v1298, %v1306
        %v1308 = vcombine.high %v1298, %v1306
        %v1310 = vunpack.c.l.s4 1934713408
        %v1311 = vunpack.c.0.s8 %v1310
        %v1312 = vlaneseq
        %v1313 = vshrl.u32 %v1312, 7
        %v1314 = vsub.s32 %v1311, %v1313
        %v1315 = vrot.slane %v1307, %v1314
        %v1317 = vunpack.c.l.s4 1934713408
        %v1318 = vunpack.c.0.s8 %v1317
        %v1319 = vlaneseq
        %v1320 = vshrl.u32 %v1319, 7
        %v1321 = vsub.s32 %v1318, %v1320
        %v1322 = vrot.slane %v1308, %v1321
        %v1323 = vcombine.high %v1315, 0
        %v1324 = vcombine.high %v1322, 0
        %v1327 = vpack.i.b16 %v1315, %v1281
        %v1329 = vshrl.u32 %v1281, 16
        %v1330 = vshrl.u32 %v1315, 16
        %v1331 = vpack.i.b16 %v1330, %v1329
        %v1335 = vpack.i.b16 %v1323, %v1289
        %v1337 = vshrl.u32 %v1289, 16
        %v1338 = vshrl.u32 %v1323, 16
        %v1339 = vpack.i.b16 %v1338, %v1337
        %v1343 = vpack.i.b16 %v1322, %v1288
        %v1345 = vshrl.u32 %v1288, 16
        %v1346 = vshrl.u32 %v1322, 16
        %v1347 = vpack.i.b16 %v1346, %v1345
        %v1351 = vpack.i.b16 %v1324, %v1290
        %v1353 = vshrl.u32 %v1290, 16
        %v1354 = vshrl.u32 %v1324, 16
        %v1355 = vpack.i.b16 %v1354, %v1353
        %1357 = vxpose.xlu0.c.b16.start [1/8] %v1327, 128
        %1358 = vxpose.xlu0.c.b16.cont [2/8] 0, 128
        %1359 = vxpose.xlu0.c.b16.cont [3/8] 0, 128
        %1360 = vxpose.xlu0.c.b16.cont [4/8] 0, 128
        %1361 = vxpose.xlu0.c.b16.cont [5/8] 0, 128
        %1362 = vxpose.xlu0.c.b16.cont [6/8] 0, 128
        %1363 = vxpose.xlu0.c.b16.cont [7/8] 0, 128
        %1364 = vxpose.xlu0.c.b16.end [8/8] 0, 128
        %v1365 = vpop.trf.xlu0
        %v1366 = vpop.trf.xlu0
        %v1367 = vpop.trf.xlu0
        %v1368 = vpop.trf.xlu0
        %v1369 = vpop.trf.xlu0
        %v1370 = vpop.trf.xlu0
        %v1371 = vpop.trf.xlu0
        %v1372 = vpop.trf.xlu0
        %1373 = vxpose.xlu0.c.b16.start [1/8] %v1331, 128
        %1374 = vxpose.xlu0.c.b16.cont [2/8] 0, 128
        %1375 = vxpose.xlu0.c.b16.cont [3/8] 0, 128
        %1376 = vxpose.xlu0.c.b16.cont [4/8] 0, 128
        %1377 = vxpose.xlu0.c.b16.cont [5/8] 0, 128
        %1378 = vxpose.xlu0.c.b16.cont [6/8] 0, 128
        %1379 = vxpose.xlu0.c.b16.cont [7/8] 0, 128
        %1380 = vxpose.xlu0.c.b16.end [8/8] 0, 128
        %v1381 = vpop.trf.xlu0
        %v1382 = vpop.trf.xlu0
        %v1383 = vpop.trf.xlu0
        %v1384 = vpop.trf.xlu0
        %v1385 = vpop.trf.xlu0
        %v1386 = vpop.trf.xlu0
        %v1387 = vpop.trf.xlu0
        %v1388 = vpop.trf.xlu0
        %1389 = vxpose.xlu0.c.b16.start [1/8] %v1335, 128
        %1390 = vxpose.xlu0.c.b16.cont [2/8] 0, 128
        %1391 = vxpose.xlu0.c.b16.cont [3/8] 0, 128
        %1392 = vxpose.xlu0.c.b16.cont [4/8] 0, 128
        %1393 = vxpose.xlu0.c.b16.cont [5/8] 0, 128
        %1394 = vxpose.xlu0.c.b16.cont [6/8] 0, 128
        %1395 = vxpose.xlu0.c.b16.cont [7/8] 0, 128
        %1396 = vxpose.xlu0.c.b16.end [8/8] 0, 128
        %v1397 = vpop.trf.xlu0
        %v1398 = vpop.trf.xlu0
        %v1399 = vpop.trf.xlu0
        %v1400 = vpop.trf.xlu0
        %v1401 = vpop.trf.xlu0
        %v1402 = vpop.trf.xlu0
        %v1403 = vpop.trf.xlu0
        %v1404 = vpop.trf.xlu0
        %1405 = vxpose.xlu0.c.b16.start [1/8] %v1339, 128
        %1406 = vxpose.xlu0.c.b16.cont [2/8] 0, 128
        %1407 = vxpose.xlu0.c.b16.cont [3/8] 0, 128
        %1408 = vxpose.xlu0.c.b16.cont [4/8] 0, 128
        %1409 = vxpose.xlu0.c.b16.cont [5/8] 0, 128
        %1410 = vxpose.xlu0.c.b16.cont [6/8] 0, 128
        %1411 = vxpose.xlu0.c.b16.cont [7/8] 0, 128
        %1412 = vxpose.xlu0.c.b16.end [8/8] 0, 128
        %v1413 = vpop.trf.xlu0
        %v1414 = vpop.trf.xlu0
        %v1415 = vpop.trf.xlu0
        %v1416 = vpop.trf.xlu0
        %v1417 = vpop.trf.xlu0
        %v1418 = vpop.trf.xlu0
        %v1419 = vpop.trf.xlu0
        %v1420 = vpop.trf.xlu0
        %1421 = vxpose.xlu0.c.b16.start [1/8] %v1343, 128
        %1422 = vxpose.xlu0.c.b16.cont [2/8] 0, 128
        %1423 = vxpose.xlu0.c.b16.cont [3/8] 0, 128
        %1424 = vxpose.xlu0.c.b16.cont [4/8] 0, 128
        %1425 = vxpose.xlu0.c.b16.cont [5/8] 0, 128
        %1426 = vxpose.xlu0.c.b16.cont [6/8] 0, 128
        %1427 = vxpose.xlu0.c.b16.cont [7/8] 0, 128
        %1428 = vxpose.xlu0.c.b16.end [8/8] 0, 128
        %v1429 = vpop.trf.xlu0
        %v1430 = vpop.trf.xlu0
        %v1431 = vpop.trf.xlu0
        %v1432 = vpop.trf.xlu0
        %v1433 = vpop.trf.xlu0
        %v1434 = vpop.trf.xlu0
        %v1435 = vpop.trf.xlu0
        %v1436 = vpop.trf.xlu0
        %1437 = vxpose.xlu0.c.b16.start [1/8] %v1347, 128
        %1438 = vxpose.xlu0.c.b16.cont [2/8] 0, 128
        %1439 = vxpose.xlu0.c.b16.cont [3/8] 0, 128
        %1440 = vxpose.xlu0.c.b16.cont [4/8] 0, 128
        %1441 = vxpose.xlu0.c.b16.cont [5/8] 0, 128
        %1442 = vxpose.xlu0.c.b16.cont [6/8] 0, 128
        %1443 = vxpose.xlu0.c.b16.cont [7/8] 0, 128
        %1444 = vxpose.xlu0.c.b16.end [8/8] 0, 128
        %v1445 = vpop.trf.xlu0
        %v1446 = vpop.trf.xlu0
        %v1447 = vpop.trf.xlu0
        %v1448 = vpop.trf.xlu0
        %v1449 = vpop.trf.xlu0
        %v1450 = vpop.trf.xlu0
        %v1451 = vpop.trf.xlu0
        %v1452 = vpop.trf.xlu0
        %1453 = vxpose.xlu0.c.b16.start [1/8] %v1351, 128
        %1454 = vxpose.xlu0.c.b16.cont [2/8] 0, 128
        %1455 = vxpose.xlu0.c.b16.cont [3/8] 0, 128
        %1456 = vxpose.xlu0.c.b16.cont [4/8] 0, 128
        %1457 = vxpose.xlu0.c.b16.cont [5/8] 0, 128
        %1458 = vxpose.xlu0.c.b16.cont [6/8] 0, 128
        %1459 = vxpose.xlu0.c.b16.cont [7/8] 0, 128
        %1460 = vxpose.xlu0.c.b16.end [8/8] 0, 128
        %v1461 = vpop.trf.xlu0
        %v1462 = vpop.trf.xlu0
        %v1463 = vpop.trf.xlu0
        %v1464 = vpop.trf.xlu0
        %v1465 = vpop.trf.xlu0
        %v1466 = vpop.trf.xlu0
        %v1467 = vpop.trf.xlu0
        %v1468 = vpop.trf.xlu0
        %1469 = vxpose.xlu0.c.b16.start [1/8] %v1355, 128
        %1470 = vxpose.xlu0.c.b16.cont [2/8] 0, 128
        %1471 = vxpose.xlu0.c.b16.cont [3/8] 0, 128
        %1472 = vxpose.xlu0.c.b16.cont [4/8] 0, 128
        %1473 = vxpose.xlu0.c.b16.cont [5/8] 0, 128
        %1474 = vxpose.xlu0.c.b16.cont [6/8] 0, 128
        %1475 = vxpose.xlu0.c.b16.cont [7/8] 0, 128
        %1476 = vxpose.xlu0.c.b16.end [8/8] 0, 128
        %v1477 = vpop.trf.xlu0
        %v1478 = vpop.trf.xlu0
        %v1479 = vpop.trf.xlu0
        %v1480 = vpop.trf.xlu0
        %v1481 = vpop.trf.xlu0
        %v1482 = vpop.trf.xlu0
        %v1483 = vpop.trf.xlu0
        %v1484 = vpop.trf.xlu0
        %v1485 = vcombine.low %v1365, %v1429
        %v1487 = vunpack.c.l.s4 1983009808
        %v1488 = vunpack.c.0.s8 %v1487
        %v1489 = vlaneseq
        %v1490 = vshrl.u32 %v1489, 7
        %v1491 = vsub.s32 %v1488, %v1490
        %v1492 = vrot.slane %v1485, %v1491
        %v1493 = vcombine.low %v1397, %v1461
        %v1495 = vunpack.c.l.s4 1983009808
        %v1496 = vunpack.c.0.s8 %v1495
        %v1497 = vlaneseq
        %v1498 = vshrl.u32 %v1497, 7
        %v1499 = vsub.s32 %v1496, %v1498
        %v1500 = vrot.slane %v1493, %v1499
        %v1501 = vcombine.low %v1492, %v1500
        %v1503 = vunpack.c.l.s4 1934713408
        %v1504 = vunpack.c.0.s8 %v1503
        %v1505 = vlaneseq
        %v1506 = vshrl.u32 %v1505, 7
        %v1507 = vsub.s32 %v1504, %v1506
        %v1508 = vrot.slane %v1501, %v1507
        %v1509 = vcombine.high %v1508, 0
        %v1510 = vcombine.low %v1381, %v1445
        %v1512 = vunpack.c.l.s4 1983009808
        %v1513 = vunpack.c.0.s8 %v1512
        %v1514 = vlaneseq
        %v1515 = vshrl.u32 %v1514, 7
        %v1516 = vsub.s32 %v1513, %v1515
        %v1517 = vrot.slane %v1510, %v1516
        %v1518 = vcombine.low %v1413, %v1477
        %v1520 = vunpack.c.l.s4 1983009808
        %v1521 = vunpack.c.0.s8 %v1520
        %v1522 = vlaneseq
        %v1523 = vshrl.u32 %v1522, 7
        %v1524 = vsub.s32 %v1521, %v1523
        %v1525 = vrot.slane %v1518, %v1524
        %v1526 = vcombine.low %v1517, %v1525
        %v1528 = vunpack.c.l.s4 1934713408
        %v1529 = vunpack.c.0.s8 %v1528
        %v1530 = vlaneseq
        %v1531 = vshrl.u32 %v1530, 7
        %v1532 = vsub.s32 %v1529, %v1531
        %v1533 = vrot.slane %v1526, %v1532
        %v1534 = vcombine.high %v1533, 0
        %v1537 = vpack.i.b16 %v1533, %v1508
        %v1538 = vshrl.u32 %v1508, 16
        %v1539 = vshrl.u32 %v1533, 16
        %v1540 = vpack.i.b16 %v1539, %v1538
        %v1543 = vpack.i.b16 %v1534, %v1509
        %v1544 = vshrl.u32 %v1509, 16
        %v1545 = vshrl.u32 %v1534, 16
        %v1546 = vpack.i.b16 %v1545, %v1544
        %vm1547 = vcmask 64512
        %v1549 = vsel %vm1547, %v1119, 0
        %vm1551 = vcmask 1043456
        %v1553 = vsel %vm1551, %v1537, 0
        %1555 = vmatprep.subr.bf16.mxu0 0
        %1556 = vmatpush1.bf16.msra.mxu0 %v1553
        %1557 = vmatprep.subr.bf16.mxu0 0
        %1558 = vmatpush1.bf16.msra.mxu0 0
        %1559 = vmatprep.subr.bf16.mxu0 0
        %1560 = vmatpush1.bf16.msra.mxu0 0
        %1561 = vmatprep.subr.bf16.mxu0 0
        %1562 = vmatpush1.bf16.msra.mxu0 0
        %1563 = vmatprep.subr.bf16.mxu0 0
        %1564 = vmatpush1.bf16.msra.mxu0 0
        %1565 = vmatprep.subr.bf16.mxu0 0
        %1566 = vmatpush1.bf16.msra.mxu0 0
        %1567 = vmatprep.subr.bf16.mxu0 0
        %1568 = vmatpush1.bf16.msra.mxu0 0
        %1569 = vmatprep.subr.bf16.mxu0 0
        %1570 = vmatpush1.bf16.msra.mxu0 0
        %1571 = vmatprep.subr.bf16.mxu0 0
        %1572 = vmatpush1.bf16.msra.mxu0 0
        %1573 = vmatprep.subr.bf16.mxu0 0
        %1574 = vmatpush1.bf16.msra.mxu0 0
        %1575 = vmatprep.subr.bf16.mxu0 0
        %1576 = vmatpush1.bf16.msra.mxu0 0
        %1577 = vmatprep.subr.bf16.mxu0 0
        %1578 = vmatpush1.bf16.msra.mxu0 0
        %1579 = vmatprep.subr.bf16.mxu0 0
        %1580 = vmatpush1.bf16.msra.mxu0 0
        %1581 = vmatprep.subr.bf16.mxu0 0
        %1582 = vmatpush1.bf16.msra.mxu0 0
        %1583 = vmatprep.subr.bf16.mxu0 0
        %1584 = vmatpush1.bf16.msra.mxu0 0
        %1585 = vmatprep.subr.bf16.mxu0 0
        %1586 = vmatpush1.bf16.msra.mxu0 0
        %1587 = vmatprep.mubr.bf16.mxu0 0
        %1588 = vmatmul.mubr.bf16.gmra.mrb[0].mxu0 %v1549
        %v1589 = vpop.f32.mrb[0].mxu0
        %v1590 = vadd.f32 0.0, %v1589
        %v1591 = vpop.f32.mrb[0].mxu0
        %v1592 = vpop.f32.mrb[0].mxu0
        %v1593 = vpop.f32.mrb[0].mxu0
        %1594 = vdwg.mxu0
        %v1596 = vsel %vm1547, %v1122, 0
        %v1599 = vsel %vm1551, %v1540, 0
        %1601 = vmatprep.subr.bf16.mxu0 0
        %1602 = vmatpush1.bf16.msra.mxu0 %v1599
        %1603 = vmatprep.subr.bf16.mxu0 0
        %1604 = vmatpush1.bf16.msra.mxu0 0
        %1605 = vmatprep.subr.bf16.mxu0 0
        %1606 = vmatpush1.bf16.msra.mxu0 0
        %1607 = vmatprep.subr.bf16.mxu0 0
        %1608 = vmatpush1.bf16.msra.mxu0 0
        %1609 = vmatprep.subr.bf16.mxu0 0
        %1610 = vmatpush1.bf16.msra.mxu0 0
        %1611 = vmatprep.subr.bf16.mxu0 0
        %1612 = vmatpush1.bf16.msra.mxu0 0
        %1613 = vmatprep.subr.bf16.mxu0 0
        %1614 = vmatpush1.bf16.msra.mxu0 0
        %1615 = vmatprep.subr.bf16.mxu0 0
        %1616 = vmatpush1.bf16.msra.mxu0 0
        %1617 = vmatprep.subr.bf16.mxu0 0
        %1618 = vmatpush1.bf16.msra.mxu0 0
        %1619 = vmatprep.subr.bf16.mxu0 0
        %1620 = vmatpush1.bf16.msra.mxu0 0
        %1621 = vmatprep.subr.bf16.mxu0 0
        %1622 = vmatpush1.bf16.msra.mxu0 0
        %1623 = vmatprep.subr.bf16.mxu0 0
        %1624 = vmatpush1.bf16.msra.mxu0 0
        %1625 = vmatprep.subr.bf16.mxu0 0
        %1626 = vmatpush1.bf16.msra.mxu0 0
        %1627 = vmatprep.subr.bf16.mxu0 0
        %1628 = vmatpush1.bf16.msra.mxu0 0
        %1629 = vmatprep.subr.bf16.mxu0 0
        %1630 = vmatpush1.bf16.msra.mxu0 0
        %1631 = vmatprep.subr.bf16.mxu0 0
        %1632 = vmatpush1.bf16.msra.mxu0 0
        %1633 = vmatprep.mubr.bf16.mxu0 0
        %1634 = vmatmul.mubr.bf16.gmra.mrb[0].mxu0 %v1596
        %v1635 = vpop.f32.mrb[0].mxu0
        %v1636 = vadd.f32 0.0, %v1635
        %v1637 = vpop.f32.mrb[0].mxu0
        %v1638 = vpop.f32.mrb[0].mxu0
        %v1639 = vpop.f32.mrb[0].mxu0
        %1640 = vdwg.mxu0
        %v1642 = vsel %vm1547, %v1125, 0
        %v1645 = vsel %vm1551, %v1543, 0
        %1647 = vmatprep.subr.bf16.mxu0 0
        %1648 = vmatpush1.bf16.msra.mxu0 %v1645
        %1649 = vmatprep.subr.bf16.mxu0 0
        %1650 = vmatpush1.bf16.msra.mxu0 0
        %1651 = vmatprep.subr.bf16.mxu0 0
        %1652 = vmatpush1.bf16.msra.mxu0 0
        %1653 = vmatprep.subr.bf16.mxu0 0
        %1654 = vmatpush1.bf16.msra.mxu0 0
        %1655 = vmatprep.subr.bf16.mxu0 0
        %1656 = vmatpush1.bf16.msra.mxu0 0
        %1657 = vmatprep.subr.bf16.mxu0 0
        %1658 = vmatpush1.bf16.msra.mxu0 0
        %1659 = vmatprep.subr.bf16.mxu0 0
        %1660 = vmatpush1.bf16.msra.mxu0 0
        %1661 = vmatprep.subr.bf16.mxu0 0
        %1662 = vmatpush1.bf16.msra.mxu0 0
        %1663 = vmatprep.subr.bf16.mxu0 0
        %1664 = vmatpush1.bf16.msra.mxu0 0
        %1665 = vmatprep.subr.bf16.mxu0 0
        %1666 = vmatpush1.bf16.msra.mxu0 0
        %1667 = vmatprep.subr.bf16.mxu0 0
        %1668 = vmatpush1.bf16.msra.mxu0 0
        %1669 = vmatprep.subr.bf16.mxu0 0
        %1670 = vmatpush1.bf16.msra.mxu0 0
        %1671 = vmatprep.subr.bf16.mxu0 0
        %1672 = vmatpush1.bf16.msra.mxu0 0
        %1673 = vmatprep.subr.bf16.mxu0 0
        %1674 = vmatpush1.bf16.msra.mxu0 0
        %1675 = vmatprep.subr.bf16.mxu0 0
        %1676 = vmatpush1.bf16.msra.mxu0 0
        %1677 = vmatprep.subr.bf16.mxu0 0
        %1678 = vmatpush1.bf16.msra.mxu0 0
        %1679 = vmatprep.mubr.bf16.mxu0 0
        %1680 = vmatmul.mubr.bf16.gmra.mrb[0].mxu0 %v1642
        %v1681 = vpop.f32.mrb[0].mxu0
        %v1682 = vadd.f32 0.0, %v1681
        %v1683 = vpop.f32.mrb[0].mxu0
        %v1684 = vpop.f32.mrb[0].mxu0
        %v1685 = vpop.f32.mrb[0].mxu0
        %1686 = vdwg.mxu0
        %v1688 = vsel %vm1547, %v1128, 0
        %v1691 = vsel %vm1551, %v1546, 0
        %1693 = vmatprep.subr.bf16.mxu0 0
        %1694 = vmatpush1.bf16.msra.mxu0 %v1691
        %1695 = vmatprep.subr.bf16.mxu0 0
        %1696 = vmatpush1.bf16.msra.mxu0 0
        %1697 = vmatprep.subr.bf16.mxu0 0
        %1698 = vmatpush1.bf16.msra.mxu0 0
        %1699 = vmatprep.subr.bf16.mxu0 0
        %1700 = vmatpush1.bf16.msra.mxu0 0
        %1701 = vmatprep.subr.bf16.mxu0 0
        %1702 = vmatpush1.bf16.msra.mxu0 0
        %1703 = vmatprep.subr.bf16.mxu0 0
        %1704 = vmatpush1.bf16.msra.mxu0 0
        %1705 = vmatprep.subr.bf16.mxu0 0
        %1706 = vmatpush1.bf16.msra.mxu0 0
        %1707 = vmatprep.subr.bf16.mxu0 0
        %1708 = vmatpush1.bf16.msra.mxu0 0
        %1709 = vmatprep.subr.bf16.mxu0 0
        %1710 = vmatpush1.bf16.msra.mxu0 0
        %1711 = vmatprep.subr.bf16.mxu0 0
        %1712 = vmatpush1.bf16.msra.mxu0 0
        %1713 = vmatprep.subr.bf16.mxu0 0
        %1714 = vmatpush1.bf16.msra.mxu0 0
        %1715 = vmatprep.subr.bf16.mxu0 0
        %1716 = vmatpush1.bf16.msra.mxu0 0
        %1717 = vmatprep.subr.bf16.mxu0 0
        %1718 = vmatpush1.bf16.msra.mxu0 0
        %1719 = vmatprep.subr.bf16.mxu0 0
        %1720 = vmatpush1.bf16.msra.mxu0 0
        %1721 = vmatprep.subr.bf16.mxu0 0
        %1722 = vmatpush1.bf16.msra.mxu0 0
        %1723 = vmatprep.subr.bf16.mxu0 0
        %1724 = vmatpush1.bf16.msra.mxu0 0
        %1725 = vmatprep.mubr.bf16.mxu0 0
        %1726 = vmatmul.mubr.bf16.gmra.mrb[0].mxu0 %v1688
        %v1727 = vpop.f32.mrb[0].mxu0
        %v1728 = vadd.f32 0.0, %v1727
        %v1729 = vpop.f32.mrb[0].mxu0
        %v1730 = vpop.f32.mrb[0].mxu0
        %v1731 = vpop.f32.mrb[0].mxu0
        %1732 = vdwg.mxu0
        %v1733 = vmul.f32 %v1590, 0.35355338
        %v1734 = vmul.f32 %v1636, 0.35355338
        %v1735 = vmul.f32 %v1682, 0.35355338
        %v1736 = vmul.f32 %v1728, 0.35355338
        %v1737 = vadd.f32 %v1733, %v745
        %v1738 = vadd.f32 %v1734, %v745
        %v1739 = vadd.f32 %v1735, %v745
        %v1740 = vadd.f32 %v1736, %v745
        %v1741 = vsel %vm1547, %v1737, -inf
        %1742 = vmax.xlane.f32.xlu0 %v1741
        %v1743 = vpop.xlane.xlu0 %1742
        %v1744 = vsel %vm1547, %v1738, -inf
        %1745 = vmax.xlane.f32.xlu0 %v1744
        %v1746 = vpop.xlane.xlu0 %1745
        %v1747 = vsel %vm1547, %v1739, -inf
        %1748 = vmax.xlane.f32.xlu0 %v1747
        %v1749 = vpop.xlane.xlu0 %1748
        %v1750 = vsel %vm1547, %v1740, -inf
        %1751 = vmax.xlane.f32.xlu0 %v1750
        %v1752 = vpop.xlane.xlu0 %1751
        %v1753 = vsub.f32 %v1737, %v1743
        %v1754 = vsub.f32 %v1738, %v1746
        %v1755 = vsub.f32 %v1739, %v1749
        %v1756 = vsub.f32 %v1740, %v1752
        %v1757 = vmul.f32 %v1753, 1.442695
        %v1758 = vpow.pop %v1757
        %v1759 = vmul.f32 %v1754, 1.442695
        %v1760 = vpow.pop %v1759
        %v1761 = vmul.f32 %v1755, 1.442695
        %v1762 = vpow.pop %v1761
        %v1763 = vmul.f32 %v1756, 1.442695
        %v1764 = vpow.pop %v1763
        %v1765 = vsel %vm1547, %v1758, 0.0
        %1766 = vadd.xlane.f32.xlu0 %v1765
        %v1767 = vpop.xlane.xlu0 %1766
        %v1768 = vsel %vm1547, %v1760, 0.0
        %1769 = vadd.xlane.f32.xlu0 %v1768
        %v1770 = vpop.xlane.xlu0 %1769
        %v1771 = vsel %vm1547, %v1762, 0.0
        %1772 = vadd.xlane.f32.xlu0 %v1771
        %v1773 = vpop.xlane.xlu0 %1772
        %v1774 = vsel %vm1547, %v1764, 0.0
        %1775 = vadd.xlane.f32.xlu0 %v1774
        %v1776 = vpop.xlane.xlu0 %1775
        %v1777 = vrcp.pop %v1767
        %v1778 = vrcp.pop %v1770
        %v1779 = vrcp.pop %v1773
        %v1780 = vrcp.pop %v1776
        %v1781 = vmul.f32 %v1758, %v1777
        %v1782 = vmul.f32 %v1760, %v1778
        %v1783 = vmul.f32 %v1762, %v1779
        %v1784 = vmul.f32 %v1764, %v1780
        %v1785 = vpack.c.bf16 %v1781, %v1781
        %v1786 = vpack.c.bf16 %v1782, %v1782
        %v1787 = vpack.c.bf16 %v1783, %v1783
        %v1788 = vpack.c.bf16 %v1784, %v1784
        %1789 = vxpose.xlu0.c.b16.start [1/8] %v1059, 128
        %1790 = vxpose.xlu0.c.b16.cont [2/8] 0, 128
        %1791 = vxpose.xlu0.c.b16.cont [3/8] 0, 128
        %1792 = vxpose.xlu0.c.b16.cont [4/8] 0, 128
        %1793 = vxpose.xlu0.c.b16.cont [5/8] 0, 128
        %1794 = vxpose.xlu0.c.b16.cont [6/8] 0, 128
        %1795 = vxpose.xlu0.c.b16.cont [7/8] 0, 128
        %1796 = vxpose.xlu0.c.b16.end [8/8] 0, 128
        %v1797 = vpop.trf.xlu0
        %v1798 = vpop.trf.xlu0
        %v1799 = vpop.trf.xlu0
        %v1800 = vpop.trf.xlu0
        %v1801 = vpop.trf.xlu0
        %v1802 = vpop.trf.xlu0
        %v1803 = vpop.trf.xlu0
        %v1804 = vpop.trf.xlu0
        %1805 = vxpose.xlu0.c.b16.start [1/8] %v1060, 128
        %1806 = vxpose.xlu0.c.b16.cont [2/8] 0, 128
        %1807 = vxpose.xlu0.c.b16.cont [3/8] 0, 128
        %1808 = vxpose.xlu0.c.b16.cont [4/8] 0, 128
        %1809 = vxpose.xlu0.c.b16.cont [5/8] 0, 128
        %1810 = vxpose.xlu0.c.b16.cont [6/8] 0, 128
        %1811 = vxpose.xlu0.c.b16.cont [7/8] 0, 128
        %1812 = vxpose.xlu0.c.b16.end [8/8] 0, 128
        %v1813 = vpop.trf.xlu0
        %v1814 = vpop.trf.xlu0
        %v1815 = vpop.trf.xlu0
        %v1816 = vpop.trf.xlu0
        %v1817 = vpop.trf.xlu0
        %v1818 = vpop.trf.xlu0
        %v1819 = vpop.trf.xlu0
        %v1820 = vpop.trf.xlu0
        %1821 = vxpose.xlu0.c.b16.start [1/8] %v1061, 128
        %1822 = vxpose.xlu0.c.b16.cont [2/8] 0, 128
        %1823 = vxpose.xlu0.c.b16.cont [3/8] 0, 128
        %1824 = vxpose.xlu0.c.b16.cont [4/8] 0, 128
        %1825 = vxpose.xlu0.c.b16.cont [5/8] 0, 128
        %1826 = vxpose.xlu0.c.b16.cont [6/8] 0, 128
        %1827 = vxpose.xlu0.c.b16.cont [7/8] 0, 128
        %1828 = vxpose.xlu0.c.b16.end [8/8] 0, 128
        %v1829 = vpop.trf.xlu0
        %v1830 = vpop.trf.xlu0
        %v1831 = vpop.trf.xlu0
        %v1832 = vpop.trf.xlu0
        %v1833 = vpop.trf.xlu0
        %v1834 = vpop.trf.xlu0
        %v1835 = vpop.trf.xlu0
        %v1836 = vpop.trf.xlu0
        %1837 = vxpose.xlu0.c.b16.start [1/8] %v1062, 128
        %1838 = vxpose.xlu0.c.b16.cont [2/8] 0, 128
        %1839 = vxpose.xlu0.c.b16.cont [3/8] 0, 128
        %1840 = vxpose.xlu0.c.b16.cont [4/8] 0, 128
        %1841 = vxpose.xlu0.c.b16.cont [5/8] 0, 128
        %1842 = vxpose.xlu0.c.b16.cont [6/8] 0, 128
        %1843 = vxpose.xlu0.c.b16.cont [7/8] 0, 128
        %1844 = vxpose.xlu0.c.b16.end [8/8] 0, 128
        %v1845 = vpop.trf.xlu0
        %v1846 = vpop.trf.xlu0
        %v1847 = vpop.trf.xlu0
        %v1848 = vpop.trf.xlu0
        %v1849 = vpop.trf.xlu0
        %v1850 = vpop.trf.xlu0
        %v1851 = vpop.trf.xlu0
        %v1852 = vpop.trf.xlu0
        %1853 = vxpose.xlu0.c.b16.start [1/8] %v1063, 128
        %1854 = vxpose.xlu0.c.b16.cont [2/8] 0, 128
        %1855 = vxpose.xlu0.c.b16.cont [3/8] 0, 128
        %1856 = vxpose.xlu0.c.b16.cont [4/8] 0, 128
        %1857 = vxpose.xlu0.c.b16.cont [5/8] 0, 128
        %1858 = vxpose.xlu0.c.b16.cont [6/8] 0, 128
        %1859 = vxpose.xlu0.c.b16.cont [7/8] 0, 128
        %1860 = vxpose.xlu0.c.b16.end [8/8] 0, 128
        %v1861 = vpop.trf.xlu0
        %v1862 = vpop.trf.xlu0
        %v1863 = vpop.trf.xlu0
        %v1864 = vpop.trf.xlu0
        %v1865 = vpop.trf.xlu0
        %v1866 = vpop.trf.xlu0
        %v1867 = vpop.trf.xlu0
        %v1868 = vpop.trf.xlu0
        %1869 = vxpose.xlu0.c.b16.start [1/8] %v1064, 128
        %1870 = vxpose.xlu0.c.b16.cont [2/8] 0, 128
        %1871 = vxpose.xlu0.c.b16.cont [3/8] 0, 128
        %1872 = vxpose.xlu0.c.b16.cont [4/8] 0, 128
        %1873 = vxpose.xlu0.c.b16.cont [5/8] 0, 128
        %1874 = vxpose.xlu0.c.b16.cont [6/8] 0, 128
        %1875 = vxpose.xlu0.c.b16.cont [7/8] 0, 128
        %1876 = vxpose.xlu0.c.b16.end [8/8] 0, 128
        %v1877 = vpop.trf.xlu0
        %v1878 = vpop.trf.xlu0
        %v1879 = vpop.trf.xlu0
        %v1880 = vpop.trf.xlu0
        %v1881 = vpop.trf.xlu0
        %v1882 = vpop.trf.xlu0
        %v1883 = vpop.trf.xlu0
        %v1884 = vpop.trf.xlu0
        %1885 = vxpose.xlu0.c.b16.start [1/8] %v1065, 128
        %1886 = vxpose.xlu0.c.b16.cont [2/8] 0, 128
        %1887 = vxpose.xlu0.c.b16.cont [3/8] 0, 128
        %1888 = vxpose.xlu0.c.b16.cont [4/8] 0, 128
        %1889 = vxpose.xlu0.c.b16.cont [5/8] 0, 128
        %1890 = vxpose.xlu0.c.b16.cont [6/8] 0, 128
        %1891 = vxpose.xlu0.c.b16.cont [7/8] 0, 128
        %1892 = vxpose.xlu0.c.b16.end [8/8] 0, 128
        %v1893 = vpop.trf.xlu0
        %v1894 = vpop.trf.xlu0
        %v1895 = vpop.trf.xlu0
        %v1896 = vpop.trf.xlu0
        %v1897 = vpop.trf.xlu0
        %v1898 = vpop.trf.xlu0
        %v1899 = vpop.trf.xlu0
        %v1900 = vpop.trf.xlu0
        %1901 = vxpose.xlu0.c.b16.start [1/8] %v1066, 128
        %1902 = vxpose.xlu0.c.b16.cont [2/8] 0, 128
        %1903 = vxpose.xlu0.c.b16.cont [3/8] 0, 128
        %1904 = vxpose.xlu0.c.b16.cont [4/8] 0, 128
        %1905 = vxpose.xlu0.c.b16.cont [5/8] 0, 128
        %1906 = vxpose.xlu0.c.b16.cont [6/8] 0, 128
        %1907 = vxpose.xlu0.c.b16.cont [7/8] 0, 128
        %1908 = vxpose.xlu0.c.b16.end [8/8] 0, 128
        %v1909 = vpop.trf.xlu0
        %v1910 = vpop.trf.xlu0
        %v1911 = vpop.trf.xlu0
        %v1912 = vpop.trf.xlu0
        %v1913 = vpop.trf.xlu0
        %v1914 = vpop.trf.xlu0
        %v1915 = vpop.trf.xlu0
        %v1916 = vpop.trf.xlu0
        %v1917 = vcombine.low %v1797, %v1861
        %v1919 = vunpack.c.l.s4 1983009808
        %v1920 = vunpack.c.0.s8 %v1919
        %v1921 = vlaneseq
        %v1922 = vshrl.u32 %v1921, 7
        %v1923 = vsub.s32 %v1920, %v1922
        %v1924 = vrot.slane %v1917, %v1923
        %v1925 = vcombine.low %v1829, %v1893
        %v1927 = vunpack.c.l.s4 1983009808
        %v1928 = vunpack.c.0.s8 %v1927
        %v1929 = vlaneseq
        %v1930 = vshrl.u32 %v1929, 7
        %v1931 = vsub.s32 %v1928, %v1930
        %v1932 = vrot.slane %v1925, %v1931
        %v1933 = vcombine.low %v1924, %v1932
        %v1934 = vcombine.high %v1924, %v1932
        %v1936 = vunpack.c.l.s4 1934713408
        %v1937 = vunpack.c.0.s8 %v1936
        %v1938 = vlaneseq
        %v1939 = vshrl.u32 %v1938, 7
        %v1940 = vsub.s32 %v1937, %v1939
        %v1941 = vrot.slane %v1933, %v1940
        %v1943 = vunpack.c.l.s4 1934713408
        %v1944 = vunpack.c.0.s8 %v1943
        %v1945 = vlaneseq
        %v1946 = vshrl.u32 %v1945, 7
        %v1947 = vsub.s32 %v1944, %v1946
        %v1948 = vrot.slane %v1934, %v1947
        %v1949 = vcombine.high %v1941, 0
        %v1950 = vcombine.high %v1948, 0
        %v1951 = vcombine.low %v1813, %v1877
        %v1953 = vunpack.c.l.s4 1983009808
        %v1954 = vunpack.c.0.s8 %v1953
        %v1955 = vlaneseq
        %v1956 = vshrl.u32 %v1955, 7
        %v1957 = vsub.s32 %v1954, %v1956
        %v1958 = vrot.slane %v1951, %v1957
        %v1959 = vcombine.low %v1845, %v1909
        %v1961 = vunpack.c.l.s4 1983009808
        %v1962 = vunpack.c.0.s8 %v1961
        %v1963 = vlaneseq
        %v1964 = vshrl.u32 %v1963, 7
        %v1965 = vsub.s32 %v1962, %v1964
        %v1966 = vrot.slane %v1959, %v1965
        %v1967 = vcombine.low %v1958, %v1966
        %v1968 = vcombine.high %v1958, %v1966
        %v1970 = vunpack.c.l.s4 1934713408
        %v1971 = vunpack.c.0.s8 %v1970
        %v1972 = vlaneseq
        %v1973 = vshrl.u32 %v1972, 7
        %v1974 = vsub.s32 %v1971, %v1973
        %v1975 = vrot.slane %v1967, %v1974
        %v1977 = vunpack.c.l.s4 1934713408
        %v1978 = vunpack.c.0.s8 %v1977
        %v1979 = vlaneseq
        %v1980 = vshrl.u32 %v1979, 7
        %v1981 = vsub.s32 %v1978, %v1980
        %v1982 = vrot.slane %v1968, %v1981
        %v1983 = vcombine.high %v1975, 0
        %v1984 = vcombine.high %v1982, 0
        %v1987 = vpack.i.b16 %v1975, %v1941
        %v1989 = vshrl.u32 %v1941, 16
        %v1990 = vshrl.u32 %v1975, 16
        %v1991 = vpack.i.b16 %v1990, %v1989
        %v1995 = vpack.i.b16 %v1983, %v1949
        %v1997 = vshrl.u32 %v1949, 16
        %v1998 = vshrl.u32 %v1983, 16
        %v1999 = vpack.i.b16 %v1998, %v1997
        %v2003 = vpack.i.b16 %v1982, %v1948
        %v2005 = vshrl.u32 %v1948, 16
        %v2006 = vshrl.u32 %v1982, 16
        %v2007 = vpack.i.b16 %v2006, %v2005
        %v2011 = vpack.i.b16 %v1984, %v1950
        %v2013 = vshrl.u32 %v1950, 16
        %v2014 = vshrl.u32 %v1984, 16
        %v2015 = vpack.i.b16 %v2014, %v2013
        %2017 = vxpose.xlu0.c.b16.start [1/8] %v1987, 128
        %2018 = vxpose.xlu0.c.b16.cont [2/8] 0, 128
        %2019 = vxpose.xlu0.c.b16.cont [3/8] 0, 128
        %2020 = vxpose.xlu0.c.b16.cont [4/8] 0, 128
        %2021 = vxpose.xlu0.c.b16.cont [5/8] 0, 128
        %2022 = vxpose.xlu0.c.b16.cont [6/8] 0, 128
        %2023 = vxpose.xlu0.c.b16.cont [7/8] 0, 128
        %2024 = vxpose.xlu0.c.b16.end [8/8] 0, 128
        %v2025 = vpop.trf.xlu0
        %v2026 = vpop.trf.xlu0
        %v2027 = vpop.trf.xlu0
        %v2028 = vpop.trf.xlu0
        %v2029 = vpop.trf.xlu0
        %v2030 = vpop.trf.xlu0
        %v2031 = vpop.trf.xlu0
        %v2032 = vpop.trf.xlu0
        %2033 = vxpose.xlu0.c.b16.start [1/8] %v1991, 128
        %2034 = vxpose.xlu0.c.b16.cont [2/8] 0, 128
        %2035 = vxpose.xlu0.c.b16.cont [3/8] 0, 128
        %2036 = vxpose.xlu0.c.b16.cont [4/8] 0, 128
        %2037 = vxpose.xlu0.c.b16.cont [5/8] 0, 128
        %2038 = vxpose.xlu0.c.b16.cont [6/8] 0, 128
        %2039 = vxpose.xlu0.c.b16.cont [7/8] 0, 128
        %2040 = vxpose.xlu0.c.b16.end [8/8] 0, 128
        %v2041 = vpop.trf.xlu0
        %v2042 = vpop.trf.xlu0
        %v2043 = vpop.trf.xlu0
        %v2044 = vpop.trf.xlu0
        %v2045 = vpop.trf.xlu0
        %v2046 = vpop.trf.xlu0
        %v2047 = vpop.trf.xlu0
        %v2048 = vpop.trf.xlu0
        %2049 = vxpose.xlu0.c.b16.start [1/8] %v1995, 128
        %2050 = vxpose.xlu0.c.b16.cont [2/8] 0, 128
        %2051 = vxpose.xlu0.c.b16.cont [3/8] 0, 128
        %2052 = vxpose.xlu0.c.b16.cont [4/8] 0, 128
        %2053 = vxpose.xlu0.c.b16.cont [5/8] 0, 128
        %2054 = vxpose.xlu0.c.b16.cont [6/8] 0, 128
        %2055 = vxpose.xlu0.c.b16.cont [7/8] 0, 128
        %2056 = vxpose.xlu0.c.b16.end [8/8] 0, 128
        %v2057 = vpop.trf.xlu0
        %v2058 = vpop.trf.xlu0
        %v2059 = vpop.trf.xlu0
        %v2060 = vpop.trf.xlu0
        %v2061 = vpop.trf.xlu0
        %v2062 = vpop.trf.xlu0
        %v2063 = vpop.trf.xlu0
        %v2064 = vpop.trf.xlu0
        %2065 = vxpose.xlu0.c.b16.start [1/8] %v1999, 128
        %2066 = vxpose.xlu0.c.b16.cont [2/8] 0, 128
        %2067 = vxpose.xlu0.c.b16.cont [3/8] 0, 128
        %2068 = vxpose.xlu0.c.b16.cont [4/8] 0, 128
        %2069 = vxpose.xlu0.c.b16.cont [5/8] 0, 128
        %2070 = vxpose.xlu0.c.b16.cont [6/8] 0, 128
        %2071 = vxpose.xlu0.c.b16.cont [7/8] 0, 128
        %2072 = vxpose.xlu0.c.b16.end [8/8] 0, 128
        %v2073 = vpop.trf.xlu0
        %v2074 = vpop.trf.xlu0
        %v2075 = vpop.trf.xlu0
        %v2076 = vpop.trf.xlu0
        %v2077 = vpop.trf.xlu0
        %v2078 = vpop.trf.xlu0
        %v2079 = vpop.trf.xlu0
        %v2080 = vpop.trf.xlu0
        %2081 = vxpose.xlu0.c.b16.start [1/8] %v2003, 128
        %2082 = vxpose.xlu0.c.b16.cont [2/8] 0, 128
        %2083 = vxpose.xlu0.c.b16.cont [3/8] 0, 128
        %2084 = vxpose.xlu0.c.b16.cont [4/8] 0, 128
        %2085 = vxpose.xlu0.c.b16.cont [5/8] 0, 128
        %2086 = vxpose.xlu0.c.b16.cont [6/8] 0, 128
        %2087 = vxpose.xlu0.c.b16.cont [7/8] 0, 128
        %2088 = vxpose.xlu0.c.b16.end [8/8] 0, 128
        %v2089 = vpop.trf.xlu0
        %v2090 = vpop.trf.xlu0
        %v2091 = vpop.trf.xlu0
        %v2092 = vpop.trf.xlu0
        %v2093 = vpop.trf.xlu0
        %v2094 = vpop.trf.xlu0
        %v2095 = vpop.trf.xlu0
        %v2096 = vpop.trf.xlu0
        %2097 = vxpose.xlu0.c.b16.start [1/8] %v2007, 128
        %2098 = vxpose.xlu0.c.b16.cont [2/8] 0, 128
        %2099 = vxpose.xlu0.c.b16.cont [3/8] 0, 128
        %2100 = vxpose.xlu0.c.b16.cont [4/8] 0, 128
        %2101 = vxpose.xlu0.c.b16.cont [5/8] 0, 128
        %2102 = vxpose.xlu0.c.b16.cont [6/8] 0, 128
        %2103 = vxpose.xlu0.c.b16.cont [7/8] 0, 128
        %2104 = vxpose.xlu0.c.b16.end [8/8] 0, 128
        %v2105 = vpop.trf.xlu0
        %v2106 = vpop.trf.xlu0
        %v2107 = vpop.trf.xlu0
        %v2108 = vpop.trf.xlu0
        %v2109 = vpop.trf.xlu0
        %v2110 = vpop.trf.xlu0
        %v2111 = vpop.trf.xlu0
        %v2112 = vpop.trf.xlu0
        %2113 = vxpose.xlu0.c.b16.start [1/8] %v2011, 128
        %2114 = vxpose.xlu0.c.b16.cont [2/8] 0, 128
        %2115 = vxpose.xlu0.c.b16.cont [3/8] 0, 128
        %2116 = vxpose.xlu0.c.b16.cont [4/8] 0, 128
        %2117 = vxpose.xlu0.c.b16.cont [5/8] 0, 128
        %2118 = vxpose.xlu0.c.b16.cont [6/8] 0, 128
        %2119 = vxpose.xlu0.c.b16.cont [7/8] 0, 128
        %2120 = vxpose.xlu0.c.b16.end [8/8] 0, 128
        %v2121 = vpop.trf.xlu0
        %v2122 = vpop.trf.xlu0
        %v2123 = vpop.trf.xlu0
        %v2124 = vpop.trf.xlu0
        %v2125 = vpop.trf.xlu0
        %v2126 = vpop.trf.xlu0
        %v2127 = vpop.trf.xlu0
        %v2128 = vpop.trf.xlu0
        %2129 = vxpose.xlu0.c.b16.start [1/8] %v2015, 128
        %2130 = vxpose.xlu0.c.b16.cont [2/8] 0, 128
        %2131 = vxpose.xlu0.c.b16.cont [3/8] 0, 128
        %2132 = vxpose.xlu0.c.b16.cont [4/8] 0, 128
        %2133 = vxpose.xlu0.c.b16.cont [5/8] 0, 128
        %2134 = vxpose.xlu0.c.b16.cont [6/8] 0, 128
        %2135 = vxpose.xlu0.c.b16.cont [7/8] 0, 128
        %2136 = vxpose.xlu0.c.b16.end [8/8] 0, 128
        %v2137 = vpop.trf.xlu0
        %v2138 = vpop.trf.xlu0
        %v2139 = vpop.trf.xlu0
        %v2140 = vpop.trf.xlu0
        %v2141 = vpop.trf.xlu0
        %v2142 = vpop.trf.xlu0
        %v2143 = vpop.trf.xlu0
        %v2144 = vpop.trf.xlu0
        %v2145 = vcombine.low %v2025, %v2089
        %v2147 = vunpack.c.l.s4 1983009808
        %v2148 = vunpack.c.0.s8 %v2147
        %v2149 = vlaneseq
        %v2150 = vshrl.u32 %v2149, 7
        %v2151 = vsub.s32 %v2148, %v2150
        %v2152 = vrot.slane %v2145, %v2151
        %v2153 = vcombine.low %v2057, %v2121
        %v2155 = vunpack.c.l.s4 1983009808
        %v2156 = vunpack.c.0.s8 %v2155
        %v2157 = vlaneseq
        %v2158 = vshrl.u32 %v2157, 7
        %v2159 = vsub.s32 %v2156, %v2158
        %v2160 = vrot.slane %v2153, %v2159
        %v2161 = vcombine.low %v2152, %v2160
        %v2163 = vunpack.c.l.s4 1934713408
        %v2164 = vunpack.c.0.s8 %v2163
        %v2165 = vlaneseq
        %v2166 = vshrl.u32 %v2165, 7
        %v2167 = vsub.s32 %v2164, %v2166
        %v2168 = vrot.slane %v2161, %v2167
        %v2169 = vcombine.high %v2168, 0
        %v2170 = vcombine.low %v2041, %v2105
        %v2172 = vunpack.c.l.s4 1983009808
        %v2173 = vunpack.c.0.s8 %v2172
        %v2174 = vlaneseq
        %v2175 = vshrl.u32 %v2174, 7
        %v2176 = vsub.s32 %v2173, %v2175
        %v2177 = vrot.slane %v2170, %v2176
        %v2178 = vcombine.low %v2073, %v2137
        %v2180 = vunpack.c.l.s4 1983009808
        %v2181 = vunpack.c.0.s8 %v2180
        %v2182 = vlaneseq
        %v2183 = vshrl.u32 %v2182, 7
        %v2184 = vsub.s32 %v2181, %v2183
        %v2185 = vrot.slane %v2178, %v2184
        %v2186 = vcombine.low %v2177, %v2185
        %v2188 = vunpack.c.l.s4 1934713408
        %v2189 = vunpack.c.0.s8 %v2188
        %v2190 = vlaneseq
        %v2191 = vshrl.u32 %v2190, 7
        %v2192 = vsub.s32 %v2189, %v2191
        %v2193 = vrot.slane %v2186, %v2192
        %v2194 = vcombine.high %v2193, 0
        %v2197 = vpack.i.b16 %v2193, %v2168
        %v2198 = vshrl.u32 %v2168, 16
        %v2199 = vshrl.u32 %v2193, 16
        %v2200 = vpack.i.b16 %v2199, %v2198
        %v2203 = vpack.i.b16 %v2194, %v2169
        %v2204 = vshrl.u32 %v2169, 16
        %v2205 = vshrl.u32 %v2194, 16
        %v2206 = vpack.i.b16 %v2205, %v2204
        %v2208 = vsel %vm1547, %v2197, 0
        %v2211 = vsel %vm1547, %v1785, 0
        %2213 = vmatprep.subr.bf16.mxu0 0
        %2214 = vmatpush1.bf16.xpose.msra.mxu0 %v2211
        %2215 = vmatprep.subr.bf16.mxu0 0
        %2216 = vmatpush1.bf16.xpose.msra.mxu0 0
        %2217 = vmatprep.subr.bf16.mxu0 0
        %2218 = vmatpush1.bf16.xpose.msra.mxu0 0
        %2219 = vmatprep.subr.bf16.mxu0 0
        %2220 = vmatpush1.bf16.xpose.msra.mxu0 0
        %2221 = vmatprep.subr.bf16.mxu0 0
        %2222 = vmatpush1.bf16.xpose.msra.mxu0 0
        %2223 = vmatprep.subr.bf16.mxu0 0
        %2224 = vmatpush1.bf16.xpose.msra.mxu0 0
        %2225 = vmatprep.subr.bf16.mxu0 0
        %2226 = vmatpush1.bf16.xpose.msra.mxu0 0
        %2227 = vmatprep.subr.bf16.mxu0 0
        %2228 = vmatpush1.bf16.xpose.msra.mxu0 0
        %2229 = vmatprep.subr.bf16.mxu0 0
        %2230 = vmatpush1.bf16.xpose.msra.mxu0 0
        %2231 = vmatprep.subr.bf16.mxu0 0
        %2232 = vmatpush1.bf16.xpose.msra.mxu0 0
        %2233 = vmatprep.subr.bf16.mxu0 0
        %2234 = vmatpush1.bf16.xpose.msra.mxu0 0
        %2235 = vmatprep.subr.bf16.mxu0 0
        %2236 = vmatpush1.bf16.xpose.msra.mxu0 0
        %2237 = vmatprep.subr.bf16.mxu0 0
        %2238 = vmatpush1.bf16.xpose.msra.mxu0 0
        %2239 = vmatprep.subr.bf16.mxu0 0
        %2240 = vmatpush1.bf16.xpose.msra.mxu0 0
        %2241 = vmatprep.subr.bf16.mxu0 0
        %2242 = vmatpush1.bf16.xpose.msra.mxu0 0
        %2243 = vmatprep.subr.bf16.mxu0 0
        %2244 = vmatpush1.bf16.xpose.msra.mxu0 0
        %2245 = vmatprep.mubr.bf16.mxu0 0
        %2246 = vmatmul.mubr.bf16.gmra.mrb[0].mxu0 %v2208
        %v2247 = vpop.f32.mrb[0].mxu0
        %v2248 = vadd.f32 0.0, %v2247
        %v2249 = vpop.f32.mrb[0].mxu0
        %v2250 = vpop.f32.mrb[0].mxu0
        %v2251 = vpop.f32.mrb[0].mxu0
        %2252 = vdwg.mxu0
        %v2254 = vsel %vm1547, %v2200, 0
        %v2257 = vsel %vm1547, %v1786, 0
        %2259 = vmatprep.subr.bf16.mxu0 0
        %2260 = vmatpush1.bf16.xpose.msra.mxu0 %v2257
        %2261 = vmatprep.subr.bf16.mxu0 0
        %2262 = vmatpush1.bf16.xpose.msra.mxu0 0
        %2263 = vmatprep.subr.bf16.mxu0 0
        %2264 = vmatpush1.bf16.xpose.msra.mxu0 0
        %2265 = vmatprep.subr.bf16.mxu0 0
        %2266 = vmatpush1.bf16.xpose.msra.mxu0 0
        %2267 = vmatprep.subr.bf16.mxu0 0
        %2268 = vmatpush1.bf16.xpose.msra.mxu0 0
        %2269 = vmatprep.subr.bf16.mxu0 0
        %2270 = vmatpush1.bf16.xpose.msra.mxu0 0
        %2271 = vmatprep.subr.bf16.mxu0 0
        %2272 = vmatpush1.bf16.xpose.msra.mxu0 0
        %2273 = vmatprep.subr.bf16.mxu0 0
        %2274 = vmatpush1.bf16.xpose.msra.mxu0 0
        %2275 = vmatprep.subr.bf16.mxu0 0
        %2276 = vmatpush1.bf16.xpose.msra.mxu0 0
        %2277 = vmatprep.subr.bf16.mxu0 0
        %2278 = vmatpush1.bf16.xpose.msra.mxu0 0
        %2279 = vmatprep.subr.bf16.mxu0 0
        %2280 = vmatpush1.bf16.xpose.msra.mxu0 0
        %2281 = vmatprep.subr.bf16.mxu0 0
        %2282 = vmatpush1.bf16.xpose.msra.mxu0 0
        %2283 = vmatprep.subr.bf16.mxu0 0
        %2284 = vmatpush1.bf16.xpose.msra.mxu0 0
        %2285 = vmatprep.subr.bf16.mxu0 0
        %2286 = vmatpush1.bf16.xpose.msra.mxu0 0
        %2287 = vmatprep.subr.bf16.mxu0 0
        %2288 = vmatpush1.bf16.xpose.msra.mxu0 0
        %2289 = vmatprep.subr.bf16.mxu0 0
        %2290 = vmatpush1.bf16.xpose.msra.mxu0 0
        %2291 = vmatprep.mubr.bf16.mxu0 0
        %2292 = vmatmul.mubr.bf16.gmra.mrb[0].mxu0 %v2254
        %v2293 = vpop.f32.mrb[0].mxu0
        %v2294 = vadd.f32 0.0, %v2293
        %v2295 = vpop.f32.mrb[0].mxu0
        %v2296 = vpop.f32.mrb[0].mxu0
        %v2297 = vpop.f32.mrb[0].mxu0
        %2298 = vdwg.mxu0
        %v2300 = vsel %vm1547, %v2203, 0
        %v2303 = vsel %vm1547, %v1787, 0
        %2305 = vmatprep.subr.bf16.mxu0 0
        %2306 = vmatpush1.bf16.xpose.msra.mxu0 %v2303
        %2307 = vmatprep.subr.bf16.mxu0 0
        %2308 = vmatpush1.bf16.xpose.msra.mxu0 0
        %2309 = vmatprep.subr.bf16.mxu0 0
        %2310 = vmatpush1.bf16.xpose.msra.mxu0 0
        %2311 = vmatprep.subr.bf16.mxu0 0
        %2312 = vmatpush1.bf16.xpose.msra.mxu0 0
        %2313 = vmatprep.subr.bf16.mxu0 0
        %2314 = vmatpush1.bf16.xpose.msra.mxu0 0
        %2315 = vmatprep.subr.bf16.mxu0 0
        %2316 = vmatpush1.bf16.xpose.msra.mxu0 0
        %2317 = vmatprep.subr.bf16.mxu0 0
        %2318 = vmatpush1.bf16.xpose.msra.mxu0 0
        %2319 = vmatprep.subr.bf16.mxu0 0
        %2320 = vmatpush1.bf16.xpose.msra.mxu0 0
        %2321 = vmatprep.subr.bf16.mxu0 0
        %2322 = vmatpush1.bf16.xpose.msra.mxu0 0
        %2323 = vmatprep.subr.bf16.mxu0 0
        %2324 = vmatpush1.bf16.xpose.msra.mxu0 0
        %2325 = vmatprep.subr.bf16.mxu0 0
        %2326 = vmatpush1.bf16.xpose.msra.mxu0 0
        %2327 = vmatprep.subr.bf16.mxu0 0
        %2328 = vmatpush1.bf16.xpose.msra.mxu0 0
        %2329 = vmatprep.subr.bf16.mxu0 0
        %2330 = vmatpush1.bf16.xpose.msra.mxu0 0
        %2331 = vmatprep.subr.bf16.mxu0 0
        %2332 = vmatpush1.bf16.xpose.msra.mxu0 0
        %2333 = vmatprep.subr.bf16.mxu0 0
        %2334 = vmatpush1.bf16.xpose.msra.mxu0 0
        %2335 = vmatprep.subr.bf16.mxu0 0
        %2336 = vmatpush1.bf16.xpose.msra.mxu0 0
        %2337 = vmatprep.mubr.bf16.mxu0 0
        %2338 = vmatmul.mubr.bf16.gmra.mrb[0].mxu0 %v2300
        %v2339 = vpop.f32.mrb[0].mxu0
        %v2340 = vadd.f32 0.0, %v2339
        %v2341 = vpop.f32.mrb[0].mxu0
        %v2342 = vpop.f32.mrb[0].mxu0
        %v2343 = vpop.f32.mrb[0].mxu0
        %2344 = vdwg.mxu0
        %v2346 = vsel %vm1547, %v2206, 0
        %v2349 = vsel %vm1547, %v1788, 0
        %2351 = vmatprep.subr.bf16.mxu0 0
        %2352 = vmatpush1.bf16.xpose.msra.mxu0 %v2349
        %2353 = vmatprep.subr.bf16.mxu0 0
        %2354 = vmatpush1.bf16.xpose.msra.mxu0 0
        %2355 = vmatprep.subr.bf16.mxu0 0
        %2356 = vmatpush1.bf16.xpose.msra.mxu0 0
        %2357 = vmatprep.subr.bf16.mxu0 0
        %2358 = vmatpush1.bf16.xpose.msra.mxu0 0
        %2359 = vmatprep.subr.bf16.mxu0 0
        %2360 = vmatpush1.bf16.xpose.msra.mxu0 0
        %2361 = vmatprep.subr.bf16.mxu0 0
        %2362 = vmatpush1.bf16.xpose.msra.mxu0 0
        %2363 = vmatprep.subr.bf16.mxu0 0
        %2364 = vmatpush1.bf16.xpose.msra.mxu0 0
        %2365 = vmatprep.subr.bf16.mxu0 0
        %2366 = vmatpush1.bf16.xpose.msra.mxu0 0
        %2367 = vmatprep.subr.bf16.mxu0 0
        %2368 = vmatpush1.bf16.xpose.msra.mxu0 0
        %2369 = vmatprep.subr.bf16.mxu0 0
        %2370 = vmatpush1.bf16.xpose.msra.mxu0 0
        %2371 = vmatprep.subr.bf16.mxu0 0
        %2372 = vmatpush1.bf16.xpose.msra.mxu0 0
        %2373 = vmatprep.subr.bf16.mxu0 0
        %2374 = vmatpush1.bf16.xpose.msra.mxu0 0
        %2375 = vmatprep.subr.bf16.mxu0 0
        %2376 = vmatpush1.bf16.xpose.msra.mxu0 0
        %2377 = vmatprep.subr.bf16.mxu0 0
        %2378 = vmatpush1.bf16.xpose.msra.mxu0 0
        %2379 = vmatprep.subr.bf16.mxu0 0
        %2380 = vmatpush1.bf16.xpose.msra.mxu0 0
        %2381 = vmatprep.subr.bf16.mxu0 0
        %2382 = vmatpush1.bf16.xpose.msra.mxu0 0
        %2383 = vmatprep.mubr.bf16.mxu0 0
        %2384 = vmatmul.mubr.bf16.gmra.mrb[0].mxu0 %v2346
        %v2385 = vpop.f32.mrb[0].mxu0
        %v2386 = vadd.f32 0.0, %v2385
        %v2387 = vpop.f32.mrb[0].mxu0
        %v2388 = vpop.f32.mrb[0].mxu0
        %v2389 = vpop.f32.mrb[0].mxu0
        %2390 = vdwg.mxu0
        %2391 = vxpose.xlu0.b32.start [1/16] %v2248, 128
        %2392 = vxpose.xlu0.b32.cont [2/16] 0.0, 128
        %2393 = vxpose.xlu0.b32.cont [3/16] 0.0, 128
        %2394 = vxpose.xlu0.b32.cont [4/16] 0.0, 128
        %2395 = vxpose.xlu0.b32.cont [5/16] 0.0, 128
        %2396 = vxpose.xlu0.b32.cont [6/16] 0.0, 128
        %2397 = vxpose.xlu0.b32.cont [7/16] 0.0, 128
        %2398 = vxpose.xlu0.b32.cont [8/16] 0.0, 128
        %2399 = vxpose.xlu0.b32.cont [9/16] 0.0, 128
        %2400 = vxpose.xlu0.b32.cont [10/16] 0.0, 128
        %2401 = vxpose.xlu0.b32.cont [11/16] 0.0, 128
        %2402 = vxpose.xlu0.b32.cont [12/16] 0.0, 128
        %2403 = vxpose.xlu0.b32.cont [13/16] 0.0, 128
        %2404 = vxpose.xlu0.b32.cont [14/16] 0.0, 128
        %2405 = vxpose.xlu0.b32.cont [15/16] 0.0, 128
        %2406 = vxpose.xlu0.b32.end [16/16] 0.0, 128
        %v2407 = vpop.trf.xlu0
        %v2408 = vpop.trf.xlu0
        %v2409 = vpop.trf.xlu0
        %v2410 = vpop.trf.xlu0
        %v2411 = vpop.trf.xlu0
        %v2412 = vpop.trf.xlu0
        %v2413 = vpop.trf.xlu0
        %v2414 = vpop.trf.xlu0
        %v2415 = vpop.trf.xlu0
        %v2416 = vpop.trf.xlu0
        %v2417 = vpop.trf.xlu0
        %v2418 = vpop.trf.xlu0
        %v2419 = vpop.trf.xlu0
        %v2420 = vpop.trf.xlu0
        %v2421 = vpop.trf.xlu0
        %v2422 = vpop.trf.xlu0
        %2423 = vxpose.xlu0.b32.start [1/16] %v2294, 128
        %2424 = vxpose.xlu0.b32.cont [2/16] 0.0, 128
        %2425 = vxpose.xlu0.b32.cont [3/16] 0.0, 128
        %2426 = vxpose.xlu0.b32.cont [4/16] 0.0, 128
        %2427 = vxpose.xlu0.b32.cont [5/16] 0.0, 128
        %2428 = vxpose.xlu0.b32.cont [6/16] 0.0, 128
        %2429 = vxpose.xlu0.b32.cont [7/16] 0.0, 128
        %2430 = vxpose.xlu0.b32.cont [8/16] 0.0, 128
        %2431 = vxpose.xlu0.b32.cont [9/16] 0.0, 128
        %2432 = vxpose.xlu0.b32.cont [10/16] 0.0, 128
        %2433 = vxpose.xlu0.b32.cont [11/16] 0.0, 128
        %2434 = vxpose.xlu0.b32.cont [12/16] 0.0, 128
        %2435 = vxpose.xlu0.b32.cont [13/16] 0.0, 128
        %2436 = vxpose.xlu0.b32.cont [14/16] 0.0, 128
        %2437 = vxpose.xlu0.b32.cont [15/16] 0.0, 128
        %2438 = vxpose.xlu0.b32.end [16/16] 0.0, 128
        %v2439 = vpop.trf.xlu0
        %v2440 = vpop.trf.xlu0
        %v2441 = vpop.trf.xlu0
        %v2442 = vpop.trf.xlu0
        %v2443 = vpop.trf.xlu0
        %v2444 = vpop.trf.xlu0
        %v2445 = vpop.trf.xlu0
        %v2446 = vpop.trf.xlu0
        %v2447 = vpop.trf.xlu0
        %v2448 = vpop.trf.xlu0
        %v2449 = vpop.trf.xlu0
        %v2450 = vpop.trf.xlu0
        %v2451 = vpop.trf.xlu0
        %v2452 = vpop.trf.xlu0
        %v2453 = vpop.trf.xlu0
        %v2454 = vpop.trf.xlu0
        %2455 = vxpose.xlu0.b32.start [1/16] %v2340, 128
        %2456 = vxpose.xlu0.b32.cont [2/16] 0.0, 128
        %2457 = vxpose.xlu0.b32.cont [3/16] 0.0, 128
        %2458 = vxpose.xlu0.b32.cont [4/16] 0.0, 128
        %2459 = vxpose.xlu0.b32.cont [5/16] 0.0, 128
        %2460 = vxpose.xlu0.b32.cont [6/16] 0.0, 128
        %2461 = vxpose.xlu0.b32.cont [7/16] 0.0, 128
        %2462 = vxpose.xlu0.b32.cont [8/16] 0.0, 128
        %2463 = vxpose.xlu0.b32.cont [9/16] 0.0, 128
        %2464 = vxpose.xlu0.b32.cont [10/16] 0.0, 128
        %2465 = vxpose.xlu0.b32.cont [11/16] 0.0, 128
        %2466 = vxpose.xlu0.b32.cont [12/16] 0.0, 128
        %2467 = vxpose.xlu0.b32.cont [13/16] 0.0, 128
        %2468 = vxpose.xlu0.b32.cont [14/16] 0.0, 128
        %2469 = vxpose.xlu0.b32.cont [15/16] 0.0, 128
        %2470 = vxpose.xlu0.b32.end [16/16] 0.0, 128
        %v2471 = vpop.trf.xlu0
        %v2472 = vpop.trf.xlu0
        %v2473 = vpop.trf.xlu0
        %v2474 = vpop.trf.xlu0
        %v2475 = vpop.trf.xlu0
        %v2476 = vpop.trf.xlu0
        %v2477 = vpop.trf.xlu0
        %v2478 = vpop.trf.xlu0
        %v2479 = vpop.trf.xlu0
        %v2480 = vpop.trf.xlu0
        %v2481 = vpop.trf.xlu0
        %v2482 = vpop.trf.xlu0
        %v2483 = vpop.trf.xlu0
        %v2484 = vpop.trf.xlu0
        %v2485 = vpop.trf.xlu0
        %v2486 = vpop.trf.xlu0
        %2487 = vxpose.xlu0.b32.start [1/16] %v2386, 128
        %2488 = vxpose.xlu0.b32.cont [2/16] 0.0, 128
        %2489 = vxpose.xlu0.b32.cont [3/16] 0.0, 128
        %2490 = vxpose.xlu0.b32.cont [4/16] 0.0, 128
        %2491 = vxpose.xlu0.b32.cont [5/16] 0.0, 128
        %2492 = vxpose.xlu0.b32.cont [6/16] 0.0, 128
        %2493 = vxpose.xlu0.b32.cont [7/16] 0.0, 128
        %2494 = vxpose.xlu0.b32.cont [8/16] 0.0, 128
        %2495 = vxpose.xlu0.b32.cont [9/16] 0.0, 128
        %2496 = vxpose.xlu0.b32.cont [10/16] 0.0, 128
        %2497 = vxpose.xlu0.b32.cont [11/16] 0.0, 128
        %2498 = vxpose.xlu0.b32.cont [12/16] 0.0, 128
        %2499 = vxpose.xlu0.b32.cont [13/16] 0.0, 128
        %2500 = vxpose.xlu0.b32.cont [14/16] 0.0, 128
        %2501 = vxpose.xlu0.b32.cont [15/16] 0.0, 128
        %2502 = vxpose.xlu0.b32.end [16/16] 0.0, 128
        %v2503 = vpop.trf.xlu0
        %v2504 = vpop.trf.xlu0
        %v2505 = vpop.trf.xlu0
        %v2506 = vpop.trf.xlu0
        %v2507 = vpop.trf.xlu0
        %v2508 = vpop.trf.xlu0
        %v2509 = vpop.trf.xlu0
        %v2510 = vpop.trf.xlu0
        %v2511 = vpop.trf.xlu0
        %v2512 = vpop.trf.xlu0
        %v2513 = vpop.trf.xlu0
        %v2514 = vpop.trf.xlu0
        %v2515 = vpop.trf.xlu0
        %v2516 = vpop.trf.xlu0
        %v2517 = vpop.trf.xlu0
        %v2518 = vpop.trf.xlu0
        %v2519 = vcombine.low %v2407, %v2471
        %v2520 = vcombine.high %v2407, %v2471
        %v2522 = vunpack.c.l.s4 1983009808
        %v2523 = vunpack.c.0.s8 %v2522
        %v2524 = vlaneseq
        %v2525 = vshrl.u32 %v2524, 7
        %v2526 = vsub.s32 %v2523, %v2525
        %v2527 = vrot.slane %v2519, %v2526
        %v2529 = vunpack.c.l.s4 1983009808
        %v2530 = vunpack.c.0.s8 %v2529
        %v2531 = vlaneseq
        %v2532 = vshrl.u32 %v2531, 7
        %v2533 = vsub.s32 %v2530, %v2532
        %v2534 = vrot.slane %v2520, %v2533
        %v2535 = vcombine.low %v2439, %v2503
        %v2536 = vcombine.high %v2439, %v2503
        %v2538 = vunpack.c.l.s4 1983009808
        %v2539 = vunpack.c.0.s8 %v2538
        %v2540 = vlaneseq
        %v2541 = vshrl.u32 %v2540, 7
        %v2542 = vsub.s32 %v2539, %v2541
        %v2543 = vrot.slane %v2535, %v2542
        %v2545 = vunpack.c.l.s4 1983009808
        %v2546 = vunpack.c.0.s8 %v2545
        %v2547 = vlaneseq
        %v2548 = vshrl.u32 %v2547, 7
        %v2549 = vsub.s32 %v2546, %v2548
        %v2550 = vrot.slane %v2536, %v2549
        %v2551 = vcombine.low %v2527, %v2543
        %v2552 = vcombine.high %v2527, %v2543
        %v2554 = vunpack.c.l.s4 1934713408
        %v2555 = vunpack.c.0.s8 %v2554
        %v2556 = vlaneseq
        %v2557 = vshrl.u32 %v2556, 7
        %v2558 = vsub.s32 %v2555, %v2557
        %v2559 = vrot.slane %v2551, %v2558
        %v2561 = vunpack.c.l.s4 1934713408
        %v2562 = vunpack.c.0.s8 %v2561
        %v2563 = vlaneseq
        %v2564 = vshrl.u32 %v2563, 7
        %v2565 = vsub.s32 %v2562, %v2564
        %v2566 = vrot.slane %v2552, %v2565
        %v2567 = vcombine.low %v2534, %v2550
        %v2568 = vcombine.high %v2534, %v2550
        %v2570 = vunpack.c.l.s4 1934713408
        %v2571 = vunpack.c.0.s8 %v2570
        %v2572 = vlaneseq
        %v2573 = vshrl.u32 %v2572, 7
        %v2574 = vsub.s32 %v2571, %v2573
        %v2575 = vrot.slane %v2567, %v2574
        %v2577 = vunpack.c.l.s4 1934713408
        %v2578 = vunpack.c.0.s8 %v2577
        %v2579 = vlaneseq
        %v2580 = vshrl.u32 %v2579, 7
        %v2581 = vsub.s32 %v2578, %v2580
        %v2582 = vrot.slane %v2568, %v2581
        %v2583 = vcombine.high %v2559, 0.0
        %v2584 = vcombine.high %v2566, 0.0
        %v2585 = vcombine.high %v2575, 0.0
        %v2586 = vcombine.high %v2582, 0.0
        %v2587 = vcombine.low %v2559, %v2566
        %v2589 = vunpack.c.l.s4 1983009808
        %v2590 = vunpack.c.0.s8 %v2589
        %v2591 = vlaneseq
        %v2592 = vshrl.u32 %v2591, 7
        %v2593 = vsub.s32 %v2590, %v2592
        %v2594 = vrot.slane %v2587, %v2593
        %v2595 = vcombine.low %v2583, %v2584
        %v2597 = vunpack.c.l.s4 1983009808
        %v2598 = vunpack.c.0.s8 %v2597
        %v2599 = vlaneseq
        %v2600 = vshrl.u32 %v2599, 7
        %v2601 = vsub.s32 %v2598, %v2600
        %v2602 = vrot.slane %v2595, %v2601
        %v2603 = vcombine.low %v2575, %v2582
        %v2605 = vunpack.c.l.s4 1983009808
        %v2606 = vunpack.c.0.s8 %v2605
        %v2607 = vlaneseq
        %v2608 = vshrl.u32 %v2607, 7
        %v2609 = vsub.s32 %v2606, %v2608
        %v2610 = vrot.slane %v2603, %v2609
        %v2611 = vcombine.low %v2585, %v2586
        %v2613 = vunpack.c.l.s4 1983009808
        %v2614 = vunpack.c.0.s8 %v2613
        %v2615 = vlaneseq
        %v2616 = vshrl.u32 %v2615, 7
        %v2617 = vsub.s32 %v2614, %v2616
        %v2618 = vrot.slane %v2611, %v2617
        %v2619 = vcombine.low %v2594, %v2602
        %v2620 = vcombine.high %v2594, %v2602
        %v2622 = vunpack.c.l.s4 1934713408
        %v2623 = vunpack.c.0.s8 %v2622
        %v2624 = vlaneseq
        %v2625 = vshrl.u32 %v2624, 7
        %v2626 = vsub.s32 %v2623, %v2625
        %v2627 = vrot.slane %v2619, %v2626
        %v2629 = vunpack.c.l.s4 1934713408
        %v2630 = vunpack.c.0.s8 %v2629
        %v2631 = vlaneseq
        %v2632 = vshrl.u32 %v2631, 7
        %v2633 = vsub.s32 %v2630, %v2632
        %v2634 = vrot.slane %v2620, %v2633
        %v2635 = vcombine.low %v2610, %v2618
        %v2636 = vcombine.high %v2610, %v2618
        %v2638 = vunpack.c.l.s4 1934713408
        %v2639 = vunpack.c.0.s8 %v2638
        %v2640 = vlaneseq
        %v2641 = vshrl.u32 %v2640, 7
        %v2642 = vsub.s32 %v2639, %v2641
        %v2643 = vrot.slane %v2635, %v2642
        %v2645 = vunpack.c.l.s4 1934713408
        %v2646 = vunpack.c.0.s8 %v2645
        %v2647 = vlaneseq
        %v2648 = vshrl.u32 %v2647, 7
        %v2649 = vsub.s32 %v2646, %v2648
        %v2650 = vrot.slane %v2636, %v2649
        %v2651 = vcombine.low %v2627, %v2643
        %v2652 = vcombine.high %v2627, %v2643
        %v2653 = vcombine.low %v2634, %v2650
        %v2654 = vcombine.high %v2634, %v2650
        %2656 = vrot.lane.b32.xlu0 %v2652, 8
        %v2657 = vpop.permute.xlu0 %2656
        %2660 = vrot.lane.b32.xlu0 %v2653, 16
        %v2661 = vpop.permute.xlu0 %2660
        %2664 = vrot.lane.b32.xlu0 %v2654, 24
        %v2665 = vpop.permute.xlu0 %2664
        %v2667 = vsel %vm1547, %v2651, %v2657
        %vm2668 = vcmask 130048
        %v2669 = vsel %vm2668, %v2667, %v2661
        %vm2670 = vcmask 195584
        %v2671 = vsel %vm2670, %v2669, %v2665
        %v2672 = vpack.c.bf16 %v2671, %v2671
        %v2673 = vld [vmem:[#allocation13] sm:$0xff]
        %v2674 = vld [vmem:[#allocation13 + $0x8] sm:$0xff]
        %v2675 = vld [vmem:[#allocation13 + $0x10] sm:$0xff]
        %v2676 = vld [vmem:[#allocation13 + $0x18] sm:$0xff]
        %v2677 = vpack.c.bf16 %v2674, %v2673
        %v2678 = vpack.c.bf16 %v2676, %v2675
        %v2679 = vld [vmem:[#allocation14] sm:$0x1]
        %v2681 = vlaneseq
        %v2682 = vshrl.u32 %v2681, 7
        %v2683 = vsub.s32 0, %v2682
        %v2684 = vrot.slane %v2679, %v2683
        %v2687 = vsel %vm761, %v2672, 0
        %2689 = vmatprep.subr.bf16.mxu0 0
        %2690 = vmatpush1.bf16.msra.mxu0 %v2677
        %2691 = vmatprep.subr.bf16.mxu0 0
        %2692 = vmatpush1.bf16.msra.mxu0 %v2678
        %2693 = vmatprep.subr.bf16.mxu0 0
        %2694 = vmatpush1.bf16.msra.mxu0 0
        %2695 = vmatprep.subr.bf16.mxu0 0
        %2696 = vmatpush1.bf16.msra.mxu0 0
        %2697 = vmatprep.subr.bf16.mxu0 0
        %2698 = vmatpush1.bf16.msra.mxu0 0
        %2699 = vmatprep.subr.bf16.mxu0 0
        %2700 = vmatpush1.bf16.msra.mxu0 0
        %2701 = vmatprep.subr.bf16.mxu0 0
        %2702 = vmatpush1.bf16.msra.mxu0 0
        %2703 = vmatprep.subr.bf16.mxu0 0
        %2704 = vmatpush1.bf16.msra.mxu0 0
        %2705 = vmatprep.subr.bf16.mxu0 0
        %2706 = vmatpush1.bf16.msra.mxu0 0
        %2707 = vmatprep.subr.bf16.mxu0 0
        %2708 = vmatpush1.bf16.msra.mxu0 0
        %2709 = vmatprep.subr.bf16.mxu0 0
        %2710 = vmatpush1.bf16.msra.mxu0 0
        %2711 = vmatprep.subr.bf16.mxu0 0
        %2712 = vmatpush1.bf16.msra.mxu0 0
        %2713 = vmatprep.subr.bf16.mxu0 0
        %2714 = vmatpush1.bf16.msra.mxu0 0
        %2715 = vmatprep.subr.bf16.mxu0 0
        %2716 = vmatpush1.bf16.msra.mxu0 0
        %2717 = vmatprep.subr.bf16.mxu0 0
        %2718 = vmatpush1.bf16.msra.mxu0 0
        %2719 = vmatprep.subr.bf16.mxu0 0
        %2720 = vmatpush1.bf16.msra.mxu0 0
        %2721 = vmatprep.mubr.bf16.mxu0 0
        %2722 = vmatmul.mubr.bf16.gmra.mrb[0].mxu0 %v2687
        %v2723 = vpop.f32.mrb[0].mxu0
        %v2724 = vadd.f32 %v2684, %v2723
        %v2725 = vpop.f32.mrb[0].mxu0
        %v2726 = vpop.f32.mrb[0].mxu0
        %v2727 = vpop.f32.mrb[0].mxu0
        %2728 = vdwg.mxu0
        %v2729 = vadd.f32 %v2724, %v742
        %v2730 = vsel %vm761, %v2729, 0.0
        %2731 = vadd.xlane.f32.xlu0 %v2730
        %v2732 = vpop.xlane.xlu0 %2731
        %v2733 = vrcp.pop 32.0
        %v2734 = vmul.f32 %v2732, %v2733
        %v2735 = vsub.f32 %v2729, %v2734
        %v2736 = vmul.f32 %v2735, %v2735
        %v2737 = vsel %vm761, %v2736, 0.0
        %2738 = vadd.xlane.f32.xlu0 %v2737
        %v2739 = vpop.xlane.xlu0 %2738
        %v2740 = vmul.f32 %v2739, %v2733
        %v2741 = vadd.f32 %v2740, 1e-05
        %v2742 = vrsqrt.pop %v2741
        %v2743 = vmul.f32 %v2735, %v2742
        %v2744 = vlaneseq
        %v2745 = vshrl.u32 %v2744, 7
        %v2746 = vsub.s32 0, %v2745
        %v2747 = vrot.slane %v746, %v2746
        %v2748 = vmul.f32 %v2743, %v2747
        %v2749 = vlaneseq
        %v2750 = vshrl.u32 %v2749, 7
        %v2751 = vsub.s32 1, %v2750
        %v2752 = vrot.slane %v746, %v2751
        %v2753 = vadd.f32 %v2748, %v2752
        %v2754 = vld [vmem:[#allocation16] sm:$0xff]
        %v2755 = vld [vmem:[#allocation16 + $0x8] sm:$0xff]
        %v2756 = vld [vmem:[#allocation16 + $0x10] sm:$0xff]
        %v2757 = vld [vmem:[#allocation16 + $0x18] sm:$0xff]
        %v2758 = vld [vmem:[#allocation16 + $0x20] sm:$0xff]
        %v2759 = vld [vmem:[#allocation16 + $0x28] sm:$0xff]
        %v2760 = vld [vmem:[#allocation16 + $0x30] sm:$0xff]
        %v2761 = vld [vmem:[#allocation16 + $0x38] sm:$0xff]
        %v2762 = vld [vmem:[#allocation16 + $0x40] sm:$0xff]
        %v2763 = vld [vmem:[#allocation16 + $0x48] sm:$0xff]
        %v2764 = vld [vmem:[#allocation16 + $0x50] sm:$0xff]
        %v2765 = vld [vmem:[#allocation16 + $0x58] sm:$0xff]
        %v2766 = vld [vmem:[#allocation16 + $0x60] sm:$0xff]
        %v2767 = vld [vmem:[#allocation16 + $0x68] sm:$0xff]
        %v2768 = vld [vmem:[#allocation16 + $0x70] sm:$0xff]
        %v2769 = vld [vmem:[#allocation16 + $0x78] sm:$0xff]
        %v2770 = vpack.c.bf16 %v2755, %v2754
        %v2771 = vpack.c.bf16 %v2757, %v2756
        %v2772 = vpack.c.bf16 %v2759, %v2758
        %v2773 = vpack.c.bf16 %v2761, %v2760
        %v2774 = vpack.c.bf16 %v2763, %v2762
        %v2775 = vpack.c.bf16 %v2765, %v2764
        %v2776 = vpack.c.bf16 %v2767, %v2766
        %v2777 = vpack.c.bf16 %v2769, %v2768
        %v2778 = vld [vmem:[#allocation17] sm:$0xf]
        %v2779 = vpack.c.bf16 %v2753, %v2753
        %v2780 = vlaneseq
        %v2781 = vshrl.u32 %v2780, 7
        %v2782 = vsub.s32 0, %v2781
        %v2783 = vrot.slane %v2778, %v2782
        %v2785 = vsel %vm761, %v2779, 0
        %2787 = vmatprep.subr.bf16.mxu0 0
        %2788 = vmatpush1.bf16.msra.mxu0 %v2770
        %2789 = vmatprep.subr.bf16.mxu0 0
        %2790 = vmatpush1.bf16.msra.mxu0 %v2771
        %2791 = vmatprep.subr.bf16.mxu0 0
        %2792 = vmatpush1.bf16.msra.mxu0 0
        %2793 = vmatprep.subr.bf16.mxu0 0
        %2794 = vmatpush1.bf16.msra.mxu0 0
        %2795 = vmatprep.subr.bf16.mxu0 0
        %2796 = vmatpush1.bf16.msra.mxu0 0
        %2797 = vmatprep.subr.bf16.mxu0 0
        %2798 = vmatpush1.bf16.msra.mxu0 0
        %2799 = vmatprep.subr.bf16.mxu0 0
        %2800 = vmatpush1.bf16.msra.mxu0 0
        %2801 = vmatprep.subr.bf16.mxu0 0
        %2802 = vmatpush1.bf16.msra.mxu0 0
        %2803 = vmatprep.subr.bf16.mxu0 0
        %2804 = vmatpush1.bf16.msra.mxu0 0
        %2805 = vmatprep.subr.bf16.mxu0 0
        %2806 = vmatpush1.bf16.msra.mxu0 0
        %2807 = vmatprep.subr.bf16.mxu0 0
        %2808 = vmatpush1.bf16.msra.mxu0 0
        %2809 = vmatprep.subr.bf16.mxu0 0
        %2810 = vmatpush1.bf16.msra.mxu0 0
        %2811 = vmatprep.subr.bf16.mxu0 0
        %2812 = vmatpush1.bf16.msra.mxu0 0
        %2813 = vmatprep.subr.bf16.mxu0 0
        %2814 = vmatpush1.bf16.msra.mxu0 0
        %2815 = vmatprep.subr.bf16.mxu0 0
        %2816 = vmatpush1.bf16.msra.mxu0 0
        %2817 = vmatprep.subr.bf16.mxu0 0
        %2818 = vmatpush1.bf16.msra.mxu0 0
        %2819 = vmatprep.mubr.bf16.mxu0 0
        %2820 = vmatmul.mubr.bf16.gmra.mrb[0].mxu0 %v2785
        %v2821 = vpop.f32.mrb[0].mxu0
        %v2822 = vadd.f32 %v2783, %v2821
        %v2823 = vpop.f32.mrb[0].mxu0
        %v2824 = vpop.f32.mrb[0].mxu0
        %v2825 = vpop.f32.mrb[0].mxu0
        %2826 = vdwg.mxu0
        %v2827 = vpack.c.bf16 %v743, %v743
        %v2828 = vlaneseq
        %v2829 = vshrl.u32 %v2828, 7
        %v2830 = vsub.s32 1, %v2829
        %v2831 = vrot.slane %v2778, %v2830
        %v2833 = vsel %vm761, %v2827, 0
        %2835 = vmatprep.subr.bf16.mxu0 0
        %2836 = vmatpush1.bf16.msra.mxu0 %v2772
        %2837 = vmatprep.subr.bf16.mxu0 0
        %2838 = vmatpush1.bf16.msra.mxu0 %v2773
        %2839 = vmatprep.subr.bf16.mxu0 0
        %2840 = vmatpush1.bf16.msra.mxu0 0
        %2841 = vmatprep.subr.bf16.mxu0 0
        %2842 = vmatpush1.bf16.msra.mxu0 0
        %2843 = vmatprep.subr.bf16.mxu0 0
        %2844 = vmatpush1.bf16.msra.mxu0 0
        %2845 = vmatprep.subr.bf16.mxu0 0
        %2846 = vmatpush1.bf16.msra.mxu0 0
        %2847 = vmatprep.subr.bf16.mxu0 0
        %2848 = vmatpush1.bf16.msra.mxu0 0
        %2849 = vmatprep.subr.bf16.mxu0 0
        %2850 = vmatpush1.bf16.msra.mxu0 0
        %2851 = vmatprep.subr.bf16.mxu0 0
        %2852 = vmatpush1.bf16.msra.mxu0 0
        %2853 = vmatprep.subr.bf16.mxu0 0
        %2854 = vmatpush1.bf16.msra.mxu0 0
        %2855 = vmatprep.subr.bf16.mxu0 0
        %2856 = vmatpush1.bf16.msra.mxu0 0
        %2857 = vmatprep.subr.bf16.mxu0 0
        %2858 = vmatpush1.bf16.msra.mxu0 0
        %2859 = vmatprep.subr.bf16.mxu0 0
        %2860 = vmatpush1.bf16.msra.mxu0 0
        %2861 = vmatprep.subr.bf16.mxu0 0
        %2862 = vmatpush1.bf16.msra.mxu0 0
        %2863 = vmatprep.subr.bf16.mxu0 0
        %2864 = vmatpush1.bf16.msra.mxu0 0
        %2865 = vmatprep.subr.bf16.mxu0 0
        %2866 = vmatpush1.bf16.msra.mxu0 0
        %2867 = vmatprep.mubr.bf16.mxu0 0
        %2868 = vmatmul.mubr.bf16.gmra.mrb[0].mxu0 %v2833
        %v2869 = vpop.f32.mrb[0].mxu0
        %v2870 = vadd.f32 %v2831, %v2869
        %v2871 = vpop.f32.mrb[0].mxu0
        %v2872 = vpop.f32.mrb[0].mxu0
        %v2873 = vpop.f32.mrb[0].mxu0
        %2874 = vdwg.mxu0
        %v2875 = vpack.c.bf16 %v744, %v744
        %v2876 = vlaneseq
        %v2877 = vshrl.u32 %v2876, 7
        %v2878 = vsub.s32 2, %v2877
        %v2879 = vrot.slane %v2778, %v2878
        %v2881 = vsel %vm761, %v2875, 0
        %2883 = vmatprep.subr.bf16.mxu0 0
        %2884 = vmatpush1.bf16.msra.mxu0 %v2774
        %2885 = vmatprep.subr.bf16.mxu0 0
        %2886 = vmatpush1.bf16.msra.mxu0 %v2775
        %2887 = vmatprep.subr.bf16.mxu0 0
        %2888 = vmatpush1.bf16.msra.mxu0 0
        %2889 = vmatprep.subr.bf16.mxu0 0
        %2890 = vmatpush1.bf16.msra.mxu0 0
        %2891 = vmatprep.subr.bf16.mxu0 0
        %2892 = vmatpush1.bf16.msra.mxu0 0
        %2893 = vmatprep.subr.bf16.mxu0 0
        %2894 = vmatpush1.bf16.msra.mxu0 0
        %2895 = vmatprep.subr.bf16.mxu0 0
        %2896 = vmatpush1.bf16.msra.mxu0 0
        %2897 = vmatprep.subr.bf16.mxu0 0
        %2898 = vmatpush1.bf16.msra.mxu0 0
        %2899 = vmatprep.subr.bf16.mxu0 0
        %2900 = vmatpush1.bf16.msra.mxu0 0
        %2901 = vmatprep.subr.bf16.mxu0 0
        %2902 = vmatpush1.bf16.msra.mxu0 0
        %2903 = vmatprep.subr.bf16.mxu0 0
        %2904 = vmatpush1.bf16.msra.mxu0 0
        %2905 = vmatprep.subr.bf16.mxu0 0
        %2906 = vmatpush1.bf16.msra.mxu0 0
        %2907 = vmatprep.subr.bf16.mxu0 0
        %2908 = vmatpush1.bf16.msra.mxu0 0
        %2909 = vmatprep.subr.bf16.mxu0 0
        %2910 = vmatpush1.bf16.msra.mxu0 0
        %2911 = vmatprep.subr.bf16.mxu0 0
        %2912 = vmatpush1.bf16.msra.mxu0 0
        %2913 = vmatprep.subr.bf16.mxu0 0
        %2914 = vmatpush1.bf16.msra.mxu0 0
        %2915 = vmatprep.mubr.bf16.mxu0 0
        %2916 = vmatmul.mubr.bf16.gmra.mrb[0].mxu0 %v2881
        %v2917 = vpop.f32.mrb[0].mxu0
        %v2918 = vadd.f32 %v2879, %v2917
        %v2919 = vpop.f32.mrb[0].mxu0
        %v2920 = vpop.f32.mrb[0].mxu0
        %v2921 = vpop.f32.mrb[0].mxu0
        %2922 = vdwg.mxu0
        %2924 = vrot.lane.b32.xlu0 %v2822, 120
        %v2925 = vpop.permute.xlu0 %2924
        %2927 = vrot.lane.b32.xlu0 %v2822, 112
        %v2928 = vpop.permute.xlu0 %2927
        %2930 = vrot.lane.b32.xlu0 %v2822, 104
        %v2931 = vpop.permute.xlu0 %2930
        %v2933 = vcombine.low %v2822, %v2928
        %v2934 = vcombine.high %v2822, %v2928
        %v2936 = vunpack.c.l.s4 1983009808
        %v2937 = vunpack.c.0.s8 %v2936
        %v2938 = vlaneseq
        %v2939 = vshrl.u32 %v2938, 7
        %v2940 = vsub.s32 %v2937, %v2939
        %v2941 = vrot.slane %v2933, %v2940
        %v2943 = vunpack.c.l.s4 1983009808
        %v2944 = vunpack.c.0.s8 %v2943
        %v2945 = vlaneseq
        %v2946 = vshrl.u32 %v2945, 7
        %v2947 = vsub.s32 %v2944, %v2946
        %v2948 = vrot.slane %v2934, %v2947
        %v2949 = vcombine.low %v2925, %v2931
        %v2950 = vcombine.high %v2925, %v2931
        %v2952 = vunpack.c.l.s4 1983009808
        %v2953 = vunpack.c.0.s8 %v2952
        %v2954 = vlaneseq
        %v2955 = vshrl.u32 %v2954, 7
        %v2956 = vsub.s32 %v2953, %v2955
        %v2957 = vrot.slane %v2949, %v2956
        %v2959 = vunpack.c.l.s4 1983009808
        %v2960 = vunpack.c.0.s8 %v2959
        %v2961 = vlaneseq
        %v2962 = vshrl.u32 %v2961, 7
        %v2963 = vsub.s32 %v2960, %v2962
        %v2964 = vrot.slane %v2950, %v2963
        %v2965 = vcombine.low %v2941, %v2957
        %v2966 = vcombine.high %v2941, %v2957
        %v2968 = vunpack.c.l.s4 1934713408
        %v2969 = vunpack.c.0.s8 %v2968
        %v2970 = vlaneseq
        %v2971 = vshrl.u32 %v2970, 7
        %v2972 = vsub.s32 %v2969, %v2971
        %v2973 = vrot.slane %v2965, %v2972
        %v2975 = vunpack.c.l.s4 1934713408
        %v2976 = vunpack.c.0.s8 %v2975
        %v2977 = vlaneseq
        %v2978 = vshrl.u32 %v2977, 7
        %v2979 = vsub.s32 %v2976, %v2978
        %v2980 = vrot.slane %v2966, %v2979
        %v2981 = vcombine.low %v2948, %v2964
        %v2982 = vcombine.high %v2948, %v2964
        %v2984 = vunpack.c.l.s4 1934713408
        %v2985 = vunpack.c.0.s8 %v2984
        %v2986 = vlaneseq
        %v2987 = vshrl.u32 %v2986, 7
        %v2988 = vsub.s32 %v2985, %v2987
        %v2989 = vrot.slane %v2981, %v2988
        %v2991 = vunpack.c.l.s4 1934713408
        %v2992 = vunpack.c.0.s8 %v2991
        %v2993 = vlaneseq
        %v2994 = vshrl.u32 %v2993, 7
        %v2995 = vsub.s32 %v2992, %v2994
        %v2996 = vrot.slane %v2982, %v2995
        %v2997 = vcombine.high %v2973, 0.0
        %v2998 = vcombine.high %v2980, 0.0
        %v2999 = vcombine.high %v2989, 0.0
        %v3000 = vcombine.high %v2996, 0.0
        %v3001 = vpack.c.bf16 %v2973, %v2973
        %v3002 = vpack.c.bf16 %v2997, %v2997
        %v3003 = vpack.c.bf16 %v2980, %v2980
        %v3004 = vpack.c.bf16 %v2998, %v2998
        %v3005 = vpack.c.bf16 %v2989, %v2989
        %v3006 = vpack.c.bf16 %v2999, %v2999
        %v3007 = vpack.c.bf16 %v2996, %v2996
        %v3008 = vpack.c.bf16 %v3000, %v3000
        %3010 = vrot.lane.b32.xlu0 %v2870, 120
        %v3011 = vpop.permute.xlu0 %3010
        %3013 = vrot.lane.b32.xlu0 %v2870, 112
        %v3014 = vpop.permute.xlu0 %3013
        %3016 = vrot.lane.b32.xlu0 %v2870, 104
        %v3017 = vpop.permute.xlu0 %3016
        %v3019 = vcombine.low %v2870, %v3014
        %v3020 = vcombine.high %v2870, %v3014
        %v3022 = vunpack.c.l.s4 1983009808
        %v3023 = vunpack.c.0.s8 %v3022
        %v3024 = vlaneseq
        %v3025 = vshrl.u32 %v3024, 7
        %v3026 = vsub.s32 %v3023, %v3025
        %v3027 = vrot.slane %v3019, %v3026
        %v3029 = vunpack.c.l.s4 1983009808
        %v3030 = vunpack.c.0.s8 %v3029
        %v3031 = vlaneseq
        %v3032 = vshrl.u32 %v3031, 7
        %v3033 = vsub.s32 %v3030, %v3032
        %v3034 = vrot.slane %v3020, %v3033
        %v3035 = vcombine.low %v3011, %v3017
        %v3036 = vcombine.high %v3011, %v3017
        %v3038 = vunpack.c.l.s4 1983009808
        %v3039 = vunpack.c.0.s8 %v3038
        %v3040 = vlaneseq
        %v3041 = vshrl.u32 %v3040, 7
        %v3042 = vsub.s32 %v3039, %v3041
        %v3043 = vrot.slane %v3035, %v3042
        %v3045 = vunpack.c.l.s4 1983009808
        %v3046 = vunpack.c.0.s8 %v3045
        %v3047 = vlaneseq
        %v3048 = vshrl.u32 %v3047, 7
        %v3049 = vsub.s32 %v3046, %v3048
        %v3050 = vrot.slane %v3036, %v3049
        %v3051 = vcombine.low %v3027, %v3043
        %v3052 = vcombine.high %v3027, %v3043
        %v3054 = vunpack.c.l.s4 1934713408
        %v3055 = vunpack.c.0.s8 %v3054
        %v3056 = vlaneseq
        %v3057 = vshrl.u32 %v3056, 7
        %v3058 = vsub.s32 %v3055, %v3057
        %v3059 = vrot.slane %v3051, %v3058
        %v3061 = vunpack.c.l.s4 1934713408
        %v3062 = vunpack.c.0.s8 %v3061
        %v3063 = vlaneseq
        %v3064 = vshrl.u32 %v3063, 7
        %v3065 = vsub.s32 %v3062, %v3064
        %v3066 = vrot.slane %v3052, %v3065
        %v3067 = vcombine.low %v3034, %v3050
        %v3068 = vcombine.high %v3034, %v3050
        %v3070 = vunpack.c.l.s4 1934713408
        %v3071 = vunpack.c.0.s8 %v3070
        %v3072 = vlaneseq
        %v3073 = vshrl.u32 %v3072, 7
        %v3074 = vsub.s32 %v3071, %v3073
        %v3075 = vrot.slane %v3067, %v3074
        %v3077 = vunpack.c.l.s4 1934713408
        %v3078 = vunpack.c.0.s8 %v3077
        %v3079 = vlaneseq
        %v3080 = vshrl.u32 %v3079, 7
        %v3081 = vsub.s32 %v3078, %v3080
        %v3082 = vrot.slane %v3068, %v3081
        %v3083 = vcombine.high %v3059, 0.0
        %v3084 = vcombine.high %v3066, 0.0
        %v3085 = vcombine.high %v3075, 0.0
        %v3086 = vcombine.high %v3082, 0.0
        %v3087 = vpack.c.bf16 %v3059, %v3059
        %v3088 = vpack.c.bf16 %v3083, %v3083
        %v3089 = vpack.c.bf16 %v3066, %v3066
        %v3090 = vpack.c.bf16 %v3084, %v3084
        %v3091 = vpack.c.bf16 %v3075, %v3075
        %v3092 = vpack.c.bf16 %v3085, %v3085
        %v3093 = vpack.c.bf16 %v3082, %v3082
        %v3094 = vpack.c.bf16 %v3086, %v3086
        %3096 = vrot.lane.b32.xlu0 %v2918, 120
        %v3097 = vpop.permute.xlu0 %3096
        %3099 = vrot.lane.b32.xlu0 %v2918, 112
        %v3100 = vpop.permute.xlu0 %3099
        %3102 = vrot.lane.b32.xlu0 %v2918, 104
        %v3103 = vpop.permute.xlu0 %3102
        %v3105 = vcombine.low %v2918, %v3100
        %v3106 = vcombine.high %v2918, %v3100
        %v3108 = vunpack.c.l.s4 1983009808
        %v3109 = vunpack.c.0.s8 %v3108
        %v3110 = vlaneseq
        %v3111 = vshrl.u32 %v3110, 7
        %v3112 = vsub.s32 %v3109, %v3111
        %v3113 = vrot.slane %v3105, %v3112
        %v3115 = vunpack.c.l.s4 1983009808
        %v3116 = vunpack.c.0.s8 %v3115
        %v3117 = vlaneseq
        %v3118 = vshrl.u32 %v3117, 7
        %v3119 = vsub.s32 %v3116, %v3118
        %v3120 = vrot.slane %v3106, %v3119
        %v3121 = vcombine.low %v3097, %v3103
        %v3122 = vcombine.high %v3097, %v3103
        %v3124 = vunpack.c.l.s4 1983009808
        %v3125 = vunpack.c.0.s8 %v3124
        %v3126 = vlaneseq
        %v3127 = vshrl.u32 %v3126, 7
        %v3128 = vsub.s32 %v3125, %v3127
        %v3129 = vrot.slane %v3121, %v3128
        %v3131 = vunpack.c.l.s4 1983009808
        %v3132 = vunpack.c.0.s8 %v3131
        %v3133 = vlaneseq
        %v3134 = vshrl.u32 %v3133, 7
        %v3135 = vsub.s32 %v3132, %v3134
        %v3136 = vrot.slane %v3122, %v3135
        %v3137 = vcombine.low %v3113, %v3129
        %v3138 = vcombine.high %v3113, %v3129
        %v3140 = vunpack.c.l.s4 1934713408
        %v3141 = vunpack.c.0.s8 %v3140
        %v3142 = vlaneseq
        %v3143 = vshrl.u32 %v3142, 7
        %v3144 = vsub.s32 %v3141, %v3143
        %v3145 = vrot.slane %v3137, %v3144
        %v3147 = vunpack.c.l.s4 1934713408
        %v3148 = vunpack.c.0.s8 %v3147
        %v3149 = vlaneseq
        %v3150 = vshrl.u32 %v3149, 7
        %v3151 = vsub.s32 %v3148, %v3150
        %v3152 = vrot.slane %v3138, %v3151
        %v3153 = vcombine.low %v3120, %v3136
        %v3154 = vcombine.high %v3120, %v3136
        %v3156 = vunpack.c.l.s4 1934713408
        %v3157 = vunpack.c.0.s8 %v3156
        %v3158 = vlaneseq
        %v3159 = vshrl.u32 %v3158, 7
        %v3160 = vsub.s32 %v3157, %v3159
        %v3161 = vrot.slane %v3153, %v3160
        %v3163 = vunpack.c.l.s4 1934713408
        %v3164 = vunpack.c.0.s8 %v3163
        %v3165 = vlaneseq
        %v3166 = vshrl.u32 %v3165, 7
        %v3167 = vsub.s32 %v3164, %v3166
        %v3168 = vrot.slane %v3154, %v3167
        %v3169 = vcombine.high %v3145, 0.0
        %v3170 = vcombine.high %v3152, 0.0
        %v3171 = vcombine.high %v3161, 0.0
        %v3172 = vcombine.high %v3168, 0.0
        %v3173 = vpack.c.bf16 %v3145, %v3145
        %v3174 = vpack.c.bf16 %v3169, %v3169
        %v3175 = vpack.c.bf16 %v3152, %v3152
        %v3176 = vpack.c.bf16 %v3170, %v3170
        %v3177 = vpack.c.bf16 %v3161, %v3161
        %v3178 = vpack.c.bf16 %v3171, %v3171
        %v3179 = vpack.c.bf16 %v3168, %v3168
        %v3180 = vpack.c.bf16 %v3172, %v3172
        %v3181 = vcombine.low %v3001, %v3005
        %v3183 = vunpack.c.l.s4 1983009808
        %v3184 = vunpack.c.0.s8 %v3183
        %v3185 = vlaneseq
        %v3186 = vshrl.u32 %v3185, 7
        %v3187 = vsub.s32 %v3184, %v3186
        %v3188 = vrot.slane %v3181, %v3187
        %v3189 = vcombine.low %v3003, %v3007
        %v3191 = vunpack.c.l.s4 1983009808
        %v3192 = vunpack.c.0.s8 %v3191
        %v3193 = vlaneseq
        %v3194 = vshrl.u32 %v3193, 7
        %v3195 = vsub.s32 %v3192, %v3194
        %v3196 = vrot.slane %v3189, %v3195
        %v3197 = vcombine.low %v3188, %v3196
        %v3199 = vunpack.c.l.s4 1934713408
        %v3200 = vunpack.c.0.s8 %v3199
        %v3201 = vlaneseq
        %v3202 = vshrl.u32 %v3201, 7
        %v3203 = vsub.s32 %v3200, %v3202
        %v3204 = vrot.slane %v3197, %v3203
        %v3205 = vcombine.high %v3204, 0
        %v3206 = vcombine.low %v3002, %v3006
        %v3208 = vunpack.c.l.s4 1983009808
        %v3209 = vunpack.c.0.s8 %v3208
        %v3210 = vlaneseq
        %v3211 = vshrl.u32 %v3210, 7
        %v3212 = vsub.s32 %v3209, %v3211
        %v3213 = vrot.slane %v3206, %v3212
        %v3214 = vcombine.low %v3004, %v3008
        %v3216 = vunpack.c.l.s4 1983009808
        %v3217 = vunpack.c.0.s8 %v3216
        %v3218 = vlaneseq
        %v3219 = vshrl.u32 %v3218, 7
        %v3220 = vsub.s32 %v3217, %v3219
        %v3221 = vrot.slane %v3214, %v3220
        %v3222 = vcombine.low %v3213, %v3221
        %v3224 = vunpack.c.l.s4 1934713408
        %v3225 = vunpack.c.0.s8 %v3224
        %v3226 = vlaneseq
        %v3227 = vshrl.u32 %v3226, 7
        %v3228 = vsub.s32 %v3225, %v3227
        %v3229 = vrot.slane %v3222, %v3228
        %v3230 = vcombine.high %v3229, 0
        %v3233 = vpack.i.b16 %v3229, %v3204
        %v3234 = vshrl.u32 %v3204, 16
        %v3235 = vshrl.u32 %v3229, 16
        %v3236 = vpack.i.b16 %v3235, %v3234
        %v3239 = vpack.i.b16 %v3230, %v3205
        %v3240 = vshrl.u32 %v3205, 16
        %v3241 = vshrl.u32 %v3230, 16
        %v3242 = vpack.i.b16 %v3241, %v3240
        %3243 = vxpose.xlu0.c.b16.start [1/8] %v3087, 128
        %3244 = vxpose.xlu0.c.b16.cont [2/8] 0, 128
        %3245 = vxpose.xlu0.c.b16.cont [3/8] 0, 128
        %3246 = vxpose.xlu0.c.b16.cont [4/8] 0, 128
        %3247 = vxpose.xlu0.c.b16.cont [5/8] 0, 128
        %3248 = vxpose.xlu0.c.b16.cont [6/8] 0, 128
        %3249 = vxpose.xlu0.c.b16.cont [7/8] 0, 128
        %3250 = vxpose.xlu0.c.b16.end [8/8] 0, 128
        %v3251 = vpop.trf.xlu0
        %v3252 = vpop.trf.xlu0
        %v3253 = vpop.trf.xlu0
        %v3254 = vpop.trf.xlu0
        %v3255 = vpop.trf.xlu0
        %v3256 = vpop.trf.xlu0
        %v3257 = vpop.trf.xlu0
        %v3258 = vpop.trf.xlu0
        %3259 = vxpose.xlu0.c.b16.start [1/8] %v3088, 128
        %3260 = vxpose.xlu0.c.b16.cont [2/8] 0, 128
        %3261 = vxpose.xlu0.c.b16.cont [3/8] 0, 128
        %3262 = vxpose.xlu0.c.b16.cont [4/8] 0, 128
        %3263 = vxpose.xlu0.c.b16.cont [5/8] 0, 128
        %3264 = vxpose.xlu0.c.b16.cont [6/8] 0, 128
        %3265 = vxpose.xlu0.c.b16.cont [7/8] 0, 128
        %3266 = vxpose.xlu0.c.b16.end [8/8] 0, 128
        %v3267 = vpop.trf.xlu0
        %v3268 = vpop.trf.xlu0
        %v3269 = vpop.trf.xlu0
        %v3270 = vpop.trf.xlu0
        %v3271 = vpop.trf.xlu0
        %v3272 = vpop.trf.xlu0
        %v3273 = vpop.trf.xlu0
        %v3274 = vpop.trf.xlu0
        %3275 = vxpose.xlu0.c.b16.start [1/8] %v3089, 128
        %3276 = vxpose.xlu0.c.b16.cont [2/8] 0, 128
        %3277 = vxpose.xlu0.c.b16.cont [3/8] 0, 128
        %3278 = vxpose.xlu0.c.b16.cont [4/8] 0, 128
        %3279 = vxpose.xlu0.c.b16.cont [5/8] 0, 128
        %3280 = vxpose.xlu0.c.b16.cont [6/8] 0, 128
        %3281 = vxpose.xlu0.c.b16.cont [7/8] 0, 128
        %3282 = vxpose.xlu0.c.b16.end [8/8] 0, 128
        %v3283 = vpop.trf.xlu0
        %v3284 = vpop.trf.xlu0
        %v3285 = vpop.trf.xlu0
        %v3286 = vpop.trf.xlu0
        %v3287 = vpop.trf.xlu0
        %v3288 = vpop.trf.xlu0
        %v3289 = vpop.trf.xlu0
        %v3290 = vpop.trf.xlu0
        %3291 = vxpose.xlu0.c.b16.start [1/8] %v3090, 128
        %3292 = vxpose.xlu0.c.b16.cont [2/8] 0, 128
        %3293 = vxpose.xlu0.c.b16.cont [3/8] 0, 128
        %3294 = vxpose.xlu0.c.b16.cont [4/8] 0, 128
        %3295 = vxpose.xlu0.c.b16.cont [5/8] 0, 128
        %3296 = vxpose.xlu0.c.b16.cont [6/8] 0, 128
        %3297 = vxpose.xlu0.c.b16.cont [7/8] 0, 128
        %3298 = vxpose.xlu0.c.b16.end [8/8] 0, 128
        %v3299 = vpop.trf.xlu0
        %v3300 = vpop.trf.xlu0
        %v3301 = vpop.trf.xlu0
        %v3302 = vpop.trf.xlu0
        %v3303 = vpop.trf.xlu0
        %v3304 = vpop.trf.xlu0
        %v3305 = vpop.trf.xlu0
        %v3306 = vpop.trf.xlu0
        %3307 = vxpose.xlu0.c.b16.start [1/8] %v3091, 128
        %3308 = vxpose.xlu0.c.b16.cont [2/8] 0, 128
        %3309 = vxpose.xlu0.c.b16.cont [3/8] 0, 128
        %3310 = vxpose.xlu0.c.b16.cont [4/8] 0, 128
        %3311 = vxpose.xlu0.c.b16.cont [5/8] 0, 128
        %3312 = vxpose.xlu0.c.b16.cont [6/8] 0, 128
        %3313 = vxpose.xlu0.c.b16.cont [7/8] 0, 128
        %3314 = vxpose.xlu0.c.b16.end [8/8] 0, 128
        %v3315 = vpop.trf.xlu0
        %v3316 = vpop.trf.xlu0
        %v3317 = vpop.trf.xlu0
        %v3318 = vpop.trf.xlu0
        %v3319 = vpop.trf.xlu0
        %v3320 = vpop.trf.xlu0
        %v3321 = vpop.trf.xlu0
        %v3322 = vpop.trf.xlu0
        %3323 = vxpose.xlu0.c.b16.start [1/8] %v3092, 128
        %3324 = vxpose.xlu0.c.b16.cont [2/8] 0, 128
        %3325 = vxpose.xlu0.c.b16.cont [3/8] 0, 128
        %3326 = vxpose.xlu0.c.b16.cont [4/8] 0, 128
        %3327 = vxpose.xlu0.c.b16.cont [5/8] 0, 128
        %3328 = vxpose.xlu0.c.b16.cont [6/8] 0, 128
        %3329 = vxpose.xlu0.c.b16.cont [7/8] 0, 128
        %3330 = vxpose.xlu0.c.b16.end [8/8] 0, 128
        %v3331 = vpop.trf.xlu0
        %v3332 = vpop.trf.xlu0
        %v3333 = vpop.trf.xlu0
        %v3334 = vpop.trf.xlu0
        %v3335 = vpop.trf.xlu0
        %v3336 = vpop.trf.xlu0
        %v3337 = vpop.trf.xlu0
        %v3338 = vpop.trf.xlu0
        %3339 = vxpose.xlu0.c.b16.start [1/8] %v3093, 128
        %3340 = vxpose.xlu0.c.b16.cont [2/8] 0, 128
        %3341 = vxpose.xlu0.c.b16.cont [3/8] 0, 128
        %3342 = vxpose.xlu0.c.b16.cont [4/8] 0, 128
        %3343 = vxpose.xlu0.c.b16.cont [5/8] 0, 128
        %3344 = vxpose.xlu0.c.b16.cont [6/8] 0, 128
        %3345 = vxpose.xlu0.c.b16.cont [7/8] 0, 128
        %3346 = vxpose.xlu0.c.b16.end [8/8] 0, 128
        %v3347 = vpop.trf.xlu0
        %v3348 = vpop.trf.xlu0
        %v3349 = vpop.trf.xlu0
        %v3350 = vpop.trf.xlu0
        %v3351 = vpop.trf.xlu0
        %v3352 = vpop.trf.xlu0
        %v3353 = vpop.trf.xlu0
        %v3354 = vpop.trf.xlu0
        %3355 = vxpose.xlu0.c.b16.start [1/8] %v3094, 128
        %3356 = vxpose.xlu0.c.b16.cont [2/8] 0, 128
        %3357 = vxpose.xlu0.c.b16.cont [3/8] 0, 128
        %3358 = vxpose.xlu0.c.b16.cont [4/8] 0, 128
        %3359 = vxpose.xlu0.c.b16.cont [5/8] 0, 128
        %3360 = vxpose.xlu0.c.b16.cont [6/8] 0, 128
        %3361 = vxpose.xlu0.c.b16.cont [7/8] 0, 128
        %3362 = vxpose.xlu0.c.b16.end [8/8] 0, 128
        %v3363 = vpop.trf.xlu0
        %v3364 = vpop.trf.xlu0
        %v3365 = vpop.trf.xlu0
        %v3366 = vpop.trf.xlu0
        %v3367 = vpop.trf.xlu0
        %v3368 = vpop.trf.xlu0
        %v3369 = vpop.trf.xlu0
        %v3370 = vpop.trf.xlu0
        %v3371 = vcombine.low %v3251, %v3315
        %v3373 = vunpack.c.l.s4 1983009808
        %v3374 = vunpack.c.0.s8 %v3373
        %v3375 = vlaneseq
        %v3376 = vshrl.u32 %v3375, 7
        %v3377 = vsub.s32 %v3374, %v3376
        %v3378 = vrot.slane %v3371, %v3377
        %v3379 = vcombine.low %v3283, %v3347
        %v3381 = vunpack.c.l.s4 1983009808
        %v3382 = vunpack.c.0.s8 %v3381
        %v3383 = vlaneseq
        %v3384 = vshrl.u32 %v3383, 7
        %v3385 = vsub.s32 %v3382, %v3384
        %v3386 = vrot.slane %v3379, %v3385
        %v3387 = vcombine.low %v3378, %v3386
        %v3388 = vcombine.high %v3378, %v3386
        %v3390 = vunpack.c.l.s4 1934713408
        %v3391 = vunpack.c.0.s8 %v3390
        %v3392 = vlaneseq
        %v3393 = vshrl.u32 %v3392, 7
        %v3394 = vsub.s32 %v3391, %v3393
        %v3395 = vrot.slane %v3387, %v3394
        %v3397 = vunpack.c.l.s4 1934713408
        %v3398 = vunpack.c.0.s8 %v3397
        %v3399 = vlaneseq
        %v3400 = vshrl.u32 %v3399, 7
        %v3401 = vsub.s32 %v3398, %v3400
        %v3402 = vrot.slane %v3388, %v3401
        %v3403 = vcombine.high %v3395, 0
        %v3404 = vcombine.high %v3402, 0
        %v3405 = vcombine.low %v3267, %v3331
        %v3407 = vunpack.c.l.s4 1983009808
        %v3408 = vunpack.c.0.s8 %v3407
        %v3409 = vlaneseq
        %v3410 = vshrl.u32 %v3409, 7
        %v3411 = vsub.s32 %v3408, %v3410
        %v3412 = vrot.slane %v3405, %v3411
        %v3413 = vcombine.low %v3299, %v3363
        %v3415 = vunpack.c.l.s4 1983009808
        %v3416 = vunpack.c.0.s8 %v3415
        %v3417 = vlaneseq
        %v3418 = vshrl.u32 %v3417, 7
        %v3419 = vsub.s32 %v3416, %v3418
        %v3420 = vrot.slane %v3413, %v3419
        %v3421 = vcombine.low %v3412, %v3420
        %v3422 = vcombine.high %v3412, %v3420
        %v3424 = vunpack.c.l.s4 1934713408
        %v3425 = vunpack.c.0.s8 %v3424
        %v3426 = vlaneseq
        %v3427 = vshrl.u32 %v3426, 7
        %v3428 = vsub.s32 %v3425, %v3427
        %v3429 = vrot.slane %v3421, %v3428
        %v3431 = vunpack.c.l.s4 1934713408
        %v3432 = vunpack.c.0.s8 %v3431
        %v3433 = vlaneseq
        %v3434 = vshrl.u32 %v3433, 7
        %v3435 = vsub.s32 %v3432, %v3434
        %v3436 = vrot.slane %v3422, %v3435
        %v3437 = vcombine.high %v3429, 0
        %v3438 = vcombine.high %v3436, 0
        %v3441 = vpack.i.b16 %v3429, %v3395
        %v3443 = vshrl.u32 %v3395, 16
        %v3444 = vshrl.u32 %v3429, 16
        %v3445 = vpack.i.b16 %v3444, %v3443
        %v3449 = vpack.i.b16 %v3437, %v3403
        %v3451 = vshrl.u32 %v3403, 16
        %v3452 = vshrl.u32 %v3437, 16
        %v3453 = vpack.i.b16 %v3452, %v3451
        %v3457 = vpack.i.b16 %v3436, %v3402
        %v3459 = vshrl.u32 %v3402, 16
        %v3460 = vshrl.u32 %v3436, 16
        %v3461 = vpack.i.b16 %v3460, %v3459
        %v3465 = vpack.i.b16 %v3438, %v3404
        %v3467 = vshrl.u32 %v3404, 16
        %v3468 = vshrl.u32 %v3438, 16
        %v3469 = vpack.i.b16 %v3468, %v3467
        %3471 = vxpose.xlu0.c.b16.start [1/8] %v3441, 128
        %3472 = vxpose.xlu0.c.b16.cont [2/8] 0, 128
        %3473 = vxpose.xlu0.c.b16.cont [3/8] 0, 128
        %3474 = vxpose.xlu0.c.b16.cont [4/8] 0, 128
        %3475 = vxpose.xlu0.c.b16.cont [5/8] 0, 128
        %3476 = vxpose.xlu0.c.b16.cont [6/8] 0, 128
        %3477 = vxpose.xlu0.c.b16.cont [7/8] 0, 128
        %3478 = vxpose.xlu0.c.b16.end [8/8] 0, 128
        %v3479 = vpop.trf.xlu0
        %v3480 = vpop.trf.xlu0
        %v3481 = vpop.trf.xlu0
        %v3482 = vpop.trf.xlu0
        %v3483 = vpop.trf.xlu0
        %v3484 = vpop.trf.xlu0
        %v3485 = vpop.trf.xlu0
        %v3486 = vpop.trf.xlu0
        %3487 = vxpose.xlu0.c.b16.start [1/8] %v3445, 128
        %3488 = vxpose.xlu0.c.b16.cont [2/8] 0, 128
        %3489 = vxpose.xlu0.c.b16.cont [3/8] 0, 128
        %3490 = vxpose.xlu0.c.b16.cont [4/8] 0, 128
        %3491 = vxpose.xlu0.c.b16.cont [5/8] 0, 128
        %3492 = vxpose.xlu0.c.b16.cont [6/8] 0, 128
        %3493 = vxpose.xlu0.c.b16.cont [7/8] 0, 128
        %3494 = vxpose.xlu0.c.b16.end [8/8] 0, 128
        %v3495 = vpop.trf.xlu0
        %v3496 = vpop.trf.xlu0
        %v3497 = vpop.trf.xlu0
        %v3498 = vpop.trf.xlu0
        %v3499 = vpop.trf.xlu0
        %v3500 = vpop.trf.xlu0
        %v3501 = vpop.trf.xlu0
        %v3502 = vpop.trf.xlu0
        %3503 = vxpose.xlu0.c.b16.start [1/8] %v3449, 128
        %3504 = vxpose.xlu0.c.b16.cont [2/8] 0, 128
        %3505 = vxpose.xlu0.c.b16.cont [3/8] 0, 128
        %3506 = vxpose.xlu0.c.b16.cont [4/8] 0, 128
        %3507 = vxpose.xlu0.c.b16.cont [5/8] 0, 128
        %3508 = vxpose.xlu0.c.b16.cont [6/8] 0, 128
        %3509 = vxpose.xlu0.c.b16.cont [7/8] 0, 128
        %3510 = vxpose.xlu0.c.b16.end [8/8] 0, 128
        %v3511 = vpop.trf.xlu0
        %v3512 = vpop.trf.xlu0
        %v3513 = vpop.trf.xlu0
        %v3514 = vpop.trf.xlu0
        %v3515 = vpop.trf.xlu0
        %v3516 = vpop.trf.xlu0
        %v3517 = vpop.trf.xlu0
        %v3518 = vpop.trf.xlu0
        %3519 = vxpose.xlu0.c.b16.start [1/8] %v3453, 128
        %3520 = vxpose.xlu0.c.b16.cont [2/8] 0, 128
        %3521 = vxpose.xlu0.c.b16.cont [3/8] 0, 128
        %3522 = vxpose.xlu0.c.b16.cont [4/8] 0, 128
        %3523 = vxpose.xlu0.c.b16.cont [5/8] 0, 128
        %3524 = vxpose.xlu0.c.b16.cont [6/8] 0, 128
        %3525 = vxpose.xlu0.c.b16.cont [7/8] 0, 128
        %3526 = vxpose.xlu0.c.b16.end [8/8] 0, 128
        %v3527 = vpop.trf.xlu0
        %v3528 = vpop.trf.xlu0
        %v3529 = vpop.trf.xlu0
        %v3530 = vpop.trf.xlu0
        %v3531 = vpop.trf.xlu0
        %v3532 = vpop.trf.xlu0
        %v3533 = vpop.trf.xlu0
        %v3534 = vpop.trf.xlu0
        %3535 = vxpose.xlu0.c.b16.start [1/8] %v3457, 128
        %3536 = vxpose.xlu0.c.b16.cont [2/8] 0, 128
        %3537 = vxpose.xlu0.c.b16.cont [3/8] 0, 128
        %3538 = vxpose.xlu0.c.b16.cont [4/8] 0, 128
        %3539 = vxpose.xlu0.c.b16.cont [5/8] 0, 128
        %3540 = vxpose.xlu0.c.b16.cont [6/8] 0, 128
        %3541 = vxpose.xlu0.c.b16.cont [7/8] 0, 128
        %3542 = vxpose.xlu0.c.b16.end [8/8] 0, 128
        %v3543 = vpop.trf.xlu0
        %v3544 = vpop.trf.xlu0
        %v3545 = vpop.trf.xlu0
        %v3546 = vpop.trf.xlu0
        %v3547 = vpop.trf.xlu0
        %v3548 = vpop.trf.xlu0
        %v3549 = vpop.trf.xlu0
        %v3550 = vpop.trf.xlu0
        %3551 = vxpose.xlu0.c.b16.start [1/8] %v3461, 128
        %3552 = vxpose.xlu0.c.b16.cont [2/8] 0, 128
        %3553 = vxpose.xlu0.c.b16.cont [3/8] 0, 128
        %3554 = vxpose.xlu0.c.b16.cont [4/8] 0, 128
        %3555 = vxpose.xlu0.c.b16.cont [5/8] 0, 128
        %3556 = vxpose.xlu0.c.b16.cont [6/8] 0, 128
        %3557 = vxpose.xlu0.c.b16.cont [7/8] 0, 128
        %3558 = vxpose.xlu0.c.b16.end [8/8] 0, 128
        %v3559 = vpop.trf.xlu0
        %v3560 = vpop.trf.xlu0
        %v3561 = vpop.trf.xlu0
        %v3562 = vpop.trf.xlu0
        %v3563 = vpop.trf.xlu0
        %v3564 = vpop.trf.xlu0
        %v3565 = vpop.trf.xlu0
        %v3566 = vpop.trf.xlu0
        %3567 = vxpose.xlu0.c.b16.start [1/8] %v3465, 128
        %3568 = vxpose.xlu0.c.b16.cont [2/8] 0, 128
        %3569 = vxpose.xlu0.c.b16.cont [3/8] 0, 128
        %3570 = vxpose.xlu0.c.b16.cont [4/8] 0, 128
        %3571 = vxpose.xlu0.c.b16.cont [5/8] 0, 128
        %3572 = vxpose.xlu0.c.b16.cont [6/8] 0, 128
        %3573 = vxpose.xlu0.c.b16.cont [7/8] 0, 128
        %3574 = vxpose.xlu0.c.b16.end [8/8] 0, 128
        %v3575 = vpop.trf.xlu0
        %v3576 = vpop.trf.xlu0
        %v3577 = vpop.trf.xlu0
        %v3578 = vpop.trf.xlu0
        %v3579 = vpop.trf.xlu0
        %v3580 = vpop.trf.xlu0
        %v3581 = vpop.trf.xlu0
        %v3582 = vpop.trf.xlu0
        %3583 = vxpose.xlu0.c.b16.start [1/8] %v3469, 128
        %3584 = vxpose.xlu0.c.b16.cont [2/8] 0, 128
        %3585 = vxpose.xlu0.c.b16.cont [3/8] 0, 128
        %3586 = vxpose.xlu0.c.b16.cont [4/8] 0, 128
        %3587 = vxpose.xlu0.c.b16.cont [5/8] 0, 128
        %3588 = vxpose.xlu0.c.b16.cont [6/8] 0, 128
        %3589 = vxpose.xlu0.c.b16.cont [7/8] 0, 128
        %3590 = vxpose.xlu0.c.b16.end [8/8] 0, 128
        %v3591 = vpop.trf.xlu0
        %v3592 = vpop.trf.xlu0
        %v3593 = vpop.trf.xlu0
        %v3594 = vpop.trf.xlu0
        %v3595 = vpop.trf.xlu0
        %v3596 = vpop.trf.xlu0
        %v3597 = vpop.trf.xlu0
        %v3598 = vpop.trf.xlu0
        %v3599 = vcombine.low %v3479, %v3543
        %v3601 = vunpack.c.l.s4 1983009808
        %v3602 = vunpack.c.0.s8 %v3601
        %v3603 = vlaneseq
        %v3604 = vshrl.u32 %v3603, 7
        %v3605 = vsub.s32 %v3602, %v3604
        %v3606 = vrot.slane %v3599, %v3605
        %v3607 = vcombine.low %v3511, %v3575
        %v3609 = vunpack.c.l.s4 1983009808
        %v3610 = vunpack.c.0.s8 %v3609
        %v3611 = vlaneseq
        %v3612 = vshrl.u32 %v3611, 7
        %v3613 = vsub.s32 %v3610, %v3612
        %v3614 = vrot.slane %v3607, %v3613
        %v3615 = vcombine.low %v3606, %v3614
        %v3617 = vunpack.c.l.s4 1934713408
        %v3618 = vunpack.c.0.s8 %v3617
        %v3619 = vlaneseq
        %v3620 = vshrl.u32 %v3619, 7
        %v3621 = vsub.s32 %v3618, %v3620
        %v3622 = vrot.slane %v3615, %v3621
        %v3623 = vcombine.high %v3622, 0
        %v3624 = vcombine.low %v3495, %v3559
        %v3626 = vunpack.c.l.s4 1983009808
        %v3627 = vunpack.c.0.s8 %v3626
        %v3628 = vlaneseq
        %v3629 = vshrl.u32 %v3628, 7
        %v3630 = vsub.s32 %v3627, %v3629
        %v3631 = vrot.slane %v3624, %v3630
        %v3632 = vcombine.low %v3527, %v3591
        %v3634 = vunpack.c.l.s4 1983009808
        %v3635 = vunpack.c.0.s8 %v3634
        %v3636 = vlaneseq
        %v3637 = vshrl.u32 %v3636, 7
        %v3638 = vsub.s32 %v3635, %v3637
        %v3639 = vrot.slane %v3632, %v3638
        %v3640 = vcombine.low %v3631, %v3639
        %v3642 = vunpack.c.l.s4 1934713408
        %v3643 = vunpack.c.0.s8 %v3642
        %v3644 = vlaneseq
        %v3645 = vshrl.u32 %v3644, 7
        %v3646 = vsub.s32 %v3643, %v3645
        %v3647 = vrot.slane %v3640, %v3646
        %v3648 = vcombine.high %v3647, 0
        %v3651 = vpack.i.b16 %v3647, %v3622
        %v3652 = vshrl.u32 %v3622, 16
        %v3653 = vshrl.u32 %v3647, 16
        %v3654 = vpack.i.b16 %v3653, %v3652
        %v3657 = vpack.i.b16 %v3648, %v3623
        %v3658 = vshrl.u32 %v3623, 16
        %v3659 = vshrl.u32 %v3648, 16
        %v3660 = vpack.i.b16 %v3659, %v3658
        %v3662 = vsel %vm1547, %v3233, 0
        %v3665 = vsel %vm1551, %v3651, 0
        %3667 = vmatprep.subr.bf16.mxu0 0
        %3668 = vmatpush1.bf16.msra.mxu0 %v3665
        %3669 = vmatprep.subr.bf16.mxu0 0
        %3670 = vmatpush1.bf16.msra.mxu0 0
        %3671 = vmatprep.subr.bf16.mxu0 0
        %3672 = vmatpush1.bf16.msra.mxu0 0
        %3673 = vmatprep.subr.bf16.mxu0 0
        %3674 = vmatpush1.bf16.msra.mxu0 0
        %3675 = vmatprep.subr.bf16.mxu0 0
        %3676 = vmatpush1.bf16.msra.mxu0 0
        %3677 = vmatprep.subr.bf16.mxu0 0
        %3678 = vmatpush1.bf16.msra.mxu0 0
        %3679 = vmatprep.subr.bf16.mxu0 0
        %3680 = vmatpush1.bf16.msra.mxu0 0
        %3681 = vmatprep.subr.bf16.mxu0 0
        %3682 = vmatpush1.bf16.msra.mxu0 0
        %3683 = vmatprep.subr.bf16.mxu0 0
        %3684 = vmatpush1.bf16.msra.mxu0 0
        %3685 = vmatprep.subr.bf16.mxu0 0
        %3686 = vmatpush1.bf16.msra.mxu0 0
        %3687 = vmatprep.subr.bf16.mxu0 0
        %3688 = vmatpush1.bf16.msra.mxu0 0
        %3689 = vmatprep.subr.bf16.mxu0 0
        %3690 = vmatpush1.bf16.msra.mxu0 0
        %3691 = vmatprep.subr.bf16.mxu0 0
        %3692 = vmatpush1.bf16.msra.mxu0 0
        %3693 = vmatprep.subr.bf16.mxu0 0
        %3694 = vmatpush1.bf16.msra.mxu0 0
        %3695 = vmatprep.subr.bf16.mxu0 0
        %3696 = vmatpush1.bf16.msra.mxu0 0
        %3697 = vmatprep.subr.bf16.mxu0 0
        %3698 = vmatpush1.bf16.msra.mxu0 0
        %3699 = vmatprep.mubr.bf16.mxu0 0
        %3700 = vmatmul.mubr.bf16.gmra.mrb[0].mxu0 %v3662
        %v3701 = vpop.f32.mrb[0].mxu0
        %v3702 = vadd.f32 0.0, %v3701
        %v3703 = vpop.f32.mrb[0].mxu0
        %v3704 = vpop.f32.mrb[0].mxu0
        %v3705 = vpop.f32.mrb[0].mxu0
        %3706 = vdwg.mxu0
        %v3708 = vsel %vm1547, %v3236, 0
        %v3711 = vsel %vm1551, %v3654, 0
        %3713 = vmatprep.subr.bf16.mxu0 0
        %3714 = vmatpush1.bf16.msra.mxu0 %v3711
        %3715 = vmatprep.subr.bf16.mxu0 0
        %3716 = vmatpush1.bf16.msra.mxu0 0
        %3717 = vmatprep.subr.bf16.mxu0 0
        %3718 = vmatpush1.bf16.msra.mxu0 0
        %3719 = vmatprep.subr.bf16.mxu0 0
        %3720 = vmatpush1.bf16.msra.mxu0 0
        %3721 = vmatprep.subr.bf16.mxu0 0
        %3722 = vmatpush1.bf16.msra.mxu0 0
        %3723 = vmatprep.subr.bf16.mxu0 0
        %3724 = vmatpush1.bf16.msra.mxu0 0
        %3725 = vmatprep.subr.bf16.mxu0 0
        %3726 = vmatpush1.bf16.msra.mxu0 0
        %3727 = vmatprep.subr.bf16.mxu0 0
        %3728 = vmatpush1.bf16.msra.mxu0 0
        %3729 = vmatprep.subr.bf16.mxu0 0
        %3730 = vmatpush1.bf16.msra.mxu0 0
        %3731 = vmatprep.subr.bf16.mxu0 0
        %3732 = vmatpush1.bf16.msra.mxu0 0
        %3733 = vmatprep.subr.bf16.mxu0 0
        %3734 = vmatpush1.bf16.msra.mxu0 0
        %3735 = vmatprep.subr.bf16.mxu0 0
        %3736 = vmatpush1.bf16.msra.mxu0 0
        %3737 = vmatprep.subr.bf16.mxu0 0
        %3738 = vmatpush1.bf16.msra.mxu0 0
        %3739 = vmatprep.subr.bf16.mxu0 0
        %3740 = vmatpush1.bf16.msra.mxu0 0
        %3741 = vmatprep.subr.bf16.mxu0 0
        %3742 = vmatpush1.bf16.msra.mxu0 0
        %3743 = vmatprep.subr.bf16.mxu0 0
        %3744 = vmatpush1.bf16.msra.mxu0 0
        %3745 = vmatprep.mubr.bf16.mxu0 0
        %3746 = vmatmul.mubr.bf16.gmra.mrb[0].mxu0 %v3708
        %v3747 = vpop.f32.mrb[0].mxu0
        %v3748 = vadd.f32 0.0, %v3747
        %v3749 = vpop.f32.mrb[0].mxu0
        %v3750 = vpop.f32.mrb[0].mxu0
        %v3751 = vpop.f32.mrb[0].mxu0
        %3752 = vdwg.mxu0
        %v3754 = vsel %vm1547, %v3239, 0
        %v3757 = vsel %vm1551, %v3657, 0
        %3759 = vmatprep.subr.bf16.mxu0 0
        %3760 = vmatpush1.bf16.msra.mxu0 %v3757
        %3761 = vmatprep.subr.bf16.mxu0 0
        %3762 = vmatpush1.bf16.msra.mxu0 0
        %3763 = vmatprep.subr.bf16.mxu0 0
        %3764 = vmatpush1.bf16.msra.mxu0 0
        %3765 = vmatprep.subr.bf16.mxu0 0
        %3766 = vmatpush1.bf16.msra.mxu0 0
        %3767 = vmatprep.subr.bf16.mxu0 0
        %3768 = vmatpush1.bf16.msra.mxu0 0
        %3769 = vmatprep.subr.bf16.mxu0 0
        %3770 = vmatpush1.bf16.msra.mxu0 0
        %3771 = vmatprep.subr.bf16.mxu0 0
        %3772 = vmatpush1.bf16.msra.mxu0 0
        %3773 = vmatprep.subr.bf16.mxu0 0
        %3774 = vmatpush1.bf16.msra.mxu0 0
        %3775 = vmatprep.subr.bf16.mxu0 0
        %3776 = vmatpush1.bf16.msra.mxu0 0
        %3777 = vmatprep.subr.bf16.mxu0 0
        %3778 = vmatpush1.bf16.msra.mxu0 0
        %3779 = vmatprep.subr.bf16.mxu0 0
        %3780 = vmatpush1.bf16.msra.mxu0 0
        %3781 = vmatprep.subr.bf16.mxu0 0
        %3782 = vmatpush1.bf16.msra.mxu0 0
        %3783 = vmatprep.subr.bf16.mxu0 0
        %3784 = vmatpush1.bf16.msra.mxu0 0
        %3785 = vmatprep.subr.bf16.mxu0 0
        %3786 = vmatpush1.bf16.msra.mxu0 0
        %3787 = vmatprep.subr.bf16.mxu0 0
        %3788 = vmatpush1.bf16.msra.mxu0 0
        %3789 = vmatprep.subr.bf16.mxu0 0
        %3790 = vmatpush1.bf16.msra.mxu0 0
        %3791 = vmatprep.mubr.bf16.mxu0 0
        %3792 = vmatmul.mubr.bf16.gmra.mrb[0].mxu0 %v3754
        %v3793 = vpop.f32.mrb[0].mxu0
        %v3794 = vadd.f32 0.0, %v3793
        %v3795 = vpop.f32.mrb[0].mxu0
        %v3796 = vpop.f32.mrb[0].mxu0
        %v3797 = vpop.f32.mrb[0].mxu0
        %3798 = vdwg.mxu0
        %v3800 = vsel %vm1547, %v3242, 0
        %v3803 = vsel %vm1551, %v3660, 0
        %3805 = vmatprep.subr.bf16.mxu0 0
        %3806 = vmatpush1.bf16.msra.mxu0 %v3803
        %3807 = vmatprep.subr.bf16.mxu0 0
        %3808 = vmatpush1.bf16.msra.mxu0 0
        %3809 = vmatprep.subr.bf16.mxu0 0
        %3810 = vmatpush1.bf16.msra.mxu0 0
        %3811 = vmatprep.subr.bf16.mxu0 0
        %3812 = vmatpush1.bf16.msra.mxu0 0
        %3813 = vmatprep.subr.bf16.mxu0 0
        %3814 = vmatpush1.bf16.msra.mxu0 0
        %3815 = vmatprep.subr.bf16.mxu0 0
        %3816 = vmatpush1.bf16.msra.mxu0 0
        %3817 = vmatprep.subr.bf16.mxu0 0
        %3818 = vmatpush1.bf16.msra.mxu0 0
        %3819 = vmatprep.subr.bf16.mxu0 0
        %3820 = vmatpush1.bf16.msra.mxu0 0
        %3821 = vmatprep.subr.bf16.mxu0 0
        %3822 = vmatpush1.bf16.msra.mxu0 0
        %3823 = vmatprep.subr.bf16.mxu0 0
        %3824 = vmatpush1.bf16.msra.mxu0 0
        %3825 = vmatprep.subr.bf16.mxu0 0
        %3826 = vmatpush1.bf16.msra.mxu0 0
        %3827 = vmatprep.subr.bf16.mxu0 0
        %3828 = vmatpush1.bf16.msra.mxu0 0
        %3829 = vmatprep.subr.bf16.mxu0 0
        %3830 = vmatpush1.bf16.msra.mxu0 0
        %3831 = vmatprep.subr.bf16.mxu0 0
        %3832 = vmatpush1.bf16.msra.mxu0 0
        %3833 = vmatprep.subr.bf16.mxu0 0
        %3834 = vmatpush1.bf16.msra.mxu0 0
        %3835 = vmatprep.subr.bf16.mxu0 0
        %3836 = vmatpush1.bf16.msra.mxu0 0
        %3837 = vmatprep.mubr.bf16.mxu0 0
        %3838 = vmatmul.mubr.bf16.gmra.mrb[0].mxu0 %v3800
        %v3839 = vpop.f32.mrb[0].mxu0
        %v3840 = vadd.f32 0.0, %v3839
        %v3841 = vpop.f32.mrb[0].mxu0
        %v3842 = vpop.f32.mrb[0].mxu0
        %v3843 = vpop.f32.mrb[0].mxu0
        %3844 = vdwg.mxu0
        %v3845 = vmul.f32 %v3702, 0.35355338
        %v3846 = vmul.f32 %v3748, 0.35355338
        %v3847 = vmul.f32 %v3794, 0.35355338
        %v3848 = vmul.f32 %v3840, 0.35355338
        %v3849 = vsel %vm1547, %v3845, -inf
        %3850 = vmax.xlane.f32.xlu0 %v3849
        %v3851 = vpop.xlane.xlu0 %3850
        %v3852 = vsel %vm1547, %v3846, -inf
        %3853 = vmax.xlane.f32.xlu0 %v3852
        %v3854 = vpop.xlane.xlu0 %3853
        %v3855 = vsel %vm1547, %v3847, -inf
        %3856 = vmax.xlane.f32.xlu0 %v3855
        %v3857 = vpop.xlane.xlu0 %3856
        %v3858 = vsel %vm1547, %v3848, -inf
        %3859 = vmax.xlane.f32.xlu0 %v3858
        %v3860 = vpop.xlane.xlu0 %3859
        %v3861 = vsub.f32 %v3845, %v3851
        %v3862 = vsub.f32 %v3846, %v3854
        %v3863 = vsub.f32 %v3847, %v3857
        %v3864 = vsub.f32 %v3848, %v3860
        %v3865 = vmul.f32 %v3861, 1.442695
        %v3866 = vpow.pop %v3865
        %v3867 = vmul.f32 %v3862, 1.442695
        %v3868 = vpow.pop %v3867
        %v3869 = vmul.f32 %v3863, 1.442695
        %v3870 = vpow.pop %v3869
        %v3871 = vmul.f32 %v3864, 1.442695
        %v3872 = vpow.pop %v3871
        %v3873 = vsel %vm1547, %v3866, 0.0
        %3874 = vadd.xlane.f32.xlu0 %v3873
        %v3875 = vpop.xlane.xlu0 %3874
        %v3876 = vsel %vm1547, %v3868, 0.0
        %3877 = vadd.xlane.f32.xlu0 %v3876
        %v3878 = vpop.xlane.xlu0 %3877
        %v3879 = vsel %vm1547, %v3870, 0.0
        %3880 = vadd.xlane.f32.xlu0 %v3879
        %v3881 = vpop.xlane.xlu0 %3880
        %v3882 = vsel %vm1547, %v3872, 0.0
        %3883 = vadd.xlane.f32.xlu0 %v3882
        %v3884 = vpop.xlane.xlu0 %3883
        %v3885 = vrcp.pop %v3875
        %v3886 = vrcp.pop %v3878
        %v3887 = vrcp.pop %v3881
        %v3888 = vrcp.pop %v3884
        %v3889 = vmul.f32 %v3866, %v3885
        %v3890 = vmul.f32 %v3868, %v3886
        %v3891 = vmul.f32 %v3870, %v3887
        %v3892 = vmul.f32 %v3872, %v3888
        %v3893 = vpack.c.bf16 %v3889, %v3889
        %v3894 = vpack.c.bf16 %v3890, %v3890
        %v3895 = vpack.c.bf16 %v3891, %v3891
        %v3896 = vpack.c.bf16 %v3892, %v3892
        %3897 = vxpose.xlu0.c.b16.start [1/8] %v3173, 128
        %3898 = vxpose.xlu0.c.b16.cont [2/8] 0, 128
        %3899 = vxpose.xlu0.c.b16.cont [3/8] 0, 128
        %3900 = vxpose.xlu0.c.b16.cont [4/8] 0, 128
        %3901 = vxpose.xlu0.c.b16.cont [5/8] 0, 128
        %3902 = vxpose.xlu0.c.b16.cont [6/8] 0, 128
        %3903 = vxpose.xlu0.c.b16.cont [7/8] 0, 128
        %3904 = vxpose.xlu0.c.b16.end [8/8] 0, 128
        %v3905 = vpop.trf.xlu0
        %v3906 = vpop.trf.xlu0
        %v3907 = vpop.trf.xlu0
        %v3908 = vpop.trf.xlu0
        %v3909 = vpop.trf.xlu0
        %v3910 = vpop.trf.xlu0
        %v3911 = vpop.trf.xlu0
        %v3912 = vpop.trf.xlu0
        %3913 = vxpose.xlu0.c.b16.start [1/8] %v3174, 128
        %3914 = vxpose.xlu0.c.b16.cont [2/8] 0, 128
        %3915 = vxpose.xlu0.c.b16.cont [3/8] 0, 128
        %3916 = vxpose.xlu0.c.b16.cont [4/8] 0, 128
        %3917 = vxpose.xlu0.c.b16.cont [5/8] 0, 128
        %3918 = vxpose.xlu0.c.b16.cont [6/8] 0, 128
        %3919 = vxpose.xlu0.c.b16.cont [7/8] 0, 128
        %3920 = vxpose.xlu0.c.b16.end [8/8] 0, 128
        %v3921 = vpop.trf.xlu0
        %v3922 = vpop.trf.xlu0
        %v3923 = vpop.trf.xlu0
        %v3924 = vpop.trf.xlu0
        %v3925 = vpop.trf.xlu0
        %v3926 = vpop.trf.xlu0
        %v3927 = vpop.trf.xlu0
        %v3928 = vpop.trf.xlu0
        %3929 = vxpose.xlu0.c.b16.start [1/8] %v3175, 128
        %3930 = vxpose.xlu0.c.b16.cont [2/8] 0, 128
        %3931 = vxpose.xlu0.c.b16.cont [3/8] 0, 128
        %3932 = vxpose.xlu0.c.b16.cont [4/8] 0, 128
        %3933 = vxpose.xlu0.c.b16.cont [5/8] 0, 128
        %3934 = vxpose.xlu0.c.b16.cont [6/8] 0, 128
        %3935 = vxpose.xlu0.c.b16.cont [7/8] 0, 128
        %3936 = vxpose.xlu0.c.b16.end [8/8] 0, 128
        %v3937 = vpop.trf.xlu0
        %v3938 = vpop.trf.xlu0
        %v3939 = vpop.trf.xlu0
        %v3940 = vpop.trf.xlu0
        %v3941 = vpop.trf.xlu0
        %v3942 = vpop.trf.xlu0
        %v3943 = vpop.trf.xlu0
        %v3944 = vpop.trf.xlu0
        %3945 = vxpose.xlu0.c.b16.start [1/8] %v3176, 128
        %3946 = vxpose.xlu0.c.b16.cont [2/8] 0, 128
        %3947 = vxpose.xlu0.c.b16.cont [3/8] 0, 128
        %3948 = vxpose.xlu0.c.b16.cont [4/8] 0, 128
        %3949 = vxpose.xlu0.c.b16.cont [5/8] 0, 128
        %3950 = vxpose.xlu0.c.b16.cont [6/8] 0, 128
        %3951 = vxpose.xlu0.c.b16.cont [7/8] 0, 128
        %3952 = vxpose.xlu0.c.b16.end [8/8] 0, 128
        %v3953 = vpop.trf.xlu0
        %v3954 = vpop.trf.xlu0
        %v3955 = vpop.trf.xlu0
        %v3956 = vpop.trf.xlu0
        %v3957 = vpop.trf.xlu0
        %v3958 = vpop.trf.xlu0
        %v3959 = vpop.trf.xlu0
        %v3960 = vpop.trf.xlu0
        %3961 = vxpose.xlu0.c.b16.start [1/8] %v3177, 128
        %3962 = vxpose.xlu0.c.b16.cont [2/8] 0, 128
        %3963 = vxpose.xlu0.c.b16.cont [3/8] 0, 128
        %3964 = vxpose.xlu0.c.b16.cont [4/8] 0, 128
        %3965 = vxpose.xlu0.c.b16.cont [5/8] 0, 128
        %3966 = vxpose.xlu0.c.b16.cont [6/8] 0, 128
        %3967 = vxpose.xlu0.c.b16.cont [7/8] 0, 128
        %3968 = vxpose.xlu0.c.b16.end [8/8] 0, 128
        %v3969 = vpop.trf.xlu0
        %v3970 = vpop.trf.xlu0
        %v3971 = vpop.trf.xlu0
        %v3972 = vpop.trf.xlu0
        %v3973 = vpop.trf.xlu0
        %v3974 = vpop.trf.xlu0
        %v3975 = vpop.trf.xlu0
        %v3976 = vpop.trf.xlu0
        %3977 = vxpose.xlu0.c.b16.start [1/8] %v3178, 128
        %3978 = vxpose.xlu0.c.b16.cont [2/8] 0, 128
        %3979 = vxpose.xlu0.c.b16.cont [3/8] 0, 128
        %3980 = vxpose.xlu0.c.b16.cont [4/8] 0, 128
        %3981 = vxpose.xlu0.c.b16.cont [5/8] 0, 128
        %3982 = vxpose.xlu0.c.b16.cont [6/8] 0, 128
        %3983 = vxpose.xlu0.c.b16.cont [7/8] 0, 128
        %3984 = vxpose.xlu0.c.b16.end [8/8] 0, 128
        %v3985 = vpop.trf.xlu0
        %v3986 = vpop.trf.xlu0
        %v3987 = vpop.trf.xlu0
        %v3988 = vpop.trf.xlu0
        %v3989 = vpop.trf.xlu0
        %v3990 = vpop.trf.xlu0
        %v3991 = vpop.trf.xlu0
        %v3992 = vpop.trf.xlu0
        %3993 = vxpose.xlu0.c.b16.start [1/8] %v3179, 128
        %3994 = vxpose.xlu0.c.b16.cont [2/8] 0, 128
        %3995 = vxpose.xlu0.c.b16.cont [3/8] 0, 128
        %3996 = vxpose.xlu0.c.b16.cont [4/8] 0, 128
        %3997 = vxpose.xlu0.c.b16.cont [5/8] 0, 128
        %3998 = vxpose.xlu0.c.b16.cont [6/8] 0, 128
        %3999 = vxpose.xlu0.c.b16.cont [7/8] 0, 128
        %4000 = vxpose.xlu0.c.b16.end [8/8] 0, 128
        %v4001 = vpop.trf.xlu0
        %v4002 = vpop.trf.xlu0
        %v4003 = vpop.trf.xlu0
        %v4004 = vpop.trf.xlu0
        %v4005 = vpop.trf.xlu0
        %v4006 = vpop.trf.xlu0
        %v4007 = vpop.trf.xlu0
        %v4008 = vpop.trf.xlu0
        %4009 = vxpose.xlu0.c.b16.start [1/8] %v3180, 128
        %4010 = vxpose.xlu0.c.b16.cont [2/8] 0, 128
        %4011 = vxpose.xlu0.c.b16.cont [3/8] 0, 128
        %4012 = vxpose.xlu0.c.b16.cont [4/8] 0, 128
        %4013 = vxpose.xlu0.c.b16.cont [5/8] 0, 128
        %4014 = vxpose.xlu0.c.b16.cont [6/8] 0, 128
        %4015 = vxpose.xlu0.c.b16.cont [7/8] 0, 128
        %4016 = vxpose.xlu0.c.b16.end [8/8] 0, 128
        %v4017 = vpop.trf.xlu0
        %v4018 = vpop.trf.xlu0
        %v4019 = vpop.trf.xlu0
        %v4020 = vpop.trf.xlu0
        %v4021 = vpop.trf.xlu0
        %v4022 = vpop.trf.xlu0
        %v4023 = vpop.trf.xlu0
        %v4024 = vpop.trf.xlu0
        %v4025 = vcombine.low %v3905, %v3969
        %v4027 = vunpack.c.l.s4 1983009808
        %v4028 = vunpack.c.0.s8 %v4027
        %v4029 = vlaneseq
        %v4030 = vshrl.u32 %v4029, 7
        %v4031 = vsub.s32 %v4028, %v4030
        %v4032 = vrot.slane %v4025, %v4031
        %v4033 = vcombine.low %v3937, %v4001
        %v4035 = vunpack.c.l.s4 1983009808
        %v4036 = vunpack.c.0.s8 %v4035
        %v4037 = vlaneseq
        %v4038 = vshrl.u32 %v4037, 7
        %v4039 = vsub.s32 %v4036, %v4038
        %v4040 = vrot.slane %v4033, %v4039
        %v4041 = vcombine.low %v4032, %v4040
        %v4042 = vcombine.high %v4032, %v4040
        %v4044 = vunpack.c.l.s4 1934713408
        %v4045 = vunpack.c.0.s8 %v4044
        %v4046 = vlaneseq
        %v4047 = vshrl.u32 %v4046, 7
        %v4048 = vsub.s32 %v4045, %v4047
        %v4049 = vrot.slane %v4041, %v4048
        %v4051 = vunpack.c.l.s4 1934713408
        %v4052 = vunpack.c.0.s8 %v4051
        %v4053 = vlaneseq
        %v4054 = vshrl.u32 %v4053, 7
        %v4055 = vsub.s32 %v4052, %v4054
        %v4056 = vrot.slane %v4042, %v4055
        %v4057 = vcombine.high %v4049, 0
        %v4058 = vcombine.high %v4056, 0
        %v4059 = vcombine.low %v3921, %v3985
        %v4061 = vunpack.c.l.s4 1983009808
        %v4062 = vunpack.c.0.s8 %v4061
        %v4063 = vlaneseq
        %v4064 = vshrl.u32 %v4063, 7
        %v4065 = vsub.s32 %v4062, %v4064
        %v4066 = vrot.slane %v4059, %v4065
        %v4067 = vcombine.low %v3953, %v4017
        %v4069 = vunpack.c.l.s4 1983009808
        %v4070 = vunpack.c.0.s8 %v4069
        %v4071 = vlaneseq
        %v4072 = vshrl.u32 %v4071, 7
        %v4073 = vsub.s32 %v4070, %v4072
        %v4074 = vrot.slane %v4067, %v4073
        %v4075 = vcombine.low %v4066, %v4074
        %v4076 = vcombine.high %v4066, %v4074
        %v4078 = vunpack.c.l.s4 1934713408
        %v4079 = vunpack.c.0.s8 %v4078
        %v4080 = vlaneseq
        %v4081 = vshrl.u32 %v4080, 7
        %v4082 = vsub.s32 %v4079, %v4081
        %v4083 = vrot.slane %v4075, %v4082
        %v4085 = vunpack.c.l.s4 1934713408
        %v4086 = vunpack.c.0.s8 %v4085
        %v4087 = vlaneseq
        %v4088 = vshrl.u32 %v4087, 7
        %v4089 = vsub.s32 %v4086, %v4088
        %v4090 = vrot.slane %v4076, %v4089
        %v4091 = vcombine.high %v4083, 0
        %v4092 = vcombine.high %v4090, 0
        %v4095 = vpack.i.b16 %v4083, %v4049
        %v4097 = vshrl.u32 %v4049, 16
        %v4098 = vshrl.u32 %v4083, 16
        %v4099 = vpack.i.b16 %v4098, %v4097
        %v4103 = vpack.i.b16 %v4091, %v4057
        %v4105 = vshrl.u32 %v4057, 16
        %v4106 = vshrl.u32 %v4091, 16
        %v4107 = vpack.i.b16 %v4106, %v4105
        %v4111 = vpack.i.b16 %v4090, %v4056
        %v4113 = vshrl.u32 %v4056, 16
        %v4114 = vshrl.u32 %v4090, 16
        %v4115 = vpack.i.b16 %v4114, %v4113
        %v4119 = vpack.i.b16 %v4092, %v4058
        %v4121 = vshrl.u32 %v4058, 16
        %v4122 = vshrl.u32 %v4092, 16
        %v4123 = vpack.i.b16 %v4122, %v4121
        %4125 = vxpose.xlu0.c.b16.start [1/8] %v4095, 128
        %4126 = vxpose.xlu0.c.b16.cont [2/8] 0, 128
        %4127 = vxpose.xlu0.c.b16.cont [3/8] 0, 128
        %4128 = vxpose.xlu0.c.b16.cont [4/8] 0, 128
        %4129 = vxpose.xlu0.c.b16.cont [5/8] 0, 128
        %4130 = vxpose.xlu0.c.b16.cont [6/8] 0, 128
        %4131 = vxpose.xlu0.c.b16.cont [7/8] 0, 128
        %4132 = vxpose.xlu0.c.b16.end [8/8] 0, 128
        %v4133 = vpop.trf.xlu0
        %v4134 = vpop.trf.xlu0
        %v4135 = vpop.trf.xlu0
        %v4136 = vpop.trf.xlu0
        %v4137 = vpop.trf.xlu0
        %v4138 = vpop.trf.xlu0
        %v4139 = vpop.trf.xlu0
        %v4140 = vpop.trf.xlu0
        %4141 = vxpose.xlu0.c.b16.start [1/8] %v4099, 128
        %4142 = vxpose.xlu0.c.b16.cont [2/8] 0, 128
        %4143 = vxpose.xlu0.c.b16.cont [3/8] 0, 128
        %4144 = vxpose.xlu0.c.b16.cont [4/8] 0, 128
        %4145 = vxpose.xlu0.c.b16.cont [5/8] 0, 128
        %4146 = vxpose.xlu0.c.b16.cont [6/8] 0, 128
        %4147 = vxpose.xlu0.c.b16.cont [7/8] 0, 128
        %4148 = vxpose.xlu0.c.b16.end [8/8] 0, 128
        %v4149 = vpop.trf.xlu0
        %v4150 = vpop.trf.xlu0
        %v4151 = vpop.trf.xlu0
        %v4152 = vpop.trf.xlu0
        %v4153 = vpop.trf.xlu0
        %v4154 = vpop.trf.xlu0
        %v4155 = vpop.trf.xlu0
        %v4156 = vpop.trf.xlu0
        %4157 = vxpose.xlu0.c.b16.start [1/8] %v4103, 128
        %4158 = vxpose.xlu0.c.b16.cont [2/8] 0, 128
        %4159 = vxpose.xlu0.c.b16.cont [3/8] 0, 128
        %4160 = vxpose.xlu0.c.b16.cont [4/8] 0, 128
        %4161 = vxpose.xlu0.c.b16.cont [5/8] 0, 128
        %4162 = vxpose.xlu0.c.b16.cont [6/8] 0, 128
        %4163 = vxpose.xlu0.c.b16.cont [7/8] 0, 128
        %4164 = vxpose.xlu0.c.b16.end [8/8] 0, 128
        %v4165 = vpop.trf.xlu0
        %v4166 = vpop.trf.xlu0
        %v4167 = vpop.trf.xlu0
        %v4168 = vpop.trf.xlu0
        %v4169 = vpop.trf.xlu0
        %v4170 = vpop.trf.xlu0
        %v4171 = vpop.trf.xlu0
        %v4172 = vpop.trf.xlu0
        %4173 = vxpose.xlu0.c.b16.start [1/8] %v4107, 128
        %4174 = vxpose.xlu0.c.b16.cont [2/8] 0, 128
        %4175 = vxpose.xlu0.c.b16.cont [3/8] 0, 128
        %4176 = vxpose.xlu0.c.b16.cont [4/8] 0, 128
        %4177 = vxpose.xlu0.c.b16.cont [5/8] 0, 128
        %4178 = vxpose.xlu0.c.b16.cont [6/8] 0, 128
        %4179 = vxpose.xlu0.c.b16.cont [7/8] 0, 128
        %4180 = vxpose.xlu0.c.b16.end [8/8] 0, 128
        %v4181 = vpop.trf.xlu0
        %v4182 = vpop.trf.xlu0
        %v4183 = vpop.trf.xlu0
        %v4184 = vpop.trf.xlu0
        %v4185 = vpop.trf.xlu0
        %v4186 = vpop.trf.xlu0
        %v4187 = vpop.trf.xlu0
        %v4188 = vpop.trf.xlu0
        %4189 = vxpose.xlu0.c.b16.start [1/8] %v4111, 128
        %4190 = vxpose.xlu0.c.b16.cont [2/8] 0, 128
        %4191 = vxpose.xlu0.c.b16.cont [3/8] 0, 128
        %4192 = vxpose.xlu0.c.b16.cont [4/8] 0, 128
        %4193 = vxpose.xlu0.c.b16.cont [5/8] 0, 128
        %4194 = vxpose.xlu0.c.b16.cont [6/8] 0, 128
        %4195 = vxpose.xlu0.c.b16.cont [7/8] 0, 128
        %4196 = vxpose.xlu0.c.b16.end [8/8] 0, 128
        %v4197 = vpop.trf.xlu0
        %v4198 = vpop.trf.xlu0
        %v4199 = vpop.trf.xlu0
        %v4200 = vpop.trf.xlu0
        %v4201 = vpop.trf.xlu0
        %v4202 = vpop.trf.xlu0
        %v4203 = vpop.trf.xlu0
        %v4204 = vpop.trf.xlu0
        %4205 = vxpose.xlu0.c.b16.start [1/8] %v4115, 128
        %4206 = vxpose.xlu0.c.b16.cont [2/8] 0, 128
        %4207 = vxpose.xlu0.c.b16.cont [3/8] 0, 128
        %4208 = vxpose.xlu0.c.b16.cont [4/8] 0, 128
        %4209 = vxpose.xlu0.c.b16.cont [5/8] 0, 128
        %4210 = vxpose.xlu0.c.b16.cont [6/8] 0, 128
        %4211 = vxpose.xlu0.c.b16.cont [7/8] 0, 128
        %4212 = vxpose.xlu0.c.b16.end [8/8] 0, 128
        %v4213 = vpop.trf.xlu0
        %v4214 = vpop.trf.xlu0
        %v4215 = vpop.trf.xlu0
        %v4216 = vpop.trf.xlu0
        %v4217 = vpop.trf.xlu0
        %v4218 = vpop.trf.xlu0
        %v4219 = vpop.trf.xlu0
        %v4220 = vpop.trf.xlu0
        %4221 = vxpose.xlu0.c.b16.start [1/8] %v4119, 128
        %4222 = vxpose.xlu0.c.b16.cont [2/8] 0, 128
        %4223 = vxpose.xlu0.c.b16.cont [3/8] 0, 128
        %4224 = vxpose.xlu0.c.b16.cont [4/8] 0, 128
        %4225 = vxpose.xlu0.c.b16.cont [5/8] 0, 128
        %4226 = vxpose.xlu0.c.b16.cont [6/8] 0, 128
        %4227 = vxpose.xlu0.c.b16.cont [7/8] 0, 128
        %4228 = vxpose.xlu0.c.b16.end [8/8] 0, 128
        %v4229 = vpop.trf.xlu0
        %v4230 = vpop.trf.xlu0
        %v4231 = vpop.trf.xlu0
        %v4232 = vpop.trf.xlu0
        %v4233 = vpop.trf.xlu0
        %v4234 = vpop.trf.xlu0
        %v4235 = vpop.trf.xlu0
        %v4236 = vpop.trf.xlu0
        %4237 = vxpose.xlu0.c.b16.start [1/8] %v4123, 128
        %4238 = vxpose.xlu0.c.b16.cont [2/8] 0, 128
        %4239 = vxpose.xlu0.c.b16.cont [3/8] 0, 128
        %4240 = vxpose.xlu0.c.b16.cont [4/8] 0, 128
        %4241 = vxpose.xlu0.c.b16.cont [5/8] 0, 128
        %4242 = vxpose.xlu0.c.b16.cont [6/8] 0, 128
        %4243 = vxpose.xlu0.c.b16.cont [7/8] 0, 128
        %4244 = vxpose.xlu0.c.b16.end [8/8] 0, 128
        %v4245 = vpop.trf.xlu0
        %v4246 = vpop.trf.xlu0
        %v4247 = vpop.trf.xlu0
        %v4248 = vpop.trf.xlu0
        %v4249 = vpop.trf.xlu0
        %v4250 = vpop.trf.xlu0
        %v4251 = vpop.trf.xlu0
        %v4252 = vpop.trf.xlu0
        %v4253 = vcombine.low %v4133, %v4197
        %v4255 = vunpack.c.l.s4 1983009808
        %v4256 = vunpack.c.0.s8 %v4255
        %v4257 = vlaneseq
        %v4258 = vshrl.u32 %v4257, 7
        %v4259 = vsub.s32 %v4256, %v4258
        %v4260 = vrot.slane %v4253, %v4259
        %v4261 = vcombine.low %v4165, %v4229
        %v4263 = vunpack.c.l.s4 1983009808
        %v4264 = vunpack.c.0.s8 %v4263
        %v4265 = vlaneseq
        %v4266 = vshrl.u32 %v4265, 7
        %v4267 = vsub.s32 %v4264, %v4266
        %v4268 = vrot.slane %v4261, %v4267
        %v4269 = vcombine.low %v4260, %v4268
        %v4271 = vunpack.c.l.s4 1934713408
        %v4272 = vunpack.c.0.s8 %v4271
        %v4273 = vlaneseq
        %v4274 = vshrl.u32 %v4273, 7
        %v4275 = vsub.s32 %v4272, %v4274
        %v4276 = vrot.slane %v4269, %v4275
        %v4277 = vcombine.high %v4276, 0
        %v4278 = vcombine.low %v4149, %v4213
        %v4280 = vunpack.c.l.s4 1983009808
        %v4281 = vunpack.c.0.s8 %v4280
        %v4282 = vlaneseq
        %v4283 = vshrl.u32 %v4282, 7
        %v4284 = vsub.s32 %v4281, %v4283
        %v4285 = vrot.slane %v4278, %v4284
        %v4286 = vcombine.low %v4181, %v4245
        %v4288 = vunpack.c.l.s4 1983009808
        %v4289 = vunpack.c.0.s8 %v4288
        %v4290 = vlaneseq
        %v4291 = vshrl.u32 %v4290, 7
        %v4292 = vsub.s32 %v4289, %v4291
        %v4293 = vrot.slane %v4286, %v4292
        %v4294 = vcombine.low %v4285, %v4293
        %v4296 = vunpack.c.l.s4 1934713408
        %v4297 = vunpack.c.0.s8 %v4296
        %v4298 = vlaneseq
        %v4299 = vshrl.u32 %v4298, 7
        %v4300 = vsub.s32 %v4297, %v4299
        %v4301 = vrot.slane %v4294, %v4300
        %v4302 = vcombine.high %v4301, 0
        %v4305 = vpack.i.b16 %v4301, %v4276
        %v4306 = vshrl.u32 %v4276, 16
        %v4307 = vshrl.u32 %v4301, 16
        %v4308 = vpack.i.b16 %v4307, %v4306
        %v4311 = vpack.i.b16 %v4302, %v4277
        %v4312 = vshrl.u32 %v4277, 16
        %v4313 = vshrl.u32 %v4302, 16
        %v4314 = vpack.i.b16 %v4313, %v4312
        %v4316 = vsel %vm1547, %v4305, 0
        %v4319 = vsel %vm1547, %v3893, 0
        %4321 = vmatprep.subr.bf16.mxu0 0
        %4322 = vmatpush1.bf16.xpose.msra.mxu0 %v4319
        %4323 = vmatprep.subr.bf16.mxu0 0
        %4324 = vmatpush1.bf16.xpose.msra.mxu0 0
        %4325 = vmatprep.subr.bf16.mxu0 0
        %4326 = vmatpush1.bf16.xpose.msra.mxu0 0
        %4327 = vmatprep.subr.bf16.mxu0 0
        %4328 = vmatpush1.bf16.xpose.msra.mxu0 0
        %4329 = vmatprep.subr.bf16.mxu0 0
        %4330 = vmatpush1.bf16.xpose.msra.mxu0 0
        %4331 = vmatprep.subr.bf16.mxu0 0
        %4332 = vmatpush1.bf16.xpose.msra.mxu0 0
        %4333 = vmatprep.subr.bf16.mxu0 0
        %4334 = vmatpush1.bf16.xpose.msra.mxu0 0
        %4335 = vmatprep.subr.bf16.mxu0 0
        %4336 = vmatpush1.bf16.xpose.msra.mxu0 0
        %4337 = vmatprep.subr.bf16.mxu0 0
        %4338 = vmatpush1.bf16.xpose.msra.mxu0 0
        %4339 = vmatprep.subr.bf16.mxu0 0
        %4340 = vmatpush1.bf16.xpose.msra.mxu0 0
        %4341 = vmatprep.subr.bf16.mxu0 0
        %4342 = vmatpush1.bf16.xpose.msra.mxu0 0
        %4343 = vmatprep.subr.bf16.mxu0 0
        %4344 = vmatpush1.bf16.xpose.msra.mxu0 0
        %4345 = vmatprep.subr.bf16.mxu0 0
        %4346 = vmatpush1.bf16.xpose.msra.mxu0 0
        %4347 = vmatprep.subr.bf16.mxu0 0
        %4348 = vmatpush1.bf16.xpose.msra.mxu0 0
        %4349 = vmatprep.subr.bf16.mxu0 0
        %4350 = vmatpush1.bf16.xpose.msra.mxu0 0
        %4351 = vmatprep.subr.bf16.mxu0 0
        %4352 = vmatpush1.bf16.xpose.msra.mxu0 0
        %4353 = vmatprep.mubr.bf16.mxu0 0
        %4354 = vmatmul.mubr.bf16.gmra.mrb[0].mxu0 %v4316
        %v4355 = vpop.f32.mrb[0].mxu0
        %v4356 = vadd.f32 0.0, %v4355
        %v4357 = vpop.f32.mrb[0].mxu0
        %v4358 = vpop.f32.mrb[0].mxu0
        %v4359 = vpop.f32.mrb[0].mxu0
        %4360 = vdwg.mxu0
        %v4362 = vsel %vm1547, %v4308, 0
        %v4365 = vsel %vm1547, %v3894, 0
        %4367 = vmatprep.subr.bf16.mxu0 0
        %4368 = vmatpush1.bf16.xpose.msra.mxu0 %v4365
        %4369 = vmatprep.subr.bf16.mxu0 0
        %4370 = vmatpush1.bf16.xpose.msra.mxu0 0
        %4371 = vmatprep.subr.bf16.mxu0 0
        %4372 = vmatpush1.bf16.xpose.msra.mxu0 0
        %4373 = vmatprep.subr.bf16.mxu0 0
        %4374 = vmatpush1.bf16.xpose.msra.mxu0 0
        %4375 = vmatprep.subr.bf16.mxu0 0
        %4376 = vmatpush1.bf16.xpose.msra.mxu0 0
        %4377 = vmatprep.subr.bf16.mxu0 0
        %4378 = vmatpush1.bf16.xpose.msra.mxu0 0
        %4379 = vmatprep.subr.bf16.mxu0 0
        %4380 = vmatpush1.bf16.xpose.msra.mxu0 0
        %4381 = vmatprep.subr.bf16.mxu0 0
        %4382 = vmatpush1.bf16.xpose.msra.mxu0 0
        %4383 = vmatprep.subr.bf16.mxu0 0
        %4384 = vmatpush1.bf16.xpose.msra.mxu0 0
        %4385 = vmatprep.subr.bf16.mxu0 0
        %4386 = vmatpush1.bf16.xpose.msra.mxu0 0
        %4387 = vmatprep.subr.bf16.mxu0 0
        %4388 = vmatpush1.bf16.xpose.msra.mxu0 0
        %4389 = vmatprep.subr.bf16.mxu0 0
        %4390 = vmatpush1.bf16.xpose.msra.mxu0 0
        %4391 = vmatprep.subr.bf16.mxu0 0
        %4392 = vmatpush1.bf16.xpose.msra.mxu0 0
        %4393 = vmatprep.subr.bf16.mxu0 0
        %4394 = vmatpush1.bf16.xpose.msra.mxu0 0
        %4395 = vmatprep.subr.bf16.mxu0 0
        %4396 = vmatpush1.bf16.xpose.msra.mxu0 0
        %4397 = vmatprep.subr.bf16.mxu0 0
        %4398 = vmatpush1.bf16.xpose.msra.mxu0 0
        %4399 = vmatprep.mubr.bf16.mxu0 0
        %4400 = vmatmul.mubr.bf16.gmra.mrb[0].mxu0 %v4362
        %v4401 = vpop.f32.mrb[0].mxu0
        %v4402 = vadd.f32 0.0, %v4401
        %v4403 = vpop.f32.mrb[0].mxu0
        %v4404 = vpop.f32.mrb[0].mxu0
        %v4405 = vpop.f32.mrb[0].mxu0
        %4406 = vdwg.mxu0
        %v4408 = vsel %vm1547, %v4311, 0
        %v4411 = vsel %vm1547, %v3895, 0
        %4413 = vmatprep.subr.bf16.mxu0 0
        %4414 = vmatpush1.bf16.xpose.msra.mxu0 %v4411
        %4415 = vmatprep.subr.bf16.mxu0 0
        %4416 = vmatpush1.bf16.xpose.msra.mxu0 0
        %4417 = vmatprep.subr.bf16.mxu0 0
        %4418 = vmatpush1.bf16.xpose.msra.mxu0 0
        %4419 = vmatprep.subr.bf16.mxu0 0
        %4420 = vmatpush1.bf16.xpose.msra.mxu0 0
        %4421 = vmatprep.subr.bf16.mxu0 0
        %4422 = vmatpush1.bf16.xpose.msra.mxu0 0
        %4423 = vmatprep.subr.bf16.mxu0 0
        %4424 = vmatpush1.bf16.xpose.msra.mxu0 0
        %4425 = vmatprep.subr.bf16.mxu0 0
        %4426 = vmatpush1.bf16.xpose.msra.mxu0 0
        %4427 = vmatprep.subr.bf16.mxu0 0
        %4428 = vmatpush1.bf16.xpose.msra.mxu0 0
        %4429 = vmatprep.subr.bf16.mxu0 0
        %4430 = vmatpush1.bf16.xpose.msra.mxu0 0
        %4431 = vmatprep.subr.bf16.mxu0 0
        %4432 = vmatpush1.bf16.xpose.msra.mxu0 0
        %4433 = vmatprep.subr.bf16.mxu0 0
        %4434 = vmatpush1.bf16.xpose.msra.mxu0 0
        %4435 = vmatprep.subr.bf16.mxu0 0
        %4436 = vmatpush1.bf16.xpose.msra.mxu0 0
        %4437 = vmatprep.subr.bf16.mxu0 0
        %4438 = vmatpush1.bf16.xpose.msra.mxu0 0
        %4439 = vmatprep.subr.bf16.mxu0 0
        %4440 = vmatpush1.bf16.xpose.msra.mxu0 0
        %4441 = vmatprep.subr.bf16.mxu0 0
        %4442 = vmatpush1.bf16.xpose.msra.mxu0 0
        %4443 = vmatprep.subr.bf16.mxu0 0
        %4444 = vmatpush1.bf16.xpose.msra.mxu0 0
        %4445 = vmatprep.mubr.bf16.mxu0 0
        %4446 = vmatmul.mubr.bf16.gmra.mrb[0].mxu0 %v4408
        %v4447 = vpop.f32.mrb[0].mxu0
        %v4448 = vadd.f32 0.0, %v4447
        %v4449 = vpop.f32.mrb[0].mxu0
        %v4450 = vpop.f32.mrb[0].mxu0
        %v4451 = vpop.f32.mrb[0].mxu0
        %4452 = vdwg.mxu0
        %v4454 = vsel %vm1547, %v4314, 0
        %v4457 = vsel %vm1547, %v3896, 0
        %4459 = vmatprep.subr.bf16.mxu0 0
        %4460 = vmatpush1.bf16.xpose.msra.mxu0 %v4457
        %4461 = vmatprep.subr.bf16.mxu0 0
        %4462 = vmatpush1.bf16.xpose.msra.mxu0 0
        %4463 = vmatprep.subr.bf16.mxu0 0
        %4464 = vmatpush1.bf16.xpose.msra.mxu0 0
        %4465 = vmatprep.subr.bf16.mxu0 0
        %4466 = vmatpush1.bf16.xpose.msra.mxu0 0
        %4467 = vmatprep.subr.bf16.mxu0 0
        %4468 = vmatpush1.bf16.xpose.msra.mxu0 0
        %4469 = vmatprep.subr.bf16.mxu0 0
        %4470 = vmatpush1.bf16.xpose.msra.mxu0 0
        %4471 = vmatprep.subr.bf16.mxu0 0
        %4472 = vmatpush1.bf16.xpose.msra.mxu0 0
        %4473 = vmatprep.subr.bf16.mxu0 0
        %4474 = vmatpush1.bf16.xpose.msra.mxu0 0
        %4475 = vmatprep.subr.bf16.mxu0 0
        %4476 = vmatpush1.bf16.xpose.msra.mxu0 0
        %4477 = vmatprep.subr.bf16.mxu0 0
        %4478 = vmatpush1.bf16.xpose.msra.mxu0 0
        %4479 = vmatprep.subr.bf16.mxu0 0
        %4480 = vmatpush1.bf16.xpose.msra.mxu0 0
        %4481 = vmatprep.subr.bf16.mxu0 0
        %4482 = vmatpush1.bf16.xpose.msra.mxu0 0
        %4483 = vmatprep.subr.bf16.mxu0 0
        %4484 = vmatpush1.bf16.xpose.msra.mxu0 0
        %4485 = vmatprep.subr.bf16.mxu0 0
        %4486 = vmatpush1.bf16.xpose.msra.mxu0 0
        %4487 = vmatprep.subr.bf16.mxu0 0
        %4488 = vmatpush1.bf16.xpose.msra.mxu0 0
        %4489 = vmatprep.subr.bf16.mxu0 0
        %4490 = vmatpush1.bf16.xpose.msra.mxu0 0
        %4491 = vmatprep.mubr.bf16.mxu0 0
        %4492 = vmatmul.mubr.bf16.gmra.mrb[0].mxu0 %v4454
        %v4493 = vpop.f32.mrb[0].mxu0
        %v4494 = vadd.f32 0.0, %v4493
        %v4495 = vpop.f32.mrb[0].mxu0
        %v4496 = vpop.f32.mrb[0].mxu0
        %v4497 = vpop.f32.mrb[0].mxu0
        %4498 = vdwg.mxu0
        %4499 = vxpose.xlu0.b32.start [1/16] %v4356, 128
        %4500 = vxpose.xlu0.b32.cont [2/16] 0.0, 128
        %4501 = vxpose.xlu0.b32.cont [3/16] 0.0, 128
        %4502 = vxpose.xlu0.b32.cont [4/16] 0.0, 128
        %4503 = vxpose.xlu0.b32.cont [5/16] 0.0, 128
        %4504 = vxpose.xlu0.b32.cont [6/16] 0.0, 128
        %4505 = vxpose.xlu0.b32.cont [7/16] 0.0, 128
        %4506 = vxpose.xlu0.b32.cont [8/16] 0.0, 128
        %4507 = vxpose.xlu0.b32.cont [9/16] 0.0, 128
        %4508 = vxpose.xlu0.b32.cont [10/16] 0.0, 128
        %4509 = vxpose.xlu0.b32.cont [11/16] 0.0, 128
        %4510 = vxpose.xlu0.b32.cont [12/16] 0.0, 128
        %4511 = vxpose.xlu0.b32.cont [13/16] 0.0, 128
        %4512 = vxpose.xlu0.b32.cont [14/16] 0.0, 128
        %4513 = vxpose.xlu0.b32.cont [15/16] 0.0, 128
        %4514 = vxpose.xlu0.b32.end [16/16] 0.0, 128
        %v4515 = vpop.trf.xlu0
        %v4516 = vpop.trf.xlu0
        %v4517 = vpop.trf.xlu0
        %v4518 = vpop.trf.xlu0
        %v4519 = vpop.trf.xlu0
        %v4520 = vpop.trf.xlu0
        %v4521 = vpop.trf.xlu0
        %v4522 = vpop.trf.xlu0
        %v4523 = vpop.trf.xlu0
        %v4524 = vpop.trf.xlu0
        %v4525 = vpop.trf.xlu0
        %v4526 = vpop.trf.xlu0
        %v4527 = vpop.trf.xlu0
        %v4528 = vpop.trf.xlu0
        %v4529 = vpop.trf.xlu0
        %v4530 = vpop.trf.xlu0
        %4531 = vxpose.xlu0.b32.start [1/16] %v4402, 128
        %4532 = vxpose.xlu0.b32.cont [2/16] 0.0, 128
        %4533 = vxpose.xlu0.b32.cont [3/16] 0.0, 128
        %4534 = vxpose.xlu0.b32.cont [4/16] 0.0, 128
        %4535 = vxpose.xlu0.b32.cont [5/16] 0.0, 128
        %4536 = vxpose.xlu0.b32.cont [6/16] 0.0, 128
        %4537 = vxpose.xlu0.b32.cont [7/16] 0.0, 128
        %4538 = vxpose.xlu0.b32.cont [8/16] 0.0, 128
        %4539 = vxpose.xlu0.b32.cont [9/16] 0.0, 128
        %4540 = vxpose.xlu0.b32.cont [10/16] 0.0, 128
        %4541 = vxpose.xlu0.b32.cont [11/16] 0.0, 128
        %4542 = vxpose.xlu0.b32.cont [12/16] 0.0, 128
        %4543 = vxpose.xlu0.b32.cont [13/16] 0.0, 128
        %4544 = vxpose.xlu0.b32.cont [14/16] 0.0, 128
        %4545 = vxpose.xlu0.b32.cont [15/16] 0.0, 128
        %4546 = vxpose.xlu0.b32.end [16/16] 0.0, 128
        %v4547 = vpop.trf.xlu0
        %v4548 = vpop.trf.xlu0
        %v4549 = vpop.trf.xlu0
        %v4550 = vpop.trf.xlu0
        %v4551 = vpop.trf.xlu0
        %v4552 = vpop.trf.xlu0
        %v4553 = vpop.trf.xlu0
        %v4554 = vpop.trf.xlu0
        %v4555 = vpop.trf.xlu0
        %v4556 = vpop.trf.xlu0
        %v4557 = vpop.trf.xlu0
        %v4558 = vpop.trf.xlu0
        %v4559 = vpop.trf.xlu0
        %v4560 = vpop.trf.xlu0
        %v4561 = vpop.trf.xlu0
        %v4562 = vpop.trf.xlu0
        %4563 = vxpose.xlu0.b32.start [1/16] %v4448, 128
        %4564 = vxpose.xlu0.b32.cont [2/16] 0.0, 128
        %4565 = vxpose.xlu0.b32.cont [3/16] 0.0, 128
        %4566 = vxpose.xlu0.b32.cont [4/16] 0.0, 128
        %4567 = vxpose.xlu0.b32.cont [5/16] 0.0, 128
        %4568 = vxpose.xlu0.b32.cont [6/16] 0.0, 128
        %4569 = vxpose.xlu0.b32.cont [7/16] 0.0, 128
        %4570 = vxpose.xlu0.b32.cont [8/16] 0.0, 128
        %4571 = vxpose.xlu0.b32.cont [9/16] 0.0, 128
        %4572 = vxpose.xlu0.b32.cont [10/16] 0.0, 128
        %4573 = vxpose.xlu0.b32.cont [11/16] 0.0, 128
        %4574 = vxpose.xlu0.b32.cont [12/16] 0.0, 128
        %4575 = vxpose.xlu0.b32.cont [13/16] 0.0, 128
        %4576 = vxpose.xlu0.b32.cont [14/16] 0.0, 128
        %4577 = vxpose.xlu0.b32.cont [15/16] 0.0, 128
        %4578 = vxpose.xlu0.b32.end [16/16] 0.0, 128
        %v4579 = vpop.trf.xlu0
        %v4580 = vpop.trf.xlu0
        %v4581 = vpop.trf.xlu0
        %v4582 = vpop.trf.xlu0
        %v4583 = vpop.trf.xlu0
        %v4584 = vpop.trf.xlu0
        %v4585 = vpop.trf.xlu0
        %v4586 = vpop.trf.xlu0
        %v4587 = vpop.trf.xlu0
        %v4588 = vpop.trf.xlu0
        %v4589 = vpop.trf.xlu0
        %v4590 = vpop.trf.xlu0
        %v4591 = vpop.trf.xlu0
        %v4592 = vpop.trf.xlu0
        %v4593 = vpop.trf.xlu0
        %v4594 = vpop.trf.xlu0
        %4595 = vxpose.xlu0.b32.start [1/16] %v4494, 128
        %4596 = vxpose.xlu0.b32.cont [2/16] 0.0, 128
        %4597 = vxpose.xlu0.b32.cont [3/16] 0.0, 128
        %4598 = vxpose.xlu0.b32.cont [4/16] 0.0, 128
        %4599 = vxpose.xlu0.b32.cont [5/16] 0.0, 128
        %4600 = vxpose.xlu0.b32.cont [6/16] 0.0, 128
        %4601 = vxpose.xlu0.b32.cont [7/16] 0.0, 128
        %4602 = vxpose.xlu0.b32.cont [8/16] 0.0, 128
        %4603 = vxpose.xlu0.b32.cont [9/16] 0.0, 128
        %4604 = vxpose.xlu0.b32.cont [10/16] 0.0, 128
        %4605 = vxpose.xlu0.b32.cont [11/16] 0.0, 128
        %4606 = vxpose.xlu0.b32.cont [12/16] 0.0, 128
        %4607 = vxpose.xlu0.b32.cont [13/16] 0.0, 128
        %4608 = vxpose.xlu0.b32.cont [14/16] 0.0, 128
        %4609 = vxpose.xlu0.b32.cont [15/16] 0.0, 128
        %4610 = vxpose.xlu0.b32.end [16/16] 0.0, 128
        %v4611 = vpop.trf.xlu0
        %v4612 = vpop.trf.xlu0
        %v4613 = vpop.trf.xlu0
        %v4614 = vpop.trf.xlu0
        %v4615 = vpop.trf.xlu0
        %v4616 = vpop.trf.xlu0
        %v4617 = vpop.trf.xlu0
        %v4618 = vpop.trf.xlu0
        %v4619 = vpop.trf.xlu0
        %v4620 = vpop.trf.xlu0
        %v4621 = vpop.trf.xlu0
        %v4622 = vpop.trf.xlu0
        %v4623 = vpop.trf.xlu0
        %v4624 = vpop.trf.xlu0
        %v4625 = vpop.trf.xlu0
        %v4626 = vpop.trf.xlu0
        %v4627 = vcombine.low %v4515, %v4579
        %v4628 = vcombine.high %v4515, %v4579
        %v4630 = vunpack.c.l.s4 1983009808
        %v4631 = vunpack.c.0.s8 %v4630
        %v4632 = vlaneseq
        %v4633 = vshrl.u32 %v4632, 7
        %v4634 = vsub.s32 %v4631, %v4633
        %v4635 = vrot.slane %v4627, %v4634
        %v4637 = vunpack.c.l.s4 1983009808
        %v4638 = vunpack.c.0.s8 %v4637
        %v4639 = vlaneseq
        %v4640 = vshrl.u32 %v4639, 7
        %v4641 = vsub.s32 %v4638, %v4640
        %v4642 = vrot.slane %v4628, %v4641
        %v4643 = vcombine.low %v4547, %v4611
        %v4644 = vcombine.high %v4547, %v4611
        %v4646 = vunpack.c.l.s4 1983009808
        %v4647 = vunpack.c.0.s8 %v4646
        %v4648 = vlaneseq
        %v4649 = vshrl.u32 %v4648, 7
        %v4650 = vsub.s32 %v4647, %v4649
        %v4651 = vrot.slane %v4643, %v4650
        %v4653 = vunpack.c.l.s4 1983009808
        %v4654 = vunpack.c.0.s8 %v4653
        %v4655 = vlaneseq
        %v4656 = vshrl.u32 %v4655, 7
        %v4657 = vsub.s32 %v4654, %v4656
        %v4658 = vrot.slane %v4644, %v4657
        %v4659 = vcombine.low %v4635, %v4651
        %v4660 = vcombine.high %v4635, %v4651
        %v4662 = vunpack.c.l.s4 1934713408
        %v4663 = vunpack.c.0.s8 %v4662
        %v4664 = vlaneseq
        %v4665 = vshrl.u32 %v4664, 7
        %v4666 = vsub.s32 %v4663, %v4665
        %v4667 = vrot.slane %v4659, %v4666
        %v4669 = vunpack.c.l.s4 1934713408
        %v4670 = vunpack.c.0.s8 %v4669
        %v4671 = vlaneseq
        %v4672 = vshrl.u32 %v4671, 7
        %v4673 = vsub.s32 %v4670, %v4672
        %v4674 = vrot.slane %v4660, %v4673
        %v4675 = vcombine.low %v4642, %v4658
        %v4676 = vcombine.high %v4642, %v4658
        %v4678 = vunpack.c.l.s4 1934713408
        %v4679 = vunpack.c.0.s8 %v4678
        %v4680 = vlaneseq
        %v4681 = vshrl.u32 %v4680, 7
        %v4682 = vsub.s32 %v4679, %v4681
        %v4683 = vrot.slane %v4675, %v4682
        %v4685 = vunpack.c.l.s4 1934713408
        %v4686 = vunpack.c.0.s8 %v4685
        %v4687 = vlaneseq
        %v4688 = vshrl.u32 %v4687, 7
        %v4689 = vsub.s32 %v4686, %v4688
        %v4690 = vrot.slane %v4676, %v4689
        %v4691 = vcombine.high %v4667, 0.0
        %v4692 = vcombine.high %v4674, 0.0
        %v4693 = vcombine.high %v4683, 0.0
        %v4694 = vcombine.high %v4690, 0.0
        %v4695 = vcombine.low %v4667, %v4674
        %v4697 = vunpack.c.l.s4 1983009808
        %v4698 = vunpack.c.0.s8 %v4697
        %v4699 = vlaneseq
        %v4700 = vshrl.u32 %v4699, 7
        %v4701 = vsub.s32 %v4698, %v4700
        %v4702 = vrot.slane %v4695, %v4701
        %v4703 = vcombine.low %v4691, %v4692
        %v4705 = vunpack.c.l.s4 1983009808
        %v4706 = vunpack.c.0.s8 %v4705
        %v4707 = vlaneseq
        %v4708 = vshrl.u32 %v4707, 7
        %v4709 = vsub.s32 %v4706, %v4708
        %v4710 = vrot.slane %v4703, %v4709
        %v4711 = vcombine.low %v4683, %v4690
        %v4713 = vunpack.c.l.s4 1983009808
        %v4714 = vunpack.c.0.s8 %v4713
        %v4715 = vlaneseq
        %v4716 = vshrl.u32 %v4715, 7
        %v4717 = vsub.s32 %v4714, %v4716
        %v4718 = vrot.slane %v4711, %v4717
        %v4719 = vcombine.low %v4693, %v4694
        %v4721 = vunpack.c.l.s4 1983009808
        %v4722 = vunpack.c.0.s8 %v4721
        %v4723 = vlaneseq
        %v4724 = vshrl.u32 %v4723, 7
        %v4725 = vsub.s32 %v4722, %v4724
        %v4726 = vrot.slane %v4719, %v4725
        %v4727 = vcombine.low %v4702, %v4710
        %v4728 = vcombine.high %v4702, %v4710
        %v4730 = vunpack.c.l.s4 1934713408
        %v4731 = vunpack.c.0.s8 %v4730
        %v4732 = vlaneseq
        %v4733 = vshrl.u32 %v4732, 7
        %v4734 = vsub.s32 %v4731, %v4733
        %v4735 = vrot.slane %v4727, %v4734
        %v4737 = vunpack.c.l.s4 1934713408
        %v4738 = vunpack.c.0.s8 %v4737
        %v4739 = vlaneseq
        %v4740 = vshrl.u32 %v4739, 7
        %v4741 = vsub.s32 %v4738, %v4740
        %v4742 = vrot.slane %v4728, %v4741
        %v4743 = vcombine.low %v4718, %v4726
        %v4744 = vcombine.high %v4718, %v4726
        %v4746 = vunpack.c.l.s4 1934713408
        %v4747 = vunpack.c.0.s8 %v4746
        %v4748 = vlaneseq
        %v4749 = vshrl.u32 %v4748, 7
        %v4750 = vsub.s32 %v4747, %v4749
        %v4751 = vrot.slane %v4743, %v4750
        %v4753 = vunpack.c.l.s4 1934713408
        %v4754 = vunpack.c.0.s8 %v4753
        %v4755 = vlaneseq
        %v4756 = vshrl.u32 %v4755, 7
        %v4757 = vsub.s32 %v4754, %v4756
        %v4758 = vrot.slane %v4744, %v4757
        %v4759 = vcombine.low %v4735, %v4751
        %v4760 = vcombine.high %v4735, %v4751
        %v4761 = vcombine.low %v4742, %v4758
        %v4762 = vcombine.high %v4742, %v4758
        %4764 = vrot.lane.b32.xlu0 %v4760, 8
        %v4765 = vpop.permute.xlu0 %4764
        %4768 = vrot.lane.b32.xlu0 %v4761, 16
        %v4769 = vpop.permute.xlu0 %4768
        %4772 = vrot.lane.b32.xlu0 %v4762, 24
        %v4773 = vpop.permute.xlu0 %4772
        %v4775 = vsel %vm1547, %v4759, %v4765
        %v4776 = vsel %vm2668, %v4775, %v4769
        %v4777 = vsel %vm2670, %v4776, %v4773
        %v4778 = vpack.c.bf16 %v4777, %v4777
        %v4779 = vlaneseq
        %v4780 = vshrl.u32 %v4779, 7
        %v4781 = vsub.s32 3, %v4780
        %v4782 = vrot.slane %v2778, %v4781
        %v4784 = vsel %vm761, %v4778, 0
        %4786 = vmatprep.subr.bf16.mxu0 0
        %4787 = vmatpush1.bf16.msra.mxu0 %v2776
        %4788 = vmatprep.subr.bf16.mxu0 0
        %4789 = vmatpush1.bf16.msra.mxu0 %v2777
        %4790 = vmatprep.subr.bf16.mxu0 0
        %4791 = vmatpush1.bf16.msra.mxu0 0
        %4792 = vmatprep.subr.bf16.mxu0 0
        %4793 = vmatpush1.bf16.msra.mxu0 0
        %4794 = vmatprep.subr.bf16.mxu0 0
        %4795 = vmatpush1.bf16.msra.mxu0 0
        %4796 = vmatprep.subr.bf16.mxu0 0
        %4797 = vmatpush1.bf16.msra.mxu0 0
        %4798 = vmatprep.subr.bf16.mxu0 0
        %4799 = vmatpush1.bf16.msra.mxu0 0
        %4800 = vmatprep.subr.bf16.mxu0 0
        %4801 = vmatpush1.bf16.msra.mxu0 0
        %4802 = vmatprep.subr.bf16.mxu0 0
        %4803 = vmatpush1.bf16.msra.mxu0 0
        %4804 = vmatprep.subr.bf16.mxu0 0
        %4805 = vmatpush1.bf16.msra.mxu0 0
        %4806 = vmatprep.subr.bf16.mxu0 0
        %4807 = vmatpush1.bf16.msra.mxu0 0
        %4808 = vmatprep.subr.bf16.mxu0 0
        %4809 = vmatpush1.bf16.msra.mxu0 0
        %4810 = vmatprep.subr.bf16.mxu0 0
        %4811 = vmatpush1.bf16.msra.mxu0 0
        %4812 = vmatprep.subr.bf16.mxu0 0
        %4813 = vmatpush1.bf16.msra.mxu0 0
        %4814 = vmatprep.subr.bf16.mxu0 0
        %4815 = vmatpush1.bf16.msra.mxu0 0
        %4816 = vmatprep.subr.bf16.mxu0 0
        %4817 = vmatpush1.bf16.msra.mxu0 0
        %4818 = vmatprep.mubr.bf16.mxu0 0
        %4819 = vmatmul.mubr.bf16.gmra.mrb[0].mxu0 %v4784
        %v4820 = vpop.f32.mrb[0].mxu0
        %v4821 = vadd.f32 %v4782, %v4820
        %v4822 = vpop.f32.mrb[0].mxu0
        %v4823 = vpop.f32.mrb[0].mxu0
        %v4824 = vpop.f32.mrb[0].mxu0
        %4825 = vdwg.mxu0
        %v4826 = vadd.f32 %v4821, %v2753
        %v4827 = vsel %vm761, %v4826, 0.0
        %4828 = vadd.xlane.f32.xlu0 %v4827
        %v4829 = vpop.xlane.xlu0 %4828
        %v4830 = vmul.f32 %v4829, %v2733
        %v4831 = vsub.f32 %v4826, %v4830
        %v4832 = vmul.f32 %v4831, %v4831
        %v4833 = vsel %vm761, %v4832, 0.0
        %4834 = vadd.xlane.f32.xlu0 %v4833
        %v4835 = vpop.xlane.xlu0 %4834
        %v4836 = vmul.f32 %v4835, %v2733
        %v4837 = vadd.f32 %v4836, 1e-05
        %v4838 = vrsqrt.pop %v4837
        %v4839 = vmul.f32 %v4831, %v4838
        %v4840 = vlaneseq
        %v4841 = vshrl.u32 %v4840, 7
        %v4842 = vsub.s32 2, %v4841
        %v4843 = vrot.slane %v746, %v4842
        %v4844 = vmul.f32 %v4839, %v4843
        %v4845 = vlaneseq
        %v4846 = vshrl.u32 %v4845, 7
        %v4847 = vsub.s32 3, %v4846
        %v4848 = vrot.slane %v746, %v4847
        %v4849 = vadd.f32 %v4844, %v4848
        %v4850 = vpack.c.bf16 %v4849, %v4849
        %v4851 = vld [vmem:[#allocation20] sm:$0xff]
        %v4852 = vld [vmem:[#allocation20 + $0x8] sm:$0xff]
        %v4853 = vld [vmem:[#allocation20 + $0x10] sm:$0xff]
        %v4854 = vld [vmem:[#allocation20 + $0x18] sm:$0xff]
        %v4855 = vpack.c.bf16 %v4852, %v4851
        %v4856 = vpack.c.bf16 %v4854, %v4853
        %v4857 = vld [vmem:[#allocation22] sm:$0x1]
        %v4859 = vlaneseq
        %v4860 = vshrl.u32 %v4859, 7
        %v4861 = vsub.s32 0, %v4860
        %v4862 = vrot.slane %v4857, %v4861
        %v4865 = vsel %vm761, %v4850, 0
        %4867 = vmatprep.subr.bf16.mxu0 0
        %4868 = vmatpush1.bf16.msra.mxu0 %v4855
        %4869 = vmatprep.subr.bf16.mxu0 0
        %4870 = vmatpush1.bf16.msra.mxu0 %v4856
        %4871 = vmatprep.subr.bf16.mxu0 0
        %4872 = vmatpush1.bf16.msra.mxu0 0
        %4873 = vmatprep.subr.bf16.mxu0 0
        %4874 = vmatpush1.bf16.msra.mxu0 0
        %4875 = vmatprep.subr.bf16.mxu0 0
        %4876 = vmatpush1.bf16.msra.mxu0 0
        %4877 = vmatprep.subr.bf16.mxu0 0
        %4878 = vmatpush1.bf16.msra.mxu0 0
        %4879 = vmatprep.subr.bf16.mxu0 0
        %4880 = vmatpush1.bf16.msra.mxu0 0
        %4881 = vmatprep.subr.bf16.mxu0 0
        %4882 = vmatpush1.bf16.msra.mxu0 0
        %4883 = vmatprep.subr.bf16.mxu0 0
        %4884 = vmatpush1.bf16.msra.mxu0 0
        %4885 = vmatprep.subr.bf16.mxu0 0
        %4886 = vmatpush1.bf16.msra.mxu0 0
        %4887 = vmatprep.subr.bf16.mxu0 0
        %4888 = vmatpush1.bf16.msra.mxu0 0
        %4889 = vmatprep.subr.bf16.mxu0 0
        %4890 = vmatpush1.bf16.msra.mxu0 0
        %4891 = vmatprep.subr.bf16.mxu0 0
        %4892 = vmatpush1.bf16.msra.mxu0 0
        %4893 = vmatprep.subr.bf16.mxu0 0
        %4894 = vmatpush1.bf16.msra.mxu0 0
        %4895 = vmatprep.subr.bf16.mxu0 0
        %4896 = vmatpush1.bf16.msra.mxu0 0
        %4897 = vmatprep.subr.bf16.mxu0 0
        %4898 = vmatpush1.bf16.msra.mxu0 0
        %4899 = vmatprep.mubr.bf16.mxu0 0
        %4900 = vmatmul.mubr.bf16.gmra.mrb[0].mxu0 %v4865
        %v4901 = vpop.f32.mrb[0].mxu0
        %v4902 = vadd.f32 %v4862, %v4901
        %v4903 = vpop.f32.mrb[0].mxu0
        %v4904 = vpop.f32.mrb[0].mxu0
        %v4905 = vpop.f32.mrb[0].mxu0
        %4906 = vdwg.mxu0
        %v4907 = vmax.f32 %v4902, 0.0
        %v4908 = vpack.c.bf16 %v4907, %v4907
        %v4909 = vld [vmem:[#allocation23] sm:$0xff]
        %v4910 = vld [vmem:[#allocation23 + $0x8] sm:$0xff]
        %v4911 = vld [vmem:[#allocation23 + $0x10] sm:$0xff]
        %v4912 = vld [vmem:[#allocation23 + $0x18] sm:$0xff]
        %v4913 = vld [vmem:[#allocation23 + $0x20] sm:$0xff]
        %v4914 = vld [vmem:[#allocation23 + $0x28] sm:$0xff]
        %v4915 = vld [vmem:[#allocation23 + $0x30] sm:$0xff]
        %v4916 = vld [vmem:[#allocation23 + $0x38] sm:$0xff]
        %v4917 = vpack.c.bf16 %v4910, %v4909
        %v4918 = vpack.c.bf16 %v4912, %v4911
        %v4919 = vpack.c.bf16 %v4914, %v4913
        %v4920 = vpack.c.bf16 %v4916, %v4915
        %v4921 = vld [vmem:[#allocation25] sm:$0x1]
        %v4923 = vlaneseq
        %v4924 = vshrl.u32 %v4923, 7
        %v4925 = vsub.s32 0, %v4924
        %v4926 = vrot.slane %v4921, %v4925
        %vm4928 = vcmask 523264
        %v4930 = vsel %vm4928, %v4908, 0
        %4932 = vmatprep.subr.bf16.mxu0 0
        %4933 = vmatpush1.bf16.msra.mxu0 %v4917
        %4934 = vmatprep.subr.bf16.mxu0 0
        %4935 = vmatpush1.bf16.msra.mxu0 %v4918
        %4936 = vmatprep.subr.bf16.mxu0 0
        %4937 = vmatpush1.bf16.msra.mxu0 %v4919
        %4938 = vmatprep.subr.bf16.mxu0 0
        %4939 = vmatpush1.bf16.msra.mxu0 %v4920
        %4940 = vmatprep.subr.bf16.mxu0 0
        %4941 = vmatpush1.bf16.msra.mxu0 0
        %4942 = vmatprep.subr.bf16.mxu0 0
        %4943 = vmatpush1.bf16.msra.mxu0 0
        %4944 = vmatprep.subr.bf16.mxu0 0
        %4945 = vmatpush1.bf16.msra.mxu0 0
        %4946 = vmatprep.subr.bf16.mxu0 0
        %4947 = vmatpush1.bf16.msra.mxu0 0
        %4948 = vmatprep.subr.bf16.mxu0 0
        %4949 = vmatpush1.bf16.msra.mxu0 0
        %4950 = vmatprep.subr.bf16.mxu0 0
        %4951 = vmatpush1.bf16.msra.mxu0 0
        %4952 = vmatprep.subr.bf16.mxu0 0
        %4953 = vmatpush1.bf16.msra.mxu0 0
        %4954 = vmatprep.subr.bf16.mxu0 0
        %4955 = vmatpush1.bf16.msra.mxu0 0
        %4956 = vmatprep.subr.bf16.mxu0 0
        %4957 = vmatpush1.bf16.msra.mxu0 0
        %4958 = vmatprep.subr.bf16.mxu0 0
        %4959 = vmatpush1.bf16.msra.mxu0 0
        %4960 = vmatprep.subr.bf16.mxu0 0
        %4961 = vmatpush1.bf16.msra.mxu0 0
        %4962 = vmatprep.subr.bf16.mxu0 0
        %4963 = vmatpush1.bf16.msra.mxu0 0
        %4964 = vmatprep.mubr.bf16.mxu0 0
        %4965 = vmatmul.mubr.bf16.gmra.mrb[0].mxu0 %v4930
        %v4966 = vpop.f32.mrb[0].mxu0
        %v4967 = vadd.f32 %v4926, %v4966
        %v4968 = vpop.f32.mrb[0].mxu0
        %v4969 = vpop.f32.mrb[0].mxu0
        %v4970 = vpop.f32.mrb[0].mxu0
        %4971 = vdwg.mxu0
        %v4972 = vadd.f32 %v4967, %v4849
        %v4973 = vsel %vm761, %v4972, 0.0
        %4974 = vadd.xlane.f32.xlu0 %v4973
        %v4975 = vpop.xlane.xlu0 %4974
        %v4976 = vmul.f32 %v4975, %v2733
        %v4977 = vsub.f32 %v4972, %v4976
        %v4978 = vmul.f32 %v4977, %v4977
        %v4979 = vsel %vm761, %v4978, 0.0
        %4980 = vadd.xlane.f32.xlu0 %v4979
        %v4981 = vpop.xlane.xlu0 %4980
        %v4982 = vmul.f32 %v4981, %v2733
        %v4983 = vadd.f32 %v4982, 1e-05
        %v4984 = vrsqrt.pop %v4983
        %v4985 = vmul.f32 %v4977, %v4984
        %v4986 = vlaneseq
        %v4987 = vshrl.u32 %v4986, 7
        %v4988 = vsub.s32 4, %v4987
        %v4989 = vrot.slane %v746, %v4988
        %v4990 = vmul.f32 %v4985, %v4989
        %v4991 = vlaneseq
        %v4992 = vshrl.u32 %v4991, 7
        %v4993 = vsub.s32 5, %v4992
        %v4994 = vrot.slane %v746, %v4993
        %v4995 = vadd.f32 %v4990, %v4994
        %4996 = vst.msk [vmem:[%s740] sm:$0xff] %vm761, %v4995
        %s4997 = sand.u32 %s379, 1
        %s4998 = scalar_lea.sflag [#allocation4], %s4997
        %s4999 = sand.u32 %s379, 1
        %s5000 = smul.addr %s4999, 8
        %s5001 = scalar_lea.vmem [#allocation26], %s5000
        // Predicated region
        $region141: #{tpu_custom_call.1} parent=79 // pred_check
          %p5002 = pneg %p389
        $region142: #{tpu_custom_call.1} parent=79 // pred_check_branch
          %5004 = sbr.rel (%p5002) target = $region144
        $region143: #{tpu_custom_call.1} parent=79 // pred_region
          %s5006 = ssub.s32 128, 128
          %5007 = vsyncadd %s4998, %s5006
          %s5008 = smul.addr %s41, 128
          %s5009 = scalar_lea.hbm %s15, %s5008
          %s5011 = sshll.u32 %s5001, 4
          %s5012 = int_to_ptr.vmem [resolvable:$true] %s5011
          %5014 = dma.vmem_to_hbm [thread:$0]  %s5012, 128, %s5009, %s4998
        $region144: #{tpu_custom_call.1} parent=79 // pred_fallthru
          _
      $region80: #{tpu_custom_call.1} parent=5 // pred_fallthru
        _
      %p5015 = scmp.le.s32.totalorder 2, %s36
      // Predicated region
      $region145: #{tpu_custom_call.1} parent=5 // pred_check
        %p5016 = pneg %p5015
      $region146: #{tpu_custom_call.1} parent=5 // pred_check_branch
        %5018 = sbr.rel (%p5016) target = $region148
      $region147: #{tpu_custom_call.1} parent=5 // pred_region
        %s5019 = ssub.s32 %s36, 2
        // Predicated region
        $region149: #{tpu_custom_call.1} parent=147 // pred_check
          %p5020 = pneg %p395
        $region150: #{tpu_custom_call.1} parent=147 // pred_check_branch
          %5022 = sbr.rel (%p5020) target = $region152
        $region151: #{tpu_custom_call.1} parent=147 // pred_region
          %s5023 = sand.u32 %s380, 1
          %s5024 = scalar_lea.sflag [#allocation4], %s5023
          %s5025 = sand.u32 %s380, 1
          %s5026 = smul.addr %s5025, 8
          %s5027 = scalar_lea.vmem [#allocation26], %s5026
          %5028 = dma.done %s5024, 128
        $region152: #{tpu_custom_call.1} parent=147 // pred_fallthru
          _
      $region148: #{tpu_custom_call.1} parent=5 // pred_fallthru
        _
    $region6: #{tpu_custom_call.1} parent=1 // loop_footer
      %s40 = sadd.s32 1, %s36
    $region7: #{tpu_custom_call.1} parent=1 // loop_footer_branch
      %35 = sbr.rel target = $region3
    $region8: #{tpu_custom_call.1} parent=1 // loop_exit
      _
    %5029 = vsyncpa [#allocation3], 1
    %s5030 = scalar_lea.sflag [#allocation3], 1
    %5031 = vsyncpa %s5030, 1
    %5032 = vsyncpa [#allocation6], 1
    %s5033 = scalar_lea.sflag [#allocation6], 1
    %5034 = vsyncpa %s5033, 1
    %5035 = vsyncpa [#allocation9], 1
    %5036 = vsyncpa [#allocation12], 1
    %5037 = vsyncpa [#allocation15], 1
    %5038 = vsyncpa [#allocation18], 1
    %5039 = vsyncpa [#allocation21], 1
    %5040 = vsyncpa [#allocation24], 1
    %5041 = vsyncpa [#allocation4], 1
    %s5042 = scalar_lea.sflag [#allocation4], 1
    %5043 = vsyncpa %s5042, 1

</llo_original>
